<compile_context>
chip_gen: v7x
topology: tpu7x:2x2x1
jax: 0.10.0
libtpu: 0.0.40
codegen_flags: <defaults>
</compile_context>

<pallas_src>
import functools

import jax
import jax.numpy as jnp
from jax.experimental import pallas as pl
from jax.experimental.pallas import tpu as pltpu

# ----------------------------- config (args / data) -------------------------
B    = 8     # batch  (chosen so every in-kernel slice is 8-sublane aligned)
P    = 16    # args.window
M    = 8     # data.m
HIDC = 16    # args.hidCNN
HIDR = 16    # args.hidRNN
HIDS = 4     # args.hidSkip
CK   = 4     # args.CNN_kernel
SKIP = 4     # args.skip
HW   = 4     # args.highway_window
T    = P - CK + 1            # conv output length (13)
PT   = (P - CK) // SKIP      # self.pt (3)

G1 = 3 * HIDR                # 48 (GRU1 gate width)
GS = 3 * HIDS                # 12 (GRUskip gate width)
GW = G1 + GS                 # 60 (fused input-projection width)

_F32 = jnp.float32

# ----------------------------- packed weight slab layout ---------------------
COLS    = 64
R_CONV  = 0              # (CK*M, HIDC)              rows   0..31, row = k*M + m
R_WIN   = 32             # (HIDC, GW)   [r1|z1|n1|rs|zs|ns]  rows 32..47
R_WHH1  = 48             # (HIDR, 3*HIDR) [r|z|n]    rows  48..63
R_WHHS  = 64             # (HIDS, 3*HIDS) [r|z|n]    rows  64..67
R_WHEAD = 72             # (HIDR + SKIP*HIDS, M) = lin1_w.T  rows 72..103
R_BC    = 104            # conv bias            (1, HIDC)
R_BG    = 105            # fused gate biases    (1, GW)
R_BNH1  = 106            # b_hn (GRU1)          (1, HIDR)
R_BNHS  = 107            # b_hn (GRUskip)       (1, HIDS)
R_B1    = 108            # lin1 bias + hw bias  (1, M)
R_HWCOL = 112            # highway weight col   (HW*B, 1), row k*B+b = hw_w[k]
ROWS    = 144


# ----------------------------- fused Pallas kernel ---------------------------
def lstnet_kernel(x_ref, w_ref, o_ref):
    f32 = jnp.float32
    dot = functools.partial(jnp.dot, preferred_element_type=f32)
    W = w_ref

    x = x_ref[...]                               # (P*B, M), time-major rows t*B + b

    # ---- conv1 + ReLU: CK consecutive accumulating dots into one target ------
    acc = dot(x[0:T * B, :], W[R_CONV:R_CONV + M, 0:HIDC])
    for k in range(1, CK):
        acc = acc + dot(x[k * B:(k + T) * B, :],
                        W[R_CONV + k * M:R_CONV + (k + 1) * M, 0:HIDC])
    c = jnp.maximum(acc + W[R_BC:R_BC + 1, 0:HIDC], 0.0)   # (T*B, HIDC); dropout = id

    # ---- fused input projections for BOTH GRUs (one MXU pass) ----------------
    g = dot(c, W[R_WIN:R_WIN + HIDC, 0:GW]) + W[R_BG:R_BG + 1, 0:GW]   # (T*B, 60)

    # ---- GRU1: fused hidden matmul + fused sigmoid(r,z) per step -------------
    whh1 = W[R_WHH1:R_WHH1 + HIDR, 0:G1]        # (HIDR, 3*HIDR)
    bnh1 = W[R_BNH1:R_BNH1 + 1, 0:HIDR]         # (1, HIDR)
    h = jnp.zeros((B, HIDR), f32)
    for t in range(T):                           # fully unrolled, aligned slices
        lo = t * B
        gt = g[lo:lo + B, 0:G1]                  # (B, 48)
        gh = dot(h, whh1)                        # single MXU round trip per step
        rz = jax.nn.sigmoid(gt[:, 0:2 * HIDR] + gh[:, 0:2 * HIDR])   # one EUP pass
        r = rz[:, 0:HIDR]
        z = rz[:, HIDR:2 * HIDR]
        n = jnp.tanh(gt[:, 2 * HIDR:G1] + r * (gh[:, 2 * HIDR:G1] + bnh1))
        h = (1.0 - z) * n + z * h
    h_r = h                                      # (B, HIDR)

    # ---- GRUskip: rows per step ordered (sk-major, b-minor) ------------------
    whhs = W[R_WHHS:R_WHHS + HIDS, 0:GS]         # (HIDS, 3*HIDS)
    bnhs = W[R_BNHS:R_BNHS + 1, 0:HIDS]          # (1, HIDS)
    NB = SKIP * B                                # skip-GRU batch size (32)
    base = (T - PT * SKIP) * B                   # first tail row
    hs = jnp.zeros((NB, HIDS), f32)
    for p_ in range(PT):
        lo = base + p_ * NB
        gt = g[lo:lo + NB, G1:GW]                # (NB, 12)
        gh = dot(hs, whhs)                       # single MXU round trip per step
        rz = jax.nn.sigmoid(gt[:, 0:2 * HIDS] + gh[:, 0:2 * HIDS])
        r = rz[:, 0:HIDS]
        z = rz[:, HIDS:2 * HIDS]
        n = jnp.tanh(gt[:, 2 * HIDS:GS] + r * (gh[:, 2 * HIDS:GS] + bnhs))
        hs = (1.0 - z) * n + z * hs              # (SKIP*B, HIDS)

    # ---- linear1 (aligned row slices of lin1_w.T; no in-kernel concat) -------
    res = dot(h_r, W[R_WHEAD:R_WHEAD + HIDR, 0:M]) + W[R_B1:R_B1 + 1, 0:M]
    for sk in range(SKIP):
        w_lo = R_WHEAD + HIDR + sk * HIDS
        res = res + dot(hs[sk * B:(sk + 1) * B, :], W[w_lo:w_lo + HIDS, 0:M])

    # ---- highway: broadcast weight column (lives in the slab) + HW adds ------
    zt = x[(P - HW) * B:, :] * W[R_HWCOL:R_HWCOL + HW * B, 0:1]   # (HW*B, M)
    for k in range(HW):
        res = res + zt[k * B:(k + 1) * B, :]

    # ---- output_fun == 'sigmoid' ----------------------------------------------
    o_ref[...] = jax.nn.sigmoid(res)


# ----------------------------- weight packing (once, off hot path) -----------
def pack_params(p):
    Wp = jnp.zeros((ROWS, COLS), _F32)

    # conv: (HIDC, 1, CK, M) -> (CK*M, HIDC), row index k*M + m
    wc = jnp.transpose(p["conv_w"][:, 0], (1, 2, 0)).reshape(CK * M, HIDC)
    Wp = Wp.at[R_CONV:R_CONV + CK * M, 0:HIDC].set(wc)

    # fused input projections: [W_ir1|W_iz1|W_in1 | W_irs|W_izs|W_ins] transposed
    win_cat = jnp.concatenate([p["gru1_wih"].T, p["grus_wih"].T], axis=1)  # (HIDC, 60)
    Wp = Wp.at[R_WIN:R_WIN + HIDC, 0:GW].set(win_cat)

    # fused hidden weights
    Wp = Wp.at[R_WHH1:R_WHH1 + HIDR, 0:G1].set(p["gru1_whh"].T)            # (16, 48)
    Wp = Wp.at[R_WHHS:R_WHHS + HIDS, 0:GS].set(p["grus_whh"].T)            # (4, 12)

    # head: lin1_w (M, HIDR + SKIP*HIDS) -> transpose; row layout matches
    # [h_r | hs group sk=0 | ... | hs group sk=SKIP-1]
    Wp = Wp.at[R_WHEAD:R_WHEAD + HIDR + SKIP * HIDS, 0:M].set(p["lin1_w"].T)

    # biases
    bih1, bhh1 = p["gru1_bih"], p["gru1_bhh"]
    bihs, bhhs = p["grus_bih"], p["grus_bhh"]
    bg = jnp.concatenate([
        bih1[0:2 * HIDR] + bhh1[0:2 * HIDR],     # r,z (input+hidden biases folded)
        bih1[2 * HIDR:3 * HIDR],                 # n (input bias only)
        bihs[0:2 * HIDS] + bhhs[0:2 * HIDS],
        bihs[2 * HIDS:3 * HIDS]])
    Wp = Wp.at[R_BC, 0:HIDC].set(p["conv_b"])
    Wp = Wp.at[R_BG, 0:GW].set(bg)
    Wp = Wp.at[R_BNH1, 0:HIDR].set(bhh1[2 * HIDR:3 * HIDR])
    Wp = Wp.at[R_BNHS, 0:HIDS].set(bhhs[2 * HIDS:3 * HIDS])
    Wp = Wp.at[R_B1, 0:M].set(p["lin1_b"] + p["hw_b"][0])    # fold highway bias

    # highway weight as a (HW*B, 1) broadcast column (row k*B + b = hw_w[k])
    hwcol = jnp.broadcast_to(p["hw_w"].reshape(HW, 1, 1), (HW, B, 1)).reshape(HW * B, 1)
    Wp = Wp.at[R_HWCOL:R_HWCOL + HW * B, 0:1].set(hwcol)
    return Wp


# ----------------------------- forward ---------------------------------------
@jax.jit
def lstnet_forward(x, wpack):
    # single cheap wrapper op: present x time-major so every conv window / GRU
    # step / highway row is a contiguous, 8-aligned slice inside the kernel.
    x_tm = jnp.transpose(x, (1, 0, 2)).reshape(P * B, M)
    return pl.pallas_call(
        lstnet_kernel,
        out_shape=jax.ShapeDtypeStruct((B, M), jnp.float32),
        in_specs=[pl.BlockSpec(memory_space=pltpu.MemorySpace.VMEM),
                  pl.BlockSpec(memory_space=pltpu.MemorySpace.VMEM)],
        out_specs=pl.BlockSpec(memory_space=pltpu.MemorySpace.VMEM),
    )(x_tm, wpack)


# ----------------------------- pure-JAX reference ----------------------------
_hp_dot = functools.partial(jnp.dot, precision=jax.lax.Precision.HIGHEST)


def _gru_ref(x_seq, w_ih, w_hh, b_ih, b_hh):
    _, N, _ = x_seq.shape
    H = w_hh.shape[1]

    def step(h, x_t):
        gi = _hp_dot(x_t, w_ih.T) + b_ih
        gh = _hp_dot(h, w_hh.T) + b_hh
        r = jax.nn.sigmoid(gi[:, :H] + gh[:, :H])
        z = jax.nn.sigmoid(gi[:, H:2 * H] + gh[:, H:2 * H])
        n = jnp.tanh(gi[:, 2 * H:] + r * gh[:, 2 * H:])
        return (1.0 - z) * n + z * h, None

    h_last, _ = jax.lax.scan(step, jnp.zeros((N, H), _F32), x_seq)
    return h_last


def reference_forward(x, p):
    patches = jnp.stack([x[:, t:t + CK, :] for t in range(T)], axis=1)
    xu = patches.reshape(B * T, CK * M)
    wc = p["conv_w"].reshape(HIDC, CK * M).T
    c_flat = jnp.maximum(_hp_dot(xu, wc) + p["conv_b"][None, :], 0.0)
    c_bth = c_flat.reshape(B, T, HIDC)
    r = _gru_ref(jnp.transpose(c_bth, (1, 0, 2)),
                 p["gru1_wih"], p["gru1_whh"], p["gru1_bih"], p["gru1_bhh"])
    tail = c_bth[:, T - PT * SKIP:, :]
    s_seq = tail.reshape(B, PT, SKIP, HIDC).transpose(1, 0, 2, 3) \
                .reshape(PT, B * SKIP, HIDC)
    s = _gru_ref(s_seq, p["grus_wih"], p["grus_whh"],
                 p["grus_bih"], p["grus_bhh"]).reshape(B, SKIP * HIDS)
    rcat = jnp.concatenate([r, s], axis=1)
    res = _hp_dot(rcat, p["lin1_w"].T) + p["lin1_b"][None, :]
    zf = jnp.transpose(x[:, P - HW:, :], (0, 2, 1)).reshape(B * M, HW)
    hwy = (_hp_dot(zf, p["hw_w"].T) + p["hw_b"]).reshape(B, M)
    return jax.nn.sigmoid(res + hwy)


# ----------------------------- params -----------------------------------------
def init_params(key):
    ks = jax.random.split(key, 14)
    s = 0.2
    n = lambda k, shp: (s * jax.random.normal(k, shp, _F32))
    return {
        "conv_w":   n(ks[0], (HIDC, 1, CK, M)),
        "conv_b":   n(ks[1], (HIDC,)),
        "gru1_wih": n(ks[2], (3 * HIDR, HIDC)),
        "gru1_whh": n(ks[3], (3 * HIDR, HIDR)),
        "gru1_bih": n(ks[4], (3 * HIDR,)),
        "gru1_bhh": n(ks[5], (3 * HIDR,)),
        "grus_wih": n(ks[6], (3 * HIDS, HIDC)),
        "grus_whh": n(ks[7], (3 * HIDS, HIDS)),
        "grus_bih": n(ks[8], (3 * HIDS,)),
        "grus_bhh": n(ks[9], (3 * HIDS,)),
        "lin1_w":   n(ks[10], (M, HIDR + SKIP * HIDS)),
        "lin1_b":   n(ks[11], (M,)),
        "hw_w":     n(ks[12], (1, HW)),
        "hw_b":     n(ks[13], (1,)),
    }


# ----------------------------- main --------------------------------------------
if __name__ == "__main__":
    key = jax.random.PRNGKey(0)
    kx, kp = jax.random.split(key)
    x = jax.random.normal(kx, (B, P, M), _F32)
    params = init_params(kp)
    wpack = jax.block_until_ready(pack_params(params))

    out = jax.block_until_ready(lstnet_forward(x, wpack))
    ref = jax.block_until_ready(reference_forward(x, params))

    assert out.shape == (B, M), out.shape
    max_err = float(jnp.max(jnp.abs(out - ref)))
    if max_err > 1e-4:
        raise SystemExit(f"MISMATCH: max abs err = {max_err}")
    print("KERNEL_OK")
</pallas_src>

<mosaic_0001>
module attributes {stable_mosaic.version = 11 : i64} {
  func.func @lstnet_kernel(%arg0: memref<128x8xf32, #tpu.memory_space<vmem>>, %arg1: memref<144x64xf32, #tpu.memory_space<vmem>>, %arg2: memref<8x8xf32, #tpu.memory_space<vmem>>) attributes {dimension_semantics = [], scalar_prefetch = 0 : i64, scratch_operands = 0 : i64, tpu.core_type = #tpu.core_type<tc>} {
    %c0 = arith.constant 0 : index
    %c0_0 = arith.constant 0 : index
    %0 = vector.load %arg0[%c0, %c0_0] : memref<128x8xf32, #tpu.memory_space<vmem>>, vector<128x8xf32>
    %1 = vector.extract_strided_slice %0 {offsets = [0, 0], sizes = [104, 8], strides = [1, 1]} : vector<128x8xf32> to vector<104x8xf32>
    %c0_1 = arith.constant 0 : index
    %c0_2 = arith.constant 0 : index
    %2 = vector.load %arg1[%c0_1, %c0_2] : memref<144x64xf32, #tpu.memory_space<vmem>>, vector<8x16xf32>
    %cst = arith.constant dense<0.000000e+00> : vector<104x16xf32>
    %3 = tpu.matmul %1, %2, %cst {dimension_numbers = #tpu.dot_dimension_numbers<[1], [0], [0], [1], [0, 0, 1, 1], [], []>} : vector<104x8xf32>, vector<8x16xf32>, vector<104x16xf32> -> vector<104x16xf32>
    %4 = vector.extract_strided_slice %0 {offsets = [8, 0], sizes = [104, 8], strides = [1, 1]} : vector<128x8xf32> to vector<104x8xf32>
    %c8 = arith.constant 8 : index
    %c0_3 = arith.constant 0 : index
    %5 = vector.load %arg1[%c8, %c0_3] : memref<144x64xf32, #tpu.memory_space<vmem>>, vector<8x16xf32>
    %cst_4 = arith.constant dense<0.000000e+00> : vector<104x16xf32>
    %6 = tpu.matmul %4, %5, %cst_4 {dimension_numbers = #tpu.dot_dimension_numbers<[1], [0], [0], [1], [0, 0, 1, 1], [], []>} : vector<104x8xf32>, vector<8x16xf32>, vector<104x16xf32> -> vector<104x16xf32>
    %7 = arith.addf %3, %6 : vector<104x16xf32>
    %8 = vector.extract_strided_slice %0 {offsets = [16, 0], sizes = [104, 8], strides = [1, 1]} : vector<128x8xf32> to vector<104x8xf32>
    %c16 = arith.constant 16 : index
    %c0_5 = arith.constant 0 : index
    %9 = vector.load %arg1[%c16, %c0_5] : memref<144x64xf32, #tpu.memory_space<vmem>>, vector<8x16xf32>
    %cst_6 = arith.constant dense<0.000000e+00> : vector<104x16xf32>
    %10 = tpu.matmul %8, %9, %cst_6 {dimension_numbers = #tpu.dot_dimension_numbers<[1], [0], [0], [1], [0, 0, 1, 1], [], []>} : vector<104x8xf32>, vector<8x16xf32>, vector<104x16xf32> -> vector<104x16xf32>
    %11 = arith.addf %7, %10 : vector<104x16xf32>
    %12 = vector.extract_strided_slice %0 {offsets = [24, 0], sizes = [104, 8], strides = [1, 1]} : vector<128x8xf32> to vector<104x8xf32>
    %c24 = arith.constant 24 : index
    %c0_7 = arith.constant 0 : index
    %13 = vector.load %arg1[%c24, %c0_7] : memref<144x64xf32, #tpu.memory_space<vmem>>, vector<8x16xf32>
    %cst_8 = arith.constant dense<0.000000e+00> : vector<104x16xf32>
    %14 = tpu.matmul %12, %13, %cst_8 {dimension_numbers = #tpu.dot_dimension_numbers<[1], [0], [0], [1], [0, 0, 1, 1], [], []>} : vector<104x8xf32>, vector<8x16xf32>, vector<104x16xf32> -> vector<104x16xf32>
    %15 = arith.addf %11, %14 : vector<104x16xf32>
    %c104 = arith.constant 104 : index
    %c0_9 = arith.constant 0 : index
    %16 = vector.load %arg1[%c104, %c0_9] : memref<144x64xf32, #tpu.memory_space<vmem>>, vector<1x16xf32>
    %17 = vector.broadcast %16 : vector<1x16xf32> to vector<104x16xf32>
    %18 = arith.addf %15, %17 : vector<104x16xf32>
    %cst_10 = arith.constant 0.000000e+00 : f32
    %19 = vector.broadcast %cst_10 : f32 to vector<104x16xf32>
    %20 = arith.maximumf %18, %19 : vector<104x16xf32>
    %c32 = arith.constant 32 : index
    %c0_11 = arith.constant 0 : index
    %21 = vector.load %arg1[%c32, %c0_11] : memref<144x64xf32, #tpu.memory_space<vmem>>, vector<16x60xf32>
    %cst_12 = arith.constant dense<0.000000e+00> : vector<104x60xf32>
    %22 = tpu.matmul %20, %21, %cst_12 {dimension_numbers = #tpu.dot_dimension_numbers<[1], [0], [0], [1], [0, 0, 1, 1], [], []>} : vector<104x16xf32>, vector<16x60xf32>, vector<104x60xf32> -> vector<104x60xf32>
    %c105 = arith.constant 105 : index
    %c0_13 = arith.constant 0 : index
    %23 = vector.load %arg1[%c105, %c0_13] : memref<144x64xf32, #tpu.memory_space<vmem>>, vector<1x60xf32>
    %24 = vector.broadcast %23 : vector<1x60xf32> to vector<104x60xf32>
    %25 = arith.addf %22, %24 : vector<104x60xf32>
    %c48 = arith.constant 48 : index
    %c0_14 = arith.constant 0 : index
    %26 = vector.load %arg1[%c48, %c0_14] : memref<144x64xf32, #tpu.memory_space<vmem>>, vector<16x48xf32>
    %c106 = arith.constant 106 : index
    %c0_15 = arith.constant 0 : index
    %27 = vector.load %arg1[%c106, %c0_15] : memref<144x64xf32, #tpu.memory_space<vmem>>, vector<1x16xf32>
    %cst_16 = arith.constant 0.000000e+00 : f32
    %28 = vector.broadcast %cst_16 : f32 to vector<8x16xf32>
    %29 = vector.extract_strided_slice %25 {offsets = [0, 0], sizes = [8, 48], strides = [1, 1]} : vector<104x60xf32> to vector<8x48xf32>
    %cst_17 = arith.constant dense<0.000000e+00> : vector<8x48xf32>
    %30 = tpu.matmul %28, %26, %cst_17 {dimension_numbers = #tpu.dot_dimension_numbers<[1], [0], [0], [1], [0, 0, 1, 1], [], []>} : vector<8x16xf32>, vector<16x48xf32>, vector<8x48xf32> -> vector<8x48xf32>
    %31 = vector.extract_strided_slice %29 {offsets = [0, 0], sizes = [8, 32], strides = [1, 1]} : vector<8x48xf32> to vector<8x32xf32>
    %32 = vector.extract_strided_slice %30 {offsets = [0, 0], sizes = [8, 32], strides = [1, 1]} : vector<8x48xf32> to vector<8x32xf32>
    %33 = arith.addf %31, %32 : vector<8x32xf32>
    %34 = arith.negf %33 : vector<8x32xf32>
    %35 = math.exp %34 : vector<8x32xf32>
    %cst_18 = arith.constant 1.000000e+00 : f32
    %36 = vector.broadcast %cst_18 : f32 to vector<8x32xf32>
    %37 = arith.addf %36, %35 : vector<8x32xf32>
    %38 = arith.divf %36, %37 : vector<8x32xf32>
    %39 = vector.extract_strided_slice %38 {offsets = [0, 0], sizes = [8, 16], strides = [1, 1]} : vector<8x32xf32> to vector<8x16xf32>
    %40 = vector.extract_strided_slice %38 {offsets = [0, 16], sizes = [8, 16], strides = [1, 1]} : vector<8x32xf32> to vector<8x16xf32>
    %41 = vector.extract_strided_slice %29 {offsets = [0, 32], sizes = [8, 16], strides = [1, 1]} : vector<8x48xf32> to vector<8x16xf32>
    %42 = vector.extract_strided_slice %30 {offsets = [0, 32], sizes = [8, 16], strides = [1, 1]} : vector<8x48xf32> to vector<8x16xf32>
    %43 = vector.broadcast %27 : vector<1x16xf32> to vector<8x16xf32>
    %44 = arith.addf %42, %43 : vector<8x16xf32>
    %45 = arith.mulf %39, %44 : vector<8x16xf32>
    %46 = arith.addf %41, %45 : vector<8x16xf32>
    %47 = math.tanh %46 : vector<8x16xf32>
    %cst_19 = arith.constant 1.000000e+00 : f32
    %48 = vector.broadcast %cst_19 : f32 to vector<8x16xf32>
    %49 = arith.subf %48, %40 : vector<8x16xf32>
    %50 = arith.mulf %49, %47 : vector<8x16xf32>
    %51 = arith.mulf %40, %28 : vector<8x16xf32>
    %52 = arith.addf %50, %51 : vector<8x16xf32>
    %53 = vector.extract_strided_slice %25 {offsets = [8, 0], sizes = [8, 48], strides = [1, 1]} : vector<104x60xf32> to vector<8x48xf32>
    %cst_20 = arith.constant dense<0.000000e+00> : vector<8x48xf32>
    %54 = tpu.matmul %52, %26, %cst_20 {dimension_numbers = #tpu.dot_dimension_numbers<[1], [0], [0], [1], [0, 0, 1, 1], [], []>} : vector<8x16xf32>, vector<16x48xf32>, vector<8x48xf32> -> vector<8x48xf32>
    %55 = vector.extract_strided_slice %53 {offsets = [0, 0], sizes = [8, 32], strides = [1, 1]} : vector<8x48xf32> to vector<8x32xf32>
    %56 = vector.extract_strided_slice %54 {offsets = [0, 0], sizes = [8, 32], strides = [1, 1]} : vector<8x48xf32> to vector<8x32xf32>
    %57 = arith.addf %55, %56 : vector<8x32xf32>
    %58 = arith.negf %57 : vector<8x32xf32>
    %59 = math.exp %58 : vector<8x32xf32>
    %cst_21 = arith.constant 1.000000e+00 : f32
    %60 = vector.broadcast %cst_21 : f32 to vector<8x32xf32>
    %61 = arith.addf %60, %59 : vector<8x32xf32>
    %62 = arith.divf %60, %61 : vector<8x32xf32>
    %63 = vector.extract_strided_slice %62 {offsets = [0, 0], sizes = [8, 16], strides = [1, 1]} : vector<8x32xf32> to vector<8x16xf32>
    %64 = vector.extract_strided_slice %62 {offsets = [0, 16], sizes = [8, 16], strides = [1, 1]} : vector<8x32xf32> to vector<8x16xf32>
    %65 = vector.extract_strided_slice %53 {offsets = [0, 32], sizes = [8, 16], strides = [1, 1]} : vector<8x48xf32> to vector<8x16xf32>
    %66 = vector.extract_strided_slice %54 {offsets = [0, 32], sizes = [8, 16], strides = [1, 1]} : vector<8x48xf32> to vector<8x16xf32>
    %67 = vector.broadcast %27 : vector<1x16xf32> to vector<8x16xf32>
    %68 = arith.addf %66, %67 : vector<8x16xf32>
    %69 = arith.mulf %63, %68 : vector<8x16xf32>
    %70 = arith.addf %65, %69 : vector<8x16xf32>
    %71 = math.tanh %70 : vector<8x16xf32>
    %cst_22 = arith.constant 1.000000e+00 : f32
    %72 = vector.broadcast %cst_22 : f32 to vector<8x16xf32>
    %73 = arith.subf %72, %64 : vector<8x16xf32>
    %74 = arith.mulf %73, %71 : vector<8x16xf32>
    %75 = arith.mulf %64, %52 : vector<8x16xf32>
    %76 = arith.addf %74, %75 : vector<8x16xf32>
    %77 = vector.extract_strided_slice %25 {offsets = [16, 0], sizes = [8, 48], strides = [1, 1]} : vector<104x60xf32> to vector<8x48xf32>
    %cst_23 = arith.constant dense<0.000000e+00> : vector<8x48xf32>
    %78 = tpu.matmul %76, %26, %cst_23 {dimension_numbers = #tpu.dot_dimension_numbers<[1], [0], [0], [1], [0, 0, 1, 1], [], []>} : vector<8x16xf32>, vector<16x48xf32>, vector<8x48xf32> -> vector<8x48xf32>
    %79 = vector.extract_strided_slice %77 {offsets = [0, 0], sizes = [8, 32], strides = [1, 1]} : vector<8x48xf32> to vector<8x32xf32>
    %80 = vector.extract_strided_slice %78 {offsets = [0, 0], sizes = [8, 32], strides = [1, 1]} : vector<8x48xf32> to vector<8x32xf32>
    %81 = arith.addf %79, %80 : vector<8x32xf32>
    %82 = arith.negf %81 : vector<8x32xf32>
    %83 = math.exp %82 : vector<8x32xf32>
    %cst_24 = arith.constant 1.000000e+00 : f32
    %84 = vector.broadcast %cst_24 : f32 to vector<8x32xf32>
    %85 = arith.addf %84, %83 : vector<8x32xf32>
    %86 = arith.divf %84, %85 : vector<8x32xf32>
    %87 = vector.extract_strided_slice %86 {offsets = [0, 0], sizes = [8, 16], strides = [1, 1]} : vector<8x32xf32> to vector<8x16xf32>
    %88 = vector.extract_strided_slice %86 {offsets = [0, 16], sizes = [8, 16], strides = [1, 1]} : vector<8x32xf32> to vector<8x16xf32>
    %89 = vector.extract_strided_slice %77 {offsets = [0, 32], sizes = [8, 16], strides = [1, 1]} : vector<8x48xf32> to vector<8x16xf32>
    %90 = vector.extract_strided_slice %78 {offsets = [0, 32], sizes = [8, 16], strides = [1, 1]} : vector<8x48xf32> to vector<8x16xf32>
    %91 = vector.broadcast %27 : vector<1x16xf32> to vector<8x16xf32>
    %92 = arith.addf %90, %91 : vector<8x16xf32>
    %93 = arith.mulf %87, %92 : vector<8x16xf32>
    %94 = arith.addf %89, %93 : vector<8x16xf32>
    %95 = math.tanh %94 : vector<8x16xf32>
    %cst_25 = arith.constant 1.000000e+00 : f32
    %96 = vector.broadcast %cst_25 : f32 to vector<8x16xf32>
    %97 = arith.subf %96, %88 : vector<8x16xf32>
    %98 = arith.mulf %97, %95 : vector<8x16xf32>
    %99 = arith.mulf %88, %76 : vector<8x16xf32>
    %100 = arith.addf %98, %99 : vector<8x16xf32>
    %101 = vector.extract_strided_slice %25 {offsets = [24, 0], sizes = [8, 48], strides = [1, 1]} : vector<104x60xf32> to vector<8x48xf32>
    %cst_26 = arith.constant dense<0.000000e+00> : vector<8x48xf32>
    %102 = tpu.matmul %100, %26, %cst_26 {dimension_numbers = #tpu.dot_dimension_numbers<[1], [0], [0], [1], [0, 0, 1, 1], [], []>} : vector<8x16xf32>, vector<16x48xf32>, vector<8x48xf32> -> vector<8x48xf32>
    %103 = vector.extract_strided_slice %101 {offsets = [0, 0], sizes = [8, 32], strides = [1, 1]} : vector<8x48xf32> to vector<8x32xf32>
    %104 = vector.extract_strided_slice %102 {offsets = [0, 0], sizes = [8, 32], strides = [1, 1]} : vector<8x48xf32> to vector<8x32xf32>
    %105 = arith.addf %103, %104 : vector<8x32xf32>
    %106 = arith.negf %105 : vector<8x32xf32>
    %107 = math.exp %106 : vector<8x32xf32>
    %cst_27 = arith.constant 1.000000e+00 : f32
    %108 = vector.broadcast %cst_27 : f32 to vector<8x32xf32>
    %109 = arith.addf %108, %107 : vector<8x32xf32>
    %110 = arith.divf %108, %109 : vector<8x32xf32>
    %111 = vector.extract_strided_slice %110 {offsets = [0, 0], sizes = [8, 16], strides = [1, 1]} : vector<8x32xf32> to vector<8x16xf32>
    %112 = vector.extract_strided_slice %110 {offsets = [0, 16], sizes = [8, 16], strides = [1, 1]} : vector<8x32xf32> to vector<8x16xf32>
    %113 = vector.extract_strided_slice %101 {offsets = [0, 32], sizes = [8, 16], strides = [1, 1]} : vector<8x48xf32> to vector<8x16xf32>
    %114 = vector.extract_strided_slice %102 {offsets = [0, 32], sizes = [8, 16], strides = [1, 1]} : vector<8x48xf32> to vector<8x16xf32>
    %115 = vector.broadcast %27 : vector<1x16xf32> to vector<8x16xf32>
    %116 = arith.addf %114, %115 : vector<8x16xf32>
    %117 = arith.mulf %111, %116 : vector<8x16xf32>
    %118 = arith.addf %113, %117 : vector<8x16xf32>
    %119 = math.tanh %118 : vector<8x16xf32>
    %cst_28 = arith.constant 1.000000e+00 : f32
    %120 = vector.broadcast %cst_28 : f32 to vector<8x16xf32>
    %121 = arith.subf %120, %112 : vector<8x16xf32>
    %122 = arith.mulf %121, %119 : vector<8x16xf32>
    %123 = arith.mulf %112, %100 : vector<8x16xf32>
    %124 = arith.addf %122, %123 : vector<8x16xf32>
    %125 = vector.extract_strided_slice %25 {offsets = [32, 0], sizes = [8, 48], strides = [1, 1]} : vector<104x60xf32> to vector<8x48xf32>
    %cst_29 = arith.constant dense<0.000000e+00> : vector<8x48xf32>
    %126 = tpu.matmul %124, %26, %cst_29 {dimension_numbers = #tpu.dot_dimension_numbers<[1], [0], [0], [1], [0, 0, 1, 1], [], []>} : vector<8x16xf32>, vector<16x48xf32>, vector<8x48xf32> -> vector<8x48xf32>
    %127 = vector.extract_strided_slice %125 {offsets = [0, 0], sizes = [8, 32], strides = [1, 1]} : vector<8x48xf32> to vector<8x32xf32>
    %128 = vector.extract_strided_slice %126 {offsets = [0, 0], sizes = [8, 32], strides = [1, 1]} : vector<8x48xf32> to vector<8x32xf32>
    %129 = arith.addf %127, %128 : vector<8x32xf32>
    %130 = arith.negf %129 : vector<8x32xf32>
    %131 = math.exp %130 : vector<8x32xf32>
    %cst_30 = arith.constant 1.000000e+00 : f32
    %132 = vector.broadcast %cst_30 : f32 to vector<8x32xf32>
    %133 = arith.addf %132, %131 : vector<8x32xf32>
    %134 = arith.divf %132, %133 : vector<8x32xf32>
    %135 = vector.extract_strided_slice %134 {offsets = [0, 0], sizes = [8, 16], strides = [1, 1]} : vector<8x32xf32> to vector<8x16xf32>
    %136 = vector.extract_strided_slice %134 {offsets = [0, 16], sizes = [8, 16], strides = [1, 1]} : vector<8x32xf32> to vector<8x16xf32>
    %137 = vector.extract_strided_slice %125 {offsets = [0, 32], sizes = [8, 16], strides = [1, 1]} : vector<8x48xf32> to vector<8x16xf32>
    %138 = vector.extract_strided_slice %126 {offsets = [0, 32], sizes = [8, 16], strides = [1, 1]} : vector<8x48xf32> to vector<8x16xf32>
    %139 = vector.broadcast %27 : vector<1x16xf32> to vector<8x16xf32>
    %140 = arith.addf %138, %139 : vector<8x16xf32>
    %141 = arith.mulf %135, %140 : vector<8x16xf32>
    %142 = arith.addf %137, %141 : vector<8x16xf32>
    %143 = math.tanh %142 : vector<8x16xf32>
    %cst_31 = arith.constant 1.000000e+00 : f32
    %144 = vector.broadcast %cst_31 : f32 to vector<8x16xf32>
    %145 = arith.subf %144, %136 : vector<8x16xf32>
    %146 = arith.mulf %145, %143 : vector<8x16xf32>
    %147 = arith.mulf %136, %124 : vector<8x16xf32>
    %148 = arith.addf %146, %147 : vector<8x16xf32>
    %149 = vector.extract_strided_slice %25 {offsets = [40, 0], sizes = [8, 48], strides = [1, 1]} : vector<104x60xf32> to vector<8x48xf32>
    %cst_32 = arith.constant dense<0.000000e+00> : vector<8x48xf32>
    %150 = tpu.matmul %148, %26, %cst_32 {dimension_numbers = #tpu.dot_dimension_numbers<[1], [0], [0], [1], [0, 0, 1, 1], [], []>} : vector<8x16xf32>, vector<16x48xf32>, vector<8x48xf32> -> vector<8x48xf32>
    %151 = vector.extract_strided_slice %149 {offsets = [0, 0], sizes = [8, 32], strides = [1, 1]} : vector<8x48xf32> to vector<8x32xf32>
    %152 = vector.extract_strided_slice %150 {offsets = [0, 0], sizes = [8, 32], strides = [1, 1]} : vector<8x48xf32> to vector<8x32xf32>
    %153 = arith.addf %151, %152 : vector<8x32xf32>
    %154 = arith.negf %153 : vector<8x32xf32>
    %155 = math.exp %154 : vector<8x32xf32>
    %cst_33 = arith.constant 1.000000e+00 : f32
    %156 = vector.broadcast %cst_33 : f32 to vector<8x32xf32>
    %157 = arith.addf %156, %155 : vector<8x32xf32>
    %158 = arith.divf %156, %157 : vector<8x32xf32>
    %159 = vector.extract_strided_slice %158 {offsets = [0, 0], sizes = [8, 16], strides = [1, 1]} : vector<8x32xf32> to vector<8x16xf32>
    %160 = vector.extract_strided_slice %158 {offsets = [0, 16], sizes = [8, 16], strides = [1, 1]} : vector<8x32xf32> to vector<8x16xf32>
    %161 = vector.extract_strided_slice %149 {offsets = [0, 32], sizes = [8, 16], strides = [1, 1]} : vector<8x48xf32> to vector<8x16xf32>
    %162 = vector.extract_strided_slice %150 {offsets = [0, 32], sizes = [8, 16], strides = [1, 1]} : vector<8x48xf32> to vector<8x16xf32>
    %163 = vector.broadcast %27 : vector<1x16xf32> to vector<8x16xf32>
    %164 = arith.addf %162, %163 : vector<8x16xf32>
    %165 = arith.mulf %159, %164 : vector<8x16xf32>
    %166 = arith.addf %161, %165 : vector<8x16xf32>
    %167 = math.tanh %166 : vector<8x16xf32>
    %cst_34 = arith.constant 1.000000e+00 : f32
    %168 = vector.broadcast %cst_34 : f32 to vector<8x16xf32>
    %169 = arith.subf %168, %160 : vector<8x16xf32>
    %170 = arith.mulf %169, %167 : vector<8x16xf32>
    %171 = arith.mulf %160, %148 : vector<8x16xf32>
    %172 = arith.addf %170, %171 : vector<8x16xf32>
    %173 = vector.extract_strided_slice %25 {offsets = [48, 0], sizes = [8, 48], strides = [1, 1]} : vector<104x60xf32> to vector<8x48xf32>
    %cst_35 = arith.constant dense<0.000000e+00> : vector<8x48xf32>
    %174 = tpu.matmul %172, %26, %cst_35 {dimension_numbers = #tpu.dot_dimension_numbers<[1], [0], [0], [1], [0, 0, 1, 1], [], []>} : vector<8x16xf32>, vector<16x48xf32>, vector<8x48xf32> -> vector<8x48xf32>
    %175 = vector.extract_strided_slice %173 {offsets = [0, 0], sizes = [8, 32], strides = [1, 1]} : vector<8x48xf32> to vector<8x32xf32>
    %176 = vector.extract_strided_slice %174 {offsets = [0, 0], sizes = [8, 32], strides = [1, 1]} : vector<8x48xf32> to vector<8x32xf32>
    %177 = arith.addf %175, %176 : vector<8x32xf32>
    %178 = arith.negf %177 : vector<8x32xf32>
    %179 = math.exp %178 : vector<8x32xf32>
    %cst_36 = arith.constant 1.000000e+00 : f32
    %180 = vector.broadcast %cst_36 : f32 to vector<8x32xf32>
    %181 = arith.addf %180, %179 : vector<8x32xf32>
    %182 = arith.divf %180, %181 : vector<8x32xf32>
    %183 = vector.extract_strided_slice %182 {offsets = [0, 0], sizes = [8, 16], strides = [1, 1]} : vector<8x32xf32> to vector<8x16xf32>
    %184 = vector.extract_strided_slice %182 {offsets = [0, 16], sizes = [8, 16], strides = [1, 1]} : vector<8x32xf32> to vector<8x16xf32>
    %185 = vector.extract_strided_slice %173 {offsets = [0, 32], sizes = [8, 16], strides = [1, 1]} : vector<8x48xf32> to vector<8x16xf32>
    %186 = vector.extract_strided_slice %174 {offsets = [0, 32], sizes = [8, 16], strides = [1, 1]} : vector<8x48xf32> to vector<8x16xf32>
    %187 = vector.broadcast %27 : vector<1x16xf32> to vector<8x16xf32>
    %188 = arith.addf %186, %187 : vector<8x16xf32>
    %189 = arith.mulf %183, %188 : vector<8x16xf32>
    %190 = arith.addf %185, %189 : vector<8x16xf32>
    %191 = math.tanh %190 : vector<8x16xf32>
    %cst_37 = arith.constant 1.000000e+00 : f32
    %192 = vector.broadcast %cst_37 : f32 to vector<8x16xf32>
    %193 = arith.subf %192, %184 : vector<8x16xf32>
    %194 = arith.mulf %193, %191 : vector<8x16xf32>
    %195 = arith.mulf %184, %172 : vector<8x16xf32>
    %196 = arith.addf %194, %195 : vector<8x16xf32>
    %197 = vector.extract_strided_slice %25 {offsets = [56, 0], sizes = [8, 48], strides = [1, 1]} : vector<104x60xf32> to vector<8x48xf32>
    %cst_38 = arith.constant dense<0.000000e+00> : vector<8x48xf32>
    %198 = tpu.matmul %196, %26, %cst_38 {dimension_numbers = #tpu.dot_dimension_numbers<[1], [0], [0], [1], [0, 0, 1, 1], [], []>} : vector<8x16xf32>, vector<16x48xf32>, vector<8x48xf32> -> vector<8x48xf32>
    %199 = vector.extract_strided_slice %197 {offsets = [0, 0], sizes = [8, 32], strides = [1, 1]} : vector<8x48xf32> to vector<8x32xf32>
    %200 = vector.extract_strided_slice %198 {offsets = [0, 0], sizes = [8, 32], strides = [1, 1]} : vector<8x48xf32> to vector<8x32xf32>
    %201 = arith.addf %199, %200 : vector<8x32xf32>
    %202 = arith.negf %201 : vector<8x32xf32>
    %203 = math.exp %202 : vector<8x32xf32>
    %cst_39 = arith.constant 1.000000e+00 : f32
    %204 = vector.broadcast %cst_39 : f32 to vector<8x32xf32>
    %205 = arith.addf %204, %203 : vector<8x32xf32>
    %206 = arith.divf %204, %205 : vector<8x32xf32>
    %207 = vector.extract_strided_slice %206 {offsets = [0, 0], sizes = [8, 16], strides = [1, 1]} : vector<8x32xf32> to vector<8x16xf32>
    %208 = vector.extract_strided_slice %206 {offsets = [0, 16], sizes = [8, 16], strides = [1, 1]} : vector<8x32xf32> to vector<8x16xf32>
    %209 = vector.extract_strided_slice %197 {offsets = [0, 32], sizes = [8, 16], strides = [1, 1]} : vector<8x48xf32> to vector<8x16xf32>
    %210 = vector.extract_strided_slice %198 {offsets = [0, 32], sizes = [8, 16], strides = [1, 1]} : vector<8x48xf32> to vector<8x16xf32>
    %211 = vector.broadcast %27 : vector<1x16xf32> to vector<8x16xf32>
    %212 = arith.addf %210, %211 : vector<8x16xf32>
    %213 = arith.mulf %207, %212 : vector<8x16xf32>
    %214 = arith.addf %209, %213 : vector<8x16xf32>
    %215 = math.tanh %214 : vector<8x16xf32>
    %cst_40 = arith.constant 1.000000e+00 : f32
    %216 = vector.broadcast %cst_40 : f32 to vector<8x16xf32>
    %217 = arith.subf %216, %208 : vector<8x16xf32>
    %218 = arith.mulf %217, %215 : vector<8x16xf32>
    %219 = arith.mulf %208, %196 : vector<8x16xf32>
    %220 = arith.addf %218, %219 : vector<8x16xf32>
    %221 = vector.extract_strided_slice %25 {offsets = [64, 0], sizes = [8, 48], strides = [1, 1]} : vector<104x60xf32> to vector<8x48xf32>
    %cst_41 = arith.constant dense<0.000000e+00> : vector<8x48xf32>
    %222 = tpu.matmul %220, %26, %cst_41 {dimension_numbers = #tpu.dot_dimension_numbers<[1], [0], [0], [1], [0, 0, 1, 1], [], []>} : vector<8x16xf32>, vector<16x48xf32>, vector<8x48xf32> -> vector<8x48xf32>
    %223 = vector.extract_strided_slice %221 {offsets = [0, 0], sizes = [8, 32], strides = [1, 1]} : vector<8x48xf32> to vector<8x32xf32>
    %224 = vector.extract_strided_slice %222 {offsets = [0, 0], sizes = [8, 32], strides = [1, 1]} : vector<8x48xf32> to vector<8x32xf32>
    %225 = arith.addf %223, %224 : vector<8x32xf32>
    %226 = arith.negf %225 : vector<8x32xf32>
    %227 = math.exp %226 : vector<8x32xf32>
    %cst_42 = arith.constant 1.000000e+00 : f32
    %228 = vector.broadcast %cst_42 : f32 to vector<8x32xf32>
    %229 = arith.addf %228, %227 : vector<8x32xf32>
    %230 = arith.divf %228, %229 : vector<8x32xf32>
    %231 = vector.extract_strided_slice %230 {offsets = [0, 0], sizes = [8, 16], strides = [1, 1]} : vector<8x32xf32> to vector<8x16xf32>
    %232 = vector.extract_strided_slice %230 {offsets = [0, 16], sizes = [8, 16], strides = [1, 1]} : vector<8x32xf32> to vector<8x16xf32>
    %233 = vector.extract_strided_slice %221 {offsets = [0, 32], sizes = [8, 16], strides = [1, 1]} : vector<8x48xf32> to vector<8x16xf32>
    %234 = vector.extract_strided_slice %222 {offsets = [0, 32], sizes = [8, 16], strides = [1, 1]} : vector<8x48xf32> to vector<8x16xf32>
    %235 = vector.broadcast %27 : vector<1x16xf32> to vector<8x16xf32>
    %236 = arith.addf %234, %235 : vector<8x16xf32>
    %237 = arith.mulf %231, %236 : vector<8x16xf32>
    %238 = arith.addf %233, %237 : vector<8x16xf32>
    %239 = math.tanh %238 : vector<8x16xf32>
    %cst_43 = arith.constant 1.000000e+00 : f32
    %240 = vector.broadcast %cst_43 : f32 to vector<8x16xf32>
    %241 = arith.subf %240, %232 : vector<8x16xf32>
    %242 = arith.mulf %241, %239 : vector<8x16xf32>
    %243 = arith.mulf %232, %220 : vector<8x16xf32>
    %244 = arith.addf %242, %243 : vector<8x16xf32>
    %245 = vector.extract_strided_slice %25 {offsets = [72, 0], sizes = [8, 48], strides = [1, 1]} : vector<104x60xf32> to vector<8x48xf32>
    %cst_44 = arith.constant dense<0.000000e+00> : vector<8x48xf32>
    %246 = tpu.matmul %244, %26, %cst_44 {dimension_numbers = #tpu.dot_dimension_numbers<[1], [0], [0], [1], [0, 0, 1, 1], [], []>} : vector<8x16xf32>, vector<16x48xf32>, vector<8x48xf32> -> vector<8x48xf32>
    %247 = vector.extract_strided_slice %245 {offsets = [0, 0], sizes = [8, 32], strides = [1, 1]} : vector<8x48xf32> to vector<8x32xf32>
    %248 = vector.extract_strided_slice %246 {offsets = [0, 0], sizes = [8, 32], strides = [1, 1]} : vector<8x48xf32> to vector<8x32xf32>
    %249 = arith.addf %247, %248 : vector<8x32xf32>
    %250 = arith.negf %249 : vector<8x32xf32>
    %251 = math.exp %250 : vector<8x32xf32>
    %cst_45 = arith.constant 1.000000e+00 : f32
    %252 = vector.broadcast %cst_45 : f32 to vector<8x32xf32>
    %253 = arith.addf %252, %251 : vector<8x32xf32>
    %254 = arith.divf %252, %253 : vector<8x32xf32>
    %255 = vector.extract_strided_slice %254 {offsets = [0, 0], sizes = [8, 16], strides = [1, 1]} : vector<8x32xf32> to vector<8x16xf32>
    %256 = vector.extract_strided_slice %254 {offsets = [0, 16], sizes = [8, 16], strides = [1, 1]} : vector<8x32xf32> to vector<8x16xf32>
    %257 = vector.extract_strided_slice %245 {offsets = [0, 32], sizes = [8, 16], strides = [1, 1]} : vector<8x48xf32> to vector<8x16xf32>
    %258 = vector.extract_strided_slice %246 {offsets = [0, 32], sizes = [8, 16], strides = [1, 1]} : vector<8x48xf32> to vector<8x16xf32>
    %259 = vector.broadcast %27 : vector<1x16xf32> to vector<8x16xf32>
    %260 = arith.addf %258, %259 : vector<8x16xf32>
    %261 = arith.mulf %255, %260 : vector<8x16xf32>
    %262 = arith.addf %257, %261 : vector<8x16xf32>
    %263 = math.tanh %262 : vector<8x16xf32>
    %cst_46 = arith.constant 1.000000e+00 : f32
    %264 = vector.broadcast %cst_46 : f32 to vector<8x16xf32>
    %265 = arith.subf %264, %256 : vector<8x16xf32>
    %266 = arith.mulf %265, %263 : vector<8x16xf32>
    %267 = arith.mulf %256, %244 : vector<8x16xf32>
    %268 = arith.addf %266, %267 : vector<8x16xf32>
    %269 = vector.extract_strided_slice %25 {offsets = [80, 0], sizes = [8, 48], strides = [1, 1]} : vector<104x60xf32> to vector<8x48xf32>
    %cst_47 = arith.constant dense<0.000000e+00> : vector<8x48xf32>
    %270 = tpu.matmul %268, %26, %cst_47 {dimension_numbers = #tpu.dot_dimension_numbers<[1], [0], [0], [1], [0, 0, 1, 1], [], []>} : vector<8x16xf32>, vector<16x48xf32>, vector<8x48xf32> -> vector<8x48xf32>
    %271 = vector.extract_strided_slice %269 {offsets = [0, 0], sizes = [8, 32], strides = [1, 1]} : vector<8x48xf32> to vector<8x32xf32>
    %272 = vector.extract_strided_slice %270 {offsets = [0, 0], sizes = [8, 32], strides = [1, 1]} : vector<8x48xf32> to vector<8x32xf32>
    %273 = arith.addf %271, %272 : vector<8x32xf32>
    %274 = arith.negf %273 : vector<8x32xf32>
    %275 = math.exp %274 : vector<8x32xf32>
    %cst_48 = arith.constant 1.000000e+00 : f32
    %276 = vector.broadcast %cst_48 : f32 to vector<8x32xf32>
    %277 = arith.addf %276, %275 : vector<8x32xf32>
    %278 = arith.divf %276, %277 : vector<8x32xf32>
    %279 = vector.extract_strided_slice %278 {offsets = [0, 0], sizes = [8, 16], strides = [1, 1]} : vector<8x32xf32> to vector<8x16xf32>
    %280 = vector.extract_strided_slice %278 {offsets = [0, 16], sizes = [8, 16], strides = [1, 1]} : vector<8x32xf32> to vector<8x16xf32>
    %281 = vector.extract_strided_slice %269 {offsets = [0, 32], sizes = [8, 16], strides = [1, 1]} : vector<8x48xf32> to vector<8x16xf32>
    %282 = vector.extract_strided_slice %270 {offsets = [0, 32], sizes = [8, 16], strides = [1, 1]} : vector<8x48xf32> to vector<8x16xf32>
    %283 = vector.broadcast %27 : vector<1x16xf32> to vector<8x16xf32>
    %284 = arith.addf %282, %283 : vector<8x16xf32>
    %285 = arith.mulf %279, %284 : vector<8x16xf32>
    %286 = arith.addf %281, %285 : vector<8x16xf32>
    %287 = math.tanh %286 : vector<8x16xf32>
    %cst_49 = arith.constant 1.000000e+00 : f32
    %288 = vector.broadcast %cst_49 : f32 to vector<8x16xf32>
    %289 = arith.subf %288, %280 : vector<8x16xf32>
    %290 = arith.mulf %289, %287 : vector<8x16xf32>
    %291 = arith.mulf %280, %268 : vector<8x16xf32>
    %292 = arith.addf %290, %291 : vector<8x16xf32>
    %293 = vector.extract_strided_slice %25 {offsets = [88, 0], sizes = [8, 48], strides = [1, 1]} : vector<104x60xf32> to vector<8x48xf32>
    %cst_50 = arith.constant dense<0.000000e+00> : vector<8x48xf32>
    %294 = tpu.matmul %292, %26, %cst_50 {dimension_numbers = #tpu.dot_dimension_numbers<[1], [0], [0], [1], [0, 0, 1, 1], [], []>} : vector<8x16xf32>, vector<16x48xf32>, vector<8x48xf32> -> vector<8x48xf32>
    %295 = vector.extract_strided_slice %293 {offsets = [0, 0], sizes = [8, 32], strides = [1, 1]} : vector<8x48xf32> to vector<8x32xf32>
    %296 = vector.extract_strided_slice %294 {offsets = [0, 0], sizes = [8, 32], strides = [1, 1]} : vector<8x48xf32> to vector<8x32xf32>
    %297 = arith.addf %295, %296 : vector<8x32xf32>
    %298 = arith.negf %297 : vector<8x32xf32>
    %299 = math.exp %298 : vector<8x32xf32>
    %cst_51 = arith.constant 1.000000e+00 : f32
    %300 = vector.broadcast %cst_51 : f32 to vector<8x32xf32>
    %301 = arith.addf %300, %299 : vector<8x32xf32>
    %302 = arith.divf %300, %301 : vector<8x32xf32>
    %303 = vector.extract_strided_slice %302 {offsets = [0, 0], sizes = [8, 16], strides = [1, 1]} : vector<8x32xf32> to vector<8x16xf32>
    %304 = vector.extract_strided_slice %302 {offsets = [0, 16], sizes = [8, 16], strides = [1, 1]} : vector<8x32xf32> to vector<8x16xf32>
    %305 = vector.extract_strided_slice %293 {offsets = [0, 32], sizes = [8, 16], strides = [1, 1]} : vector<8x48xf32> to vector<8x16xf32>
    %306 = vector.extract_strided_slice %294 {offsets = [0, 32], sizes = [8, 16], strides = [1, 1]} : vector<8x48xf32> to vector<8x16xf32>
    %307 = vector.broadcast %27 : vector<1x16xf32> to vector<8x16xf32>
    %308 = arith.addf %306, %307 : vector<8x16xf32>
    %309 = arith.mulf %303, %308 : vector<8x16xf32>
    %310 = arith.addf %305, %309 : vector<8x16xf32>
    %311 = math.tanh %310 : vector<8x16xf32>
    %cst_52 = arith.constant 1.000000e+00 : f32
    %312 = vector.broadcast %cst_52 : f32 to vector<8x16xf32>
    %313 = arith.subf %312, %304 : vector<8x16xf32>
    %314 = arith.mulf %313, %311 : vector<8x16xf32>
    %315 = arith.mulf %304, %292 : vector<8x16xf32>
    %316 = arith.addf %314, %315 : vector<8x16xf32>
    %317 = vector.extract_strided_slice %25 {offsets = [96, 0], sizes = [8, 48], strides = [1, 1]} : vector<104x60xf32> to vector<8x48xf32>
    %cst_53 = arith.constant dense<0.000000e+00> : vector<8x48xf32>
    %318 = tpu.matmul %316, %26, %cst_53 {dimension_numbers = #tpu.dot_dimension_numbers<[1], [0], [0], [1], [0, 0, 1, 1], [], []>} : vector<8x16xf32>, vector<16x48xf32>, vector<8x48xf32> -> vector<8x48xf32>
    %319 = vector.extract_strided_slice %317 {offsets = [0, 0], sizes = [8, 32], strides = [1, 1]} : vector<8x48xf32> to vector<8x32xf32>
    %320 = vector.extract_strided_slice %318 {offsets = [0, 0], sizes = [8, 32], strides = [1, 1]} : vector<8x48xf32> to vector<8x32xf32>
    %321 = arith.addf %319, %320 : vector<8x32xf32>
    %322 = arith.negf %321 : vector<8x32xf32>
    %323 = math.exp %322 : vector<8x32xf32>
    %cst_54 = arith.constant 1.000000e+00 : f32
    %324 = vector.broadcast %cst_54 : f32 to vector<8x32xf32>
    %325 = arith.addf %324, %323 : vector<8x32xf32>
    %326 = arith.divf %324, %325 : vector<8x32xf32>
    %327 = vector.extract_strided_slice %326 {offsets = [0, 0], sizes = [8, 16], strides = [1, 1]} : vector<8x32xf32> to vector<8x16xf32>
    %328 = vector.extract_strided_slice %326 {offsets = [0, 16], sizes = [8, 16], strides = [1, 1]} : vector<8x32xf32> to vector<8x16xf32>
    %329 = vector.extract_strided_slice %317 {offsets = [0, 32], sizes = [8, 16], strides = [1, 1]} : vector<8x48xf32> to vector<8x16xf32>
    %330 = vector.extract_strided_slice %318 {offsets = [0, 32], sizes = [8, 16], strides = [1, 1]} : vector<8x48xf32> to vector<8x16xf32>
    %331 = vector.broadcast %27 : vector<1x16xf32> to vector<8x16xf32>
    %332 = arith.addf %330, %331 : vector<8x16xf32>
    %333 = arith.mulf %327, %332 : vector<8x16xf32>
    %334 = arith.addf %329, %333 : vector<8x16xf32>
    %335 = math.tanh %334 : vector<8x16xf32>
    %cst_55 = arith.constant 1.000000e+00 : f32
    %336 = vector.broadcast %cst_55 : f32 to vector<8x16xf32>
    %337 = arith.subf %336, %328 : vector<8x16xf32>
    %338 = arith.mulf %337, %335 : vector<8x16xf32>
    %339 = arith.mulf %328, %316 : vector<8x16xf32>
    %340 = arith.addf %338, %339 : vector<8x16xf32>
    %c64 = arith.constant 64 : index
    %c0_56 = arith.constant 0 : index
    %341 = vector.load %arg1[%c64, %c0_56] : memref<144x64xf32, #tpu.memory_space<vmem>>, vector<4x12xf32>
    %c107 = arith.constant 107 : index
    %c0_57 = arith.constant 0 : index
    %342 = vector.load %arg1[%c107, %c0_57] : memref<144x64xf32, #tpu.memory_space<vmem>>, vector<1x4xf32>
    %cst_58 = arith.constant 0.000000e+00 : f32
    %343 = vector.broadcast %cst_58 : f32 to vector<32x4xf32>
    %344 = vector.extract_strided_slice %25 {offsets = [8, 48], sizes = [32, 12], strides = [1, 1]} : vector<104x60xf32> to vector<32x12xf32>
    %cst_59 = arith.constant dense<0.000000e+00> : vector<32x12xf32>
    %345 = tpu.matmul %343, %341, %cst_59 {dimension_numbers = #tpu.dot_dimension_numbers<[1], [0], [0], [1], [0, 0, 1, 1], [], []>} : vector<32x4xf32>, vector<4x12xf32>, vector<32x12xf32> -> vector<32x12xf32>
    %346 = vector.extract_strided_slice %344 {offsets = [0, 0], sizes = [32, 8], strides = [1, 1]} : vector<32x12xf32> to vector<32x8xf32>
    %347 = vector.extract_strided_slice %345 {offsets = [0, 0], sizes = [32, 8], strides = [1, 1]} : vector<32x12xf32> to vector<32x8xf32>
    %348 = arith.addf %346, %347 : vector<32x8xf32>
    %349 = arith.negf %348 : vector<32x8xf32>
    %350 = math.exp %349 : vector<32x8xf32>
    %cst_60 = arith.constant 1.000000e+00 : f32
    %351 = vector.broadcast %cst_60 : f32 to vector<32x8xf32>
    %352 = arith.addf %351, %350 : vector<32x8xf32>
    %353 = arith.divf %351, %352 : vector<32x8xf32>
    %354 = vector.extract_strided_slice %353 {offsets = [0, 0], sizes = [32, 4], strides = [1, 1]} : vector<32x8xf32> to vector<32x4xf32>
    %355 = vector.extract_strided_slice %353 {offsets = [0, 4], sizes = [32, 4], strides = [1, 1]} : vector<32x8xf32> to vector<32x4xf32>
    %356 = vector.extract_strided_slice %344 {offsets = [0, 8], sizes = [32, 4], strides = [1, 1]} : vector<32x12xf32> to vector<32x4xf32>
    %357 = vector.extract_strided_slice %345 {offsets = [0, 8], sizes = [32, 4], strides = [1, 1]} : vector<32x12xf32> to vector<32x4xf32>
    %358 = vector.broadcast %342 : vector<1x4xf32> to vector<32x4xf32>
    %359 = arith.addf %357, %358 : vector<32x4xf32>
    %360 = arith.mulf %354, %359 : vector<32x4xf32>
    %361 = arith.addf %356, %360 : vector<32x4xf32>
    %362 = math.tanh %361 : vector<32x4xf32>
    %cst_61 = arith.constant 1.000000e+00 : f32
    %363 = vector.broadcast %cst_61 : f32 to vector<32x4xf32>
    %364 = arith.subf %363, %355 : vector<32x4xf32>
    %365 = arith.mulf %364, %362 : vector<32x4xf32>
    %366 = arith.mulf %355, %343 : vector<32x4xf32>
    %367 = arith.addf %365, %366 : vector<32x4xf32>
    %368 = vector.extract_strided_slice %25 {offsets = [40, 48], sizes = [32, 12], strides = [1, 1]} : vector<104x60xf32> to vector<32x12xf32>
    %cst_62 = arith.constant dense<0.000000e+00> : vector<32x12xf32>
    %369 = tpu.matmul %367, %341, %cst_62 {dimension_numbers = #tpu.dot_dimension_numbers<[1], [0], [0], [1], [0, 0, 1, 1], [], []>} : vector<32x4xf32>, vector<4x12xf32>, vector<32x12xf32> -> vector<32x12xf32>
    %370 = vector.extract_strided_slice %368 {offsets = [0, 0], sizes = [32, 8], strides = [1, 1]} : vector<32x12xf32> to vector<32x8xf32>
    %371 = vector.extract_strided_slice %369 {offsets = [0, 0], sizes = [32, 8], strides = [1, 1]} : vector<32x12xf32> to vector<32x8xf32>
    %372 = arith.addf %370, %371 : vector<32x8xf32>
    %373 = arith.negf %372 : vector<32x8xf32>
    %374 = math.exp %373 : vector<32x8xf32>
    %cst_63 = arith.constant 1.000000e+00 : f32
    %375 = vector.broadcast %cst_63 : f32 to vector<32x8xf32>
    %376 = arith.addf %375, %374 : vector<32x8xf32>
    %377 = arith.divf %375, %376 : vector<32x8xf32>
    %378 = vector.extract_strided_slice %377 {offsets = [0, 0], sizes = [32, 4], strides = [1, 1]} : vector<32x8xf32> to vector<32x4xf32>
    %379 = vector.extract_strided_slice %377 {offsets = [0, 4], sizes = [32, 4], strides = [1, 1]} : vector<32x8xf32> to vector<32x4xf32>
    %380 = vector.extract_strided_slice %368 {offsets = [0, 8], sizes = [32, 4], strides = [1, 1]} : vector<32x12xf32> to vector<32x4xf32>
    %381 = vector.extract_strided_slice %369 {offsets = [0, 8], sizes = [32, 4], strides = [1, 1]} : vector<32x12xf32> to vector<32x4xf32>
    %382 = vector.broadcast %342 : vector<1x4xf32> to vector<32x4xf32>
    %383 = arith.addf %381, %382 : vector<32x4xf32>
    %384 = arith.mulf %378, %383 : vector<32x4xf32>
    %385 = arith.addf %380, %384 : vector<32x4xf32>
    %386 = math.tanh %385 : vector<32x4xf32>
    %cst_64 = arith.constant 1.000000e+00 : f32
    %387 = vector.broadcast %cst_64 : f32 to vector<32x4xf32>
    %388 = arith.subf %387, %379 : vector<32x4xf32>
    %389 = arith.mulf %388, %386 : vector<32x4xf32>
    %390 = arith.mulf %379, %367 : vector<32x4xf32>
    %391 = arith.addf %389, %390 : vector<32x4xf32>
    %392 = vector.extract_strided_slice %25 {offsets = [72, 48], sizes = [32, 12], strides = [1, 1]} : vector<104x60xf32> to vector<32x12xf32>
    %cst_65 = arith.constant dense<0.000000e+00> : vector<32x12xf32>
    %393 = tpu.matmul %391, %341, %cst_65 {dimension_numbers = #tpu.dot_dimension_numbers<[1], [0], [0], [1], [0, 0, 1, 1], [], []>} : vector<32x4xf32>, vector<4x12xf32>, vector<32x12xf32> -> vector<32x12xf32>
    %394 = vector.extract_strided_slice %392 {offsets = [0, 0], sizes = [32, 8], strides = [1, 1]} : vector<32x12xf32> to vector<32x8xf32>
    %395 = vector.extract_strided_slice %393 {offsets = [0, 0], sizes = [32, 8], strides = [1, 1]} : vector<32x12xf32> to vector<32x8xf32>
    %396 = arith.addf %394, %395 : vector<32x8xf32>
    %397 = arith.negf %396 : vector<32x8xf32>
    %398 = math.exp %397 : vector<32x8xf32>
    %cst_66 = arith.constant 1.000000e+00 : f32
    %399 = vector.broadcast %cst_66 : f32 to vector<32x8xf32>
    %400 = arith.addf %399, %398 : vector<32x8xf32>
    %401 = arith.divf %399, %400 : vector<32x8xf32>
    %402 = vector.extract_strided_slice %401 {offsets = [0, 0], sizes = [32, 4], strides = [1, 1]} : vector<32x8xf32> to vector<32x4xf32>
    %403 = vector.extract_strided_slice %401 {offsets = [0, 4], sizes = [32, 4], strides = [1, 1]} : vector<32x8xf32> to vector<32x4xf32>
    %404 = vector.extract_strided_slice %392 {offsets = [0, 8], sizes = [32, 4], strides = [1, 1]} : vector<32x12xf32> to vector<32x4xf32>
    %405 = vector.extract_strided_slice %393 {offsets = [0, 8], sizes = [32, 4], strides = [1, 1]} : vector<32x12xf32> to vector<32x4xf32>
    %406 = vector.broadcast %342 : vector<1x4xf32> to vector<32x4xf32>
    %407 = arith.addf %405, %406 : vector<32x4xf32>
    %408 = arith.mulf %402, %407 : vector<32x4xf32>
    %409 = arith.addf %404, %408 : vector<32x4xf32>
    %410 = math.tanh %409 : vector<32x4xf32>
    %cst_67 = arith.constant 1.000000e+00 : f32
    %411 = vector.broadcast %cst_67 : f32 to vector<32x4xf32>
    %412 = arith.subf %411, %403 : vector<32x4xf32>
    %413 = arith.mulf %412, %410 : vector<32x4xf32>
    %414 = arith.mulf %403, %391 : vector<32x4xf32>
    %415 = arith.addf %413, %414 : vector<32x4xf32>
    %c72 = arith.constant 72 : index
    %c0_68 = arith.constant 0 : index
    %416 = vector.load %arg1[%c72, %c0_68] : memref<144x64xf32, #tpu.memory_space<vmem>>, vector<16x8xf32>
    %cst_69 = arith.constant dense<0.000000e+00> : vector<8x8xf32>
    %417 = tpu.matmul %340, %416, %cst_69 {dimension_numbers = #tpu.dot_dimension_numbers<[1], [0], [0], [1], [0, 0, 1, 1], [], []>} : vector<8x16xf32>, vector<16x8xf32>, vector<8x8xf32> -> vector<8x8xf32>
    %c108 = arith.constant 108 : index
    %c0_70 = arith.constant 0 : index
    %418 = vector.load %arg1[%c108, %c0_70] : memref<144x64xf32, #tpu.memory_space<vmem>>, vector<1x8xf32>
    %419 = vector.broadcast %418 : vector<1x8xf32> to vector<8x8xf32>
    %420 = arith.addf %417, %419 : vector<8x8xf32>
    %421 = vector.extract_strided_slice %415 {offsets = [0, 0], sizes = [8, 4], strides = [1, 1]} : vector<32x4xf32> to vector<8x4xf32>
    %c88 = arith.constant 88 : index
    %c0_71 = arith.constant 0 : index
    %422 = vector.load %arg1[%c88, %c0_71] : memref<144x64xf32, #tpu.memory_space<vmem>>, vector<4x8xf32>
    %cst_72 = arith.constant dense<0.000000e+00> : vector<8x8xf32>
    %423 = tpu.matmul %421, %422, %cst_72 {dimension_numbers = #tpu.dot_dimension_numbers<[1], [0], [0], [1], [0, 0, 1, 1], [], []>} : vector<8x4xf32>, vector<4x8xf32>, vector<8x8xf32> -> vector<8x8xf32>
    %424 = arith.addf %420, %423 : vector<8x8xf32>
    %425 = vector.extract_strided_slice %415 {offsets = [8, 0], sizes = [8, 4], strides = [1, 1]} : vector<32x4xf32> to vector<8x4xf32>
    %c92 = arith.constant 92 : index
    %c0_73 = arith.constant 0 : index
    %426 = vector.load %arg1[%c92, %c0_73] : memref<144x64xf32, #tpu.memory_space<vmem>>, vector<4x8xf32>
    %cst_74 = arith.constant dense<0.000000e+00> : vector<8x8xf32>
    %427 = tpu.matmul %425, %426, %cst_74 {dimension_numbers = #tpu.dot_dimension_numbers<[1], [0], [0], [1], [0, 0, 1, 1], [], []>} : vector<8x4xf32>, vector<4x8xf32>, vector<8x8xf32> -> vector<8x8xf32>
    %428 = arith.addf %424, %427 : vector<8x8xf32>
    %429 = vector.extract_strided_slice %415 {offsets = [16, 0], sizes = [8, 4], strides = [1, 1]} : vector<32x4xf32> to vector<8x4xf32>
    %c96 = arith.constant 96 : index
    %c0_75 = arith.constant 0 : index
    %430 = vector.load %arg1[%c96, %c0_75] : memref<144x64xf32, #tpu.memory_space<vmem>>, vector<4x8xf32>
    %cst_76 = arith.constant dense<0.000000e+00> : vector<8x8xf32>
    %431 = tpu.matmul %429, %430, %cst_76 {dimension_numbers = #tpu.dot_dimension_numbers<[1], [0], [0], [1], [0, 0, 1, 1], [], []>} : vector<8x4xf32>, vector<4x8xf32>, vector<8x8xf32> -> vector<8x8xf32>
    %432 = arith.addf %428, %431 : vector<8x8xf32>
    %433 = vector.extract_strided_slice %415 {offsets = [24, 0], sizes = [8, 4], strides = [1, 1]} : vector<32x4xf32> to vector<8x4xf32>
    %c100 = arith.constant 100 : index
    %c0_77 = arith.constant 0 : index
    %434 = vector.load %arg1[%c100, %c0_77] : memref<144x64xf32, #tpu.memory_space<vmem>>, vector<4x8xf32>
    %cst_78 = arith.constant dense<0.000000e+00> : vector<8x8xf32>
    %435 = tpu.matmul %433, %434, %cst_78 {dimension_numbers = #tpu.dot_dimension_numbers<[1], [0], [0], [1], [0, 0, 1, 1], [], []>} : vector<8x4xf32>, vector<4x8xf32>, vector<8x8xf32> -> vector<8x8xf32>
    %436 = arith.addf %432, %435 : vector<8x8xf32>
    %437 = vector.extract_strided_slice %0 {offsets = [96, 0], sizes = [32, 8], strides = [1, 1]} : vector<128x8xf32> to vector<32x8xf32>
    %c112 = arith.constant 112 : index
    %c0_79 = arith.constant 0 : index
    %438 = vector.load %arg1[%c112, %c0_79] : memref<144x64xf32, #tpu.memory_space<vmem>>, vector<32x1xf32>
    %439 = vector.broadcast %438 : vector<32x1xf32> to vector<32x8xf32>
    %440 = arith.mulf %437, %439 : vector<32x8xf32>
    %441 = vector.extract_strided_slice %440 {offsets = [0, 0], sizes = [8, 8], strides = [1, 1]} : vector<32x8xf32> to vector<8x8xf32>
    %442 = arith.addf %436, %441 : vector<8x8xf32>
    %443 = vector.extract_strided_slice %440 {offsets = [8, 0], sizes = [8, 8], strides = [1, 1]} : vector<32x8xf32> to vector<8x8xf32>
    %444 = arith.addf %442, %443 : vector<8x8xf32>
    %445 = vector.extract_strided_slice %440 {offsets = [16, 0], sizes = [8, 8], strides = [1, 1]} : vector<32x8xf32> to vector<8x8xf32>
    %446 = arith.addf %444, %445 : vector<8x8xf32>
    %447 = vector.extract_strided_slice %440 {offsets = [24, 0], sizes = [8, 8], strides = [1, 1]} : vector<32x8xf32> to vector<8x8xf32>
    %448 = arith.addf %446, %447 : vector<8x8xf32>
    %449 = arith.negf %448 : vector<8x8xf32>
    %450 = math.exp %449 : vector<8x8xf32>
    %cst_80 = arith.constant 1.000000e+00 : f32
    %451 = vector.broadcast %cst_80 : f32 to vector<8x8xf32>
    %452 = arith.addf %451, %450 : vector<8x8xf32>
    %453 = arith.divf %451, %452 : vector<8x8xf32>
    %c0_81 = arith.constant 0 : index
    %c0_82 = arith.constant 0 : index
    %454 = vector.load %arg2[%c0_81, %c0_82] : memref<8x8xf32, #tpu.memory_space<vmem>>, vector<8x8xf32>
    tpu.vector_store %arg2[%c0_81, %c0_82], %453 {strides = array<i32>} : memref<8x8xf32, #tpu.memory_space<vmem>>, vector<8x8xf32>,
    return
  }
}

</mosaic_0001>

<llo_original>
// kernel: lstnet_forward.1
$region0: #{lstnet_forward.1}
  #allocation0 [shape = 'u32[]', space=smem, size = 0x4, offset = 0x4, fixed_abs, tag = 'smem constant byte address 0x4 - core index']
  #allocation1 [shape = 'u32[144,128]{1,0:T(1,128)}', space=vmem, size = 0x12000, scoped, tag = 'internal scratch']
  %s0 = inlined_call_operand.vmem [shape: f32[128,8], index: 0, kind: input, shape index: {}]
  %s1 = inlined_call_operand.vmem [shape: f32[144,64], index: 1, kind: input, shape index: {}]
  %s2 = inlined_call_operand.hbm [shape: f32[8,8], index: 2, kind: output, shape index: {}]
  %s3 = sld [smem:[#allocation0]]
  $region18: #{lstnet_forward.1} parent=0
    _
  %s5 = ssub.s32 1, %s3
  %s6 = scalar_select 0, %s5, %s3
  $region1: #{lstnet_forward.1} parent=0
    #allocation2 [shape = 'u8[4096]{0}', space=vmem, size = 0x1000, scoped, tag = 'output window, operand 0, single buffered']
    #allocation3 [shape = 's32[1]{0}', space=sflag, size = 0x4, scoped, tag = 'scoped memory for lstnet_forward.1']
    %7 = vsyncpa [#allocation3], 0
    // Predicated region
    $region2: #{lstnet_forward.1} parent=1 // pred_check
      _
    $region3: #{lstnet_forward.1} parent=1 // pred_check_branch
      %9 = sbr.rel (0) target = $region5
    $region4: #{lstnet_forward.1} parent=1 // pred_region
      _
    $region5: #{lstnet_forward.1} parent=1 // pred_fallthru
      _
    // Predicated region
    $region6: #{lstnet_forward.1} parent=1 // pred_check
      _
    $region7: #{lstnet_forward.1} parent=1 // pred_check_branch
      %11 = sbr.rel (0) target = $region9
    $region8: #{lstnet_forward.1} parent=1 // pred_region
      _
    $region9: #{lstnet_forward.1} parent=1 // pred_fallthru
      _
    %v12 = vld [vmem:[%s0] sm:$0xff]
    %v13 = vld [vmem:[%s0 + $0x8] sm:$0xff]
    %v14 = vld [vmem:[%s0 + $0x10] sm:$0xff]
    %v15 = vld [vmem:[%s0 + $0x18] sm:$0xff]
    %v16 = vld [vmem:[%s0 + $0x20] sm:$0xff]
    %v17 = vld [vmem:[%s0 + $0x28] sm:$0xff]
    %v18 = vld [vmem:[%s0 + $0x30] sm:$0xff]
    %v19 = vld [vmem:[%s0 + $0x38] sm:$0xff]
    %v20 = vld [vmem:[%s0 + $0x40] sm:$0xff]
    %v21 = vld [vmem:[%s0 + $0x48] sm:$0xff]
    %v22 = vld [vmem:[%s0 + $0x50] sm:$0xff]
    %v23 = vld [vmem:[%s0 + $0x58] sm:$0xff]
    %v24 = vld [vmem:[%s0 + $0x60] sm:$0xff]
    %v25 = vld [vmem:[%s0 + $0x68] sm:$0xff]
    %v26 = vld [vmem:[%s0 + $0x70] sm:$0xff]
    %v27 = vld [vmem:[%s0 + $0x78] sm:$0xff]
    %v28 = vld [vmem:[%s1] sm:$0xff]
    %v29 = vld [vmem:[%s1 + $0x8] sm:$0xff]
    %vm30 = vcmask 64512
    %v32 = vsel %vm30, %v13, 0
    %v35 = vsel %vm30, %v14, 0
    %v38 = vsel %vm30, %v15, 0
    %v41 = vsel %vm30, %v16, 0
    %v44 = vsel %vm30, %v17, 0
    %v47 = vsel %vm30, %v18, 0
    %v50 = vsel %vm30, %v19, 0
    %v53 = vsel %vm30, %v20, 0
    %v56 = vsel %vm30, %v21, 0
    %v59 = vsel %vm30, %v22, 0
    %v62 = vsel %vm30, %v23, 0
    %v65 = vsel %vm30, %v24, 0
    %v68 = vsel %vm30, %v25, 0
    %70 = vmatprep.subr.mxu0 0.0
    %71 = vmatpush1.msra.mxu0 %v29
    %72 = vmatprep.subr.mxu0 0.0
    %73 = vmatpush1.msra.mxu0 0.0
    %74 = vmatprep.subr.mxu0 0.0
    %75 = vmatpush1.msra.mxu0 0.0
    %76 = vmatprep.subr.mxu0 0.0
    %77 = vmatpush1.msra.mxu0 0.0
    %78 = vmatprep.subr.mxu0 0.0
    %79 = vmatpush1.msra.mxu0 0.0
    %80 = vmatprep.subr.mxu0 0.0
    %81 = vmatpush1.msra.mxu0 0.0
    %82 = vmatprep.subr.mxu0 0.0
    %83 = vmatpush1.msra.mxu0 0.0
    %84 = vmatprep.subr.mxu0 0.0
    %85 = vmatpush1.msra.mxu0 0.0
    %86 = vmatprep.subr.mxu0 0.0
    %87 = vmatpush1.msra.mxu0 0.0
    %88 = vmatprep.subr.mxu0 0.0
    %89 = vmatpush1.msra.mxu0 0.0
    %90 = vmatprep.subr.mxu0 0.0
    %91 = vmatpush1.msra.mxu0 0.0
    %92 = vmatprep.subr.mxu0 0.0
    %93 = vmatpush1.msra.mxu0 0.0
    %94 = vmatprep.subr.mxu0 0.0
    %95 = vmatpush1.msra.mxu0 0.0
    %96 = vmatprep.subr.mxu0 0.0
    %97 = vmatpush1.msra.mxu0 0.0
    %98 = vmatprep.subr.mxu0 0.0
    %99 = vmatpush1.msra.mxu0 0.0
    %100 = vmatprep.subr.mxu0 0.0
    %101 = vmatpush1.msra.mxu0 0.0
    %102 = vmatprep.subr.mxu0 0.0
    %103 = vmatpush1.msra.mxu0 0.0
    %104 = vmatprep.subr.mxu0 0.0
    %105 = vmatpush1.msra.mxu0 0.0
    %106 = vmatprep.subr.mxu0 0.0
    %107 = vmatpush1.msra.mxu0 0.0
    %108 = vmatprep.subr.mxu0 0.0
    %109 = vmatpush1.msra.mxu0 0.0
    %110 = vmatprep.subr.mxu0 0.0
    %111 = vmatpush1.msra.mxu0 0.0
    %112 = vmatprep.subr.mxu0 0.0
    %113 = vmatpush1.msra.mxu0 0.0
    %114 = vmatprep.subr.mxu0 0.0
    %115 = vmatpush1.msra.mxu0 0.0
    %116 = vmatprep.subr.mxu0 0.0
    %117 = vmatpush1.msra.mxu0 0.0
    %118 = vmatprep.subr.mxu0 0.0
    %119 = vmatpush1.msra.mxu0 0.0
    %120 = vmatprep.subr.mxu0 0.0
    %121 = vmatpush1.msra.mxu0 0.0
    %122 = vmatprep.subr.mxu0 0.0
    %123 = vmatpush1.msra.mxu0 0.0
    %124 = vmatprep.subr.mxu0 0.0
    %125 = vmatpush1.msra.mxu0 0.0
    %126 = vmatprep.subr.mxu0 0.0
    %127 = vmatpush1.msra.mxu0 0.0
    %128 = vmatprep.subr.mxu0 0.0
    %129 = vmatpush1.msra.mxu0 0.0
    %130 = vmatprep.subr.mxu0 0.0
    %131 = vmatpush1.msra.mxu0 0.0
    %132 = vmatprep.subr.mxu0 0.0
    %133 = vmatpush1.msra.mxu0 0.0
    %134 = vmatprep.mubr.f32.mxu0 0.0
    %135 = vmatmul.mubr.f32.gmra.mrb[0].mxu0 %v32
    %v136 = vpop.f32.mrb[0].mxu0
    %v137 = vadd.f32 0.0, %v136
    %v138 = vpop.f32.mrb[0].mxu0
    %139 = vmatprep.mubr.f32.mxu0 0.0
    %140 = vmatmul.mubr.f32.gmra.mrb[0].mxu0 %v35
    %v141 = vpop.f32.mrb[0].mxu0
    %v142 = vadd.f32 0.0, %v141
    %v143 = vpop.f32.mrb[0].mxu0
    %144 = vmatprep.mubr.f32.mxu0 0.0
    %145 = vmatmul.mubr.f32.gmra.mrb[0].mxu0 %v38
    %v146 = vpop.f32.mrb[0].mxu0
    %v147 = vadd.f32 0.0, %v146
    %v148 = vpop.f32.mrb[0].mxu0
    %149 = vmatprep.mubr.f32.mxu0 0.0
    %150 = vmatmul.mubr.f32.gmra.mrb[0].mxu0 %v41
    %v151 = vpop.f32.mrb[0].mxu0
    %v152 = vadd.f32 0.0, %v151
    %v153 = vpop.f32.mrb[0].mxu0
    %154 = vmatprep.mubr.f32.mxu0 0.0
    %155 = vmatmul.mubr.f32.gmra.mrb[0].mxu0 %v44
    %v156 = vpop.f32.mrb[0].mxu0
    %v157 = vadd.f32 0.0, %v156
    %v158 = vpop.f32.mrb[0].mxu0
    %159 = vmatprep.mubr.f32.mxu0 0.0
    %160 = vmatmul.mubr.f32.gmra.mrb[0].mxu0 %v47
    %v161 = vpop.f32.mrb[0].mxu0
    %v162 = vadd.f32 0.0, %v161
    %v163 = vpop.f32.mrb[0].mxu0
    %164 = vmatprep.mubr.f32.mxu0 0.0
    %165 = vmatmul.mubr.f32.gmra.mrb[0].mxu0 %v50
    %v166 = vpop.f32.mrb[0].mxu0
    %v167 = vadd.f32 0.0, %v166
    %v168 = vpop.f32.mrb[0].mxu0
    %169 = vmatprep.mubr.f32.mxu0 0.0
    %170 = vmatmul.mubr.f32.gmra.mrb[0].mxu0 %v53
    %v171 = vpop.f32.mrb[0].mxu0
    %v172 = vadd.f32 0.0, %v171
    %v173 = vpop.f32.mrb[0].mxu0
    %174 = vmatprep.mubr.f32.mxu0 0.0
    %175 = vmatmul.mubr.f32.gmra.mrb[0].mxu0 %v56
    %v176 = vpop.f32.mrb[0].mxu0
    %v177 = vadd.f32 0.0, %v176
    %v178 = vpop.f32.mrb[0].mxu0
    %179 = vmatprep.mubr.f32.mxu0 0.0
    %180 = vmatmul.mubr.f32.gmra.mrb[0].mxu0 %v59
    %v181 = vpop.f32.mrb[0].mxu0
    %v182 = vadd.f32 0.0, %v181
    %v183 = vpop.f32.mrb[0].mxu0
    %184 = vmatprep.mubr.f32.mxu0 0.0
    %185 = vmatmul.mubr.f32.gmra.mrb[0].mxu0 %v62
    %v186 = vpop.f32.mrb[0].mxu0
    %v187 = vadd.f32 0.0, %v186
    %v188 = vpop.f32.mrb[0].mxu0
    %189 = vmatprep.mubr.f32.mxu0 0.0
    %190 = vmatmul.mubr.f32.gmra.mrb[0].mxu0 %v65
    %v191 = vpop.f32.mrb[0].mxu0
    %v192 = vadd.f32 0.0, %v191
    %v193 = vpop.f32.mrb[0].mxu0
    %194 = vmatprep.mubr.f32.mxu0 0.0
    %195 = vmatmul.mubr.f32.gmra.mrb[0].mxu0 %v68
    %v196 = vpop.f32.mrb[0].mxu0
    %v197 = vadd.f32 0.0, %v196
    %v198 = vpop.f32.mrb[0].mxu0
    %199 = vdwg.mxu0
    %v201 = vsel %vm30, %v12, 0
    %203 = vmatprep.subr.mxu0 0.0
    %204 = vmatpush1.msra.mxu0 %v28
    %205 = vmatprep.subr.mxu0 0.0
    %206 = vmatpush1.msra.mxu0 0.0
    %207 = vmatprep.subr.mxu0 0.0
    %208 = vmatpush1.msra.mxu0 0.0
    %209 = vmatprep.subr.mxu0 0.0
    %210 = vmatpush1.msra.mxu0 0.0
    %211 = vmatprep.subr.mxu0 0.0
    %212 = vmatpush1.msra.mxu0 0.0
    %213 = vmatprep.subr.mxu0 0.0
    %214 = vmatpush1.msra.mxu0 0.0
    %215 = vmatprep.subr.mxu0 0.0
    %216 = vmatpush1.msra.mxu0 0.0
    %217 = vmatprep.subr.mxu0 0.0
    %218 = vmatpush1.msra.mxu0 0.0
    %219 = vmatprep.subr.mxu0 0.0
    %220 = vmatpush1.msra.mxu0 0.0
    %221 = vmatprep.subr.mxu0 0.0
    %222 = vmatpush1.msra.mxu0 0.0
    %223 = vmatprep.subr.mxu0 0.0
    %224 = vmatpush1.msra.mxu0 0.0
    %225 = vmatprep.subr.mxu0 0.0
    %226 = vmatpush1.msra.mxu0 0.0
    %227 = vmatprep.subr.mxu0 0.0
    %228 = vmatpush1.msra.mxu0 0.0
    %229 = vmatprep.subr.mxu0 0.0
    %230 = vmatpush1.msra.mxu0 0.0
    %231 = vmatprep.subr.mxu0 0.0
    %232 = vmatpush1.msra.mxu0 0.0
    %233 = vmatprep.subr.mxu0 0.0
    %234 = vmatpush1.msra.mxu0 0.0
    %235 = vmatprep.subr.mxu0 0.0
    %236 = vmatpush1.msra.mxu0 0.0
    %237 = vmatprep.subr.mxu0 0.0
    %238 = vmatpush1.msra.mxu0 0.0
    %239 = vmatprep.subr.mxu0 0.0
    %240 = vmatpush1.msra.mxu0 0.0
    %241 = vmatprep.subr.mxu0 0.0
    %242 = vmatpush1.msra.mxu0 0.0
    %243 = vmatprep.subr.mxu0 0.0
    %244 = vmatpush1.msra.mxu0 0.0
    %245 = vmatprep.subr.mxu0 0.0
    %246 = vmatpush1.msra.mxu0 0.0
    %247 = vmatprep.subr.mxu0 0.0
    %248 = vmatpush1.msra.mxu0 0.0
    %249 = vmatprep.subr.mxu0 0.0
    %250 = vmatpush1.msra.mxu0 0.0
    %251 = vmatprep.subr.mxu0 0.0
    %252 = vmatpush1.msra.mxu0 0.0
    %253 = vmatprep.subr.mxu0 0.0
    %254 = vmatpush1.msra.mxu0 0.0
    %255 = vmatprep.subr.mxu0 0.0
    %256 = vmatpush1.msra.mxu0 0.0
    %257 = vmatprep.subr.mxu0 0.0
    %258 = vmatpush1.msra.mxu0 0.0
    %259 = vmatprep.subr.mxu0 0.0
    %260 = vmatpush1.msra.mxu0 0.0
    %261 = vmatprep.subr.mxu0 0.0
    %262 = vmatpush1.msra.mxu0 0.0
    %263 = vmatprep.subr.mxu0 0.0
    %264 = vmatpush1.msra.mxu0 0.0
    %265 = vmatprep.subr.mxu0 0.0
    %266 = vmatpush1.msra.mxu0 0.0
    %267 = vmatprep.mubr.f32.mxu0 0.0
    %268 = vmatmul.mubr.f32.gmra.mrb[0].mxu0 %v201
    %v269 = vpop.f32.mrb[0].mxu0
    %v270 = vadd.f32 %v137, %v269
    %v271 = vpop.f32.mrb[0].mxu0
    %272 = vmatprep.mubr.f32.mxu0 0.0
    %273 = vmatmul.mubr.f32.gmra.mrb[0].mxu0 %v32
    %v274 = vpop.f32.mrb[0].mxu0
    %v275 = vadd.f32 %v142, %v274
    %v276 = vpop.f32.mrb[0].mxu0
    %277 = vmatprep.mubr.f32.mxu0 0.0
    %278 = vmatmul.mubr.f32.gmra.mrb[0].mxu0 %v35
    %v279 = vpop.f32.mrb[0].mxu0
    %v280 = vadd.f32 %v147, %v279
    %v281 = vpop.f32.mrb[0].mxu0
    %282 = vmatprep.mubr.f32.mxu0 0.0
    %283 = vmatmul.mubr.f32.gmra.mrb[0].mxu0 %v38
    %v284 = vpop.f32.mrb[0].mxu0
    %v285 = vadd.f32 %v152, %v284
    %v286 = vpop.f32.mrb[0].mxu0
    %287 = vmatprep.mubr.f32.mxu0 0.0
    %288 = vmatmul.mubr.f32.gmra.mrb[0].mxu0 %v41
    %v289 = vpop.f32.mrb[0].mxu0
    %v290 = vadd.f32 %v157, %v289
    %v291 = vpop.f32.mrb[0].mxu0
    %292 = vmatprep.mubr.f32.mxu0 0.0
    %293 = vmatmul.mubr.f32.gmra.mrb[0].mxu0 %v44
    %v294 = vpop.f32.mrb[0].mxu0
    %v295 = vadd.f32 %v162, %v294
    %v296 = vpop.f32.mrb[0].mxu0
    %297 = vmatprep.mubr.f32.mxu0 0.0
    %298 = vmatmul.mubr.f32.gmra.mrb[0].mxu0 %v47
    %v299 = vpop.f32.mrb[0].mxu0
    %v300 = vadd.f32 %v167, %v299
    %v301 = vpop.f32.mrb[0].mxu0
    %302 = vmatprep.mubr.f32.mxu0 0.0
    %303 = vmatmul.mubr.f32.gmra.mrb[0].mxu0 %v50
    %v304 = vpop.f32.mrb[0].mxu0
    %v305 = vadd.f32 %v172, %v304
    %v306 = vpop.f32.mrb[0].mxu0
    %307 = vmatprep.mubr.f32.mxu0 0.0
    %308 = vmatmul.mubr.f32.gmra.mrb[0].mxu0 %v53
    %v309 = vpop.f32.mrb[0].mxu0
    %v310 = vadd.f32 %v177, %v309
    %v311 = vpop.f32.mrb[0].mxu0
    %312 = vmatprep.mubr.f32.mxu0 0.0
    %313 = vmatmul.mubr.f32.gmra.mrb[0].mxu0 %v56
    %v314 = vpop.f32.mrb[0].mxu0
    %v315 = vadd.f32 %v182, %v314
    %v316 = vpop.f32.mrb[0].mxu0
    %317 = vmatprep.mubr.f32.mxu0 0.0
    %318 = vmatmul.mubr.f32.gmra.mrb[0].mxu0 %v59
    %v319 = vpop.f32.mrb[0].mxu0
    %v320 = vadd.f32 %v187, %v319
    %v321 = vpop.f32.mrb[0].mxu0
    %322 = vmatprep.mubr.f32.mxu0 0.0
    %323 = vmatmul.mubr.f32.gmra.mrb[0].mxu0 %v62
    %v324 = vpop.f32.mrb[0].mxu0
    %v325 = vadd.f32 %v192, %v324
    %v326 = vpop.f32.mrb[0].mxu0
    %327 = vmatprep.mubr.f32.mxu0 0.0
    %328 = vmatmul.mubr.f32.gmra.mrb[0].mxu0 %v65
    %v329 = vpop.f32.mrb[0].mxu0
    %v330 = vadd.f32 %v197, %v329
    %v331 = vpop.f32.mrb[0].mxu0
    %332 = vdwg.mxu0
    %v333 = vld [vmem:[%s1 + $0x10] sm:$0xff]
    %v335 = vsel %vm30, %v26, 0
    %337 = vmatprep.subr.mxu0 0.0
    %338 = vmatpush1.msra.mxu0 %v333
    %339 = vmatprep.subr.mxu0 0.0
    %340 = vmatpush1.msra.mxu0 0.0
    %341 = vmatprep.subr.mxu0 0.0
    %342 = vmatpush1.msra.mxu0 0.0
    %343 = vmatprep.subr.mxu0 0.0
    %344 = vmatpush1.msra.mxu0 0.0
    %345 = vmatprep.subr.mxu0 0.0
    %346 = vmatpush1.msra.mxu0 0.0
    %347 = vmatprep.subr.mxu0 0.0
    %348 = vmatpush1.msra.mxu0 0.0
    %349 = vmatprep.subr.mxu0 0.0
    %350 = vmatpush1.msra.mxu0 0.0
    %351 = vmatprep.subr.mxu0 0.0
    %352 = vmatpush1.msra.mxu0 0.0
    %353 = vmatprep.subr.mxu0 0.0
    %354 = vmatpush1.msra.mxu0 0.0
    %355 = vmatprep.subr.mxu0 0.0
    %356 = vmatpush1.msra.mxu0 0.0
    %357 = vmatprep.subr.mxu0 0.0
    %358 = vmatpush1.msra.mxu0 0.0
    %359 = vmatprep.subr.mxu0 0.0
    %360 = vmatpush1.msra.mxu0 0.0
    %361 = vmatprep.subr.mxu0 0.0
    %362 = vmatpush1.msra.mxu0 0.0
    %363 = vmatprep.subr.mxu0 0.0
    %364 = vmatpush1.msra.mxu0 0.0
    %365 = vmatprep.subr.mxu0 0.0
    %366 = vmatpush1.msra.mxu0 0.0
    %367 = vmatprep.subr.mxu0 0.0
    %368 = vmatpush1.msra.mxu0 0.0
    %369 = vmatprep.subr.mxu0 0.0
    %370 = vmatpush1.msra.mxu0 0.0
    %371 = vmatprep.subr.mxu0 0.0
    %372 = vmatpush1.msra.mxu0 0.0
    %373 = vmatprep.subr.mxu0 0.0
    %374 = vmatpush1.msra.mxu0 0.0
    %375 = vmatprep.subr.mxu0 0.0
    %376 = vmatpush1.msra.mxu0 0.0
    %377 = vmatprep.subr.mxu0 0.0
    %378 = vmatpush1.msra.mxu0 0.0
    %379 = vmatprep.subr.mxu0 0.0
    %380 = vmatpush1.msra.mxu0 0.0
    %381 = vmatprep.subr.mxu0 0.0
    %382 = vmatpush1.msra.mxu0 0.0
    %383 = vmatprep.subr.mxu0 0.0
    %384 = vmatpush1.msra.mxu0 0.0
    %385 = vmatprep.subr.mxu0 0.0
    %386 = vmatpush1.msra.mxu0 0.0
    %387 = vmatprep.subr.mxu0 0.0
    %388 = vmatpush1.msra.mxu0 0.0
    %389 = vmatprep.subr.mxu0 0.0
    %390 = vmatpush1.msra.mxu0 0.0
    %391 = vmatprep.subr.mxu0 0.0
    %392 = vmatpush1.msra.mxu0 0.0
    %393 = vmatprep.subr.mxu0 0.0
    %394 = vmatpush1.msra.mxu0 0.0
    %395 = vmatprep.subr.mxu0 0.0
    %396 = vmatpush1.msra.mxu0 0.0
    %397 = vmatprep.subr.mxu0 0.0
    %398 = vmatpush1.msra.mxu0 0.0
    %399 = vmatprep.subr.mxu0 0.0
    %400 = vmatpush1.msra.mxu0 0.0
    %401 = vmatprep.mubr.f32.mxu0 0.0
    %402 = vmatmul.mubr.f32.gmra.mrb[0].mxu0 %v35
    %v403 = vpop.f32.mrb[0].mxu0
    %v404 = vadd.f32 0.0, %v403
    %v405 = vpop.f32.mrb[0].mxu0
    %406 = vmatprep.mubr.f32.mxu0 0.0
    %407 = vmatmul.mubr.f32.gmra.mrb[0].mxu0 %v38
    %v408 = vpop.f32.mrb[0].mxu0
    %v409 = vadd.f32 0.0, %v408
    %v410 = vpop.f32.mrb[0].mxu0
    %411 = vmatprep.mubr.f32.mxu0 0.0
    %412 = vmatmul.mubr.f32.gmra.mrb[0].mxu0 %v41
    %v413 = vpop.f32.mrb[0].mxu0
    %v414 = vadd.f32 0.0, %v413
    %v415 = vpop.f32.mrb[0].mxu0
    %416 = vmatprep.mubr.f32.mxu0 0.0
    %417 = vmatmul.mubr.f32.gmra.mrb[0].mxu0 %v44
    %v418 = vpop.f32.mrb[0].mxu0
    %v419 = vadd.f32 0.0, %v418
    %v420 = vpop.f32.mrb[0].mxu0
    %421 = vmatprep.mubr.f32.mxu0 0.0
    %422 = vmatmul.mubr.f32.gmra.mrb[0].mxu0 %v47
    %v423 = vpop.f32.mrb[0].mxu0
    %v424 = vadd.f32 0.0, %v423
    %v425 = vpop.f32.mrb[0].mxu0
    %426 = vmatprep.mubr.f32.mxu0 0.0
    %427 = vmatmul.mubr.f32.gmra.mrb[0].mxu0 %v50
    %v428 = vpop.f32.mrb[0].mxu0
    %v429 = vadd.f32 0.0, %v428
    %v430 = vpop.f32.mrb[0].mxu0
    %431 = vmatprep.mubr.f32.mxu0 0.0
    %432 = vmatmul.mubr.f32.gmra.mrb[0].mxu0 %v53
    %v433 = vpop.f32.mrb[0].mxu0
    %v434 = vadd.f32 0.0, %v433
    %v435 = vpop.f32.mrb[0].mxu0
    %436 = vmatprep.mubr.f32.mxu0 0.0
    %437 = vmatmul.mubr.f32.gmra.mrb[0].mxu0 %v56
    %v438 = vpop.f32.mrb[0].mxu0
    %v439 = vadd.f32 0.0, %v438
    %v440 = vpop.f32.mrb[0].mxu0
    %441 = vmatprep.mubr.f32.mxu0 0.0
    %442 = vmatmul.mubr.f32.gmra.mrb[0].mxu0 %v59
    %v443 = vpop.f32.mrb[0].mxu0
    %v444 = vadd.f32 0.0, %v443
    %v445 = vpop.f32.mrb[0].mxu0
    %446 = vmatprep.mubr.f32.mxu0 0.0
    %447 = vmatmul.mubr.f32.gmra.mrb[0].mxu0 %v62
    %v448 = vpop.f32.mrb[0].mxu0
    %v449 = vadd.f32 0.0, %v448
    %v450 = vpop.f32.mrb[0].mxu0
    %451 = vmatprep.mubr.f32.mxu0 0.0
    %452 = vmatmul.mubr.f32.gmra.mrb[0].mxu0 %v65
    %v453 = vpop.f32.mrb[0].mxu0
    %v454 = vadd.f32 0.0, %v453
    %v455 = vpop.f32.mrb[0].mxu0
    %456 = vmatprep.mubr.f32.mxu0 0.0
    %457 = vmatmul.mubr.f32.gmra.mrb[0].mxu0 %v68
    %v458 = vpop.f32.mrb[0].mxu0
    %v459 = vadd.f32 0.0, %v458
    %v460 = vpop.f32.mrb[0].mxu0
    %461 = vmatprep.mubr.f32.mxu0 0.0
    %462 = vmatmul.mubr.f32.gmra.mrb[0].mxu0 %v335
    %v463 = vpop.f32.mrb[0].mxu0
    %v464 = vadd.f32 0.0, %v463
    %v465 = vpop.f32.mrb[0].mxu0
    %466 = vdwg.mxu0
    %v467 = vadd.f32 %v270, %v404
    %v468 = vadd.f32 %v275, %v409
    %v469 = vadd.f32 %v280, %v414
    %v470 = vadd.f32 %v285, %v419
    %v471 = vadd.f32 %v290, %v424
    %v472 = vadd.f32 %v295, %v429
    %v473 = vadd.f32 %v300, %v434
    %v474 = vadd.f32 %v305, %v439
    %v475 = vadd.f32 %v310, %v444
    %v476 = vadd.f32 %v315, %v449
    %v477 = vadd.f32 %v320, %v454
    %v478 = vadd.f32 %v325, %v459
    %v479 = vadd.f32 %v330, %v464
    %v480 = vld [vmem:[%s1 + $0x18] sm:$0xff]
    %v482 = vsel %vm30, %v27, 0
    %484 = vmatprep.subr.mxu0 0.0
    %485 = vmatpush1.msra.mxu0 %v480
    %486 = vmatprep.subr.mxu0 0.0
    %487 = vmatpush1.msra.mxu0 0.0
    %488 = vmatprep.subr.mxu0 0.0
    %489 = vmatpush1.msra.mxu0 0.0
    %490 = vmatprep.subr.mxu0 0.0
    %491 = vmatpush1.msra.mxu0 0.0
    %492 = vmatprep.subr.mxu0 0.0
    %493 = vmatpush1.msra.mxu0 0.0
    %494 = vmatprep.subr.mxu0 0.0
    %495 = vmatpush1.msra.mxu0 0.0
    %496 = vmatprep.subr.mxu0 0.0
    %497 = vmatpush1.msra.mxu0 0.0
    %498 = vmatprep.subr.mxu0 0.0
    %499 = vmatpush1.msra.mxu0 0.0
    %500 = vmatprep.subr.mxu0 0.0
    %501 = vmatpush1.msra.mxu0 0.0
    %502 = vmatprep.subr.mxu0 0.0
    %503 = vmatpush1.msra.mxu0 0.0
    %504 = vmatprep.subr.mxu0 0.0
    %505 = vmatpush1.msra.mxu0 0.0
    %506 = vmatprep.subr.mxu0 0.0
    %507 = vmatpush1.msra.mxu0 0.0
    %508 = vmatprep.subr.mxu0 0.0
    %509 = vmatpush1.msra.mxu0 0.0
    %510 = vmatprep.subr.mxu0 0.0
    %511 = vmatpush1.msra.mxu0 0.0
    %512 = vmatprep.subr.mxu0 0.0
    %513 = vmatpush1.msra.mxu0 0.0
    %514 = vmatprep.subr.mxu0 0.0
    %515 = vmatpush1.msra.mxu0 0.0
    %516 = vmatprep.subr.mxu0 0.0
    %517 = vmatpush1.msra.mxu0 0.0
    %518 = vmatprep.subr.mxu0 0.0
    %519 = vmatpush1.msra.mxu0 0.0
    %520 = vmatprep.subr.mxu0 0.0
    %521 = vmatpush1.msra.mxu0 0.0
    %522 = vmatprep.subr.mxu0 0.0
    %523 = vmatpush1.msra.mxu0 0.0
    %524 = vmatprep.subr.mxu0 0.0
    %525 = vmatpush1.msra.mxu0 0.0
    %526 = vmatprep.subr.mxu0 0.0
    %527 = vmatpush1.msra.mxu0 0.0
    %528 = vmatprep.subr.mxu0 0.0
    %529 = vmatpush1.msra.mxu0 0.0
    %530 = vmatprep.subr.mxu0 0.0
    %531 = vmatpush1.msra.mxu0 0.0
    %532 = vmatprep.subr.mxu0 0.0
    %533 = vmatpush1.msra.mxu0 0.0
    %534 = vmatprep.subr.mxu0 0.0
    %535 = vmatpush1.msra.mxu0 0.0
    %536 = vmatprep.subr.mxu0 0.0
    %537 = vmatpush1.msra.mxu0 0.0
    %538 = vmatprep.subr.mxu0 0.0
    %539 = vmatpush1.msra.mxu0 0.0
    %540 = vmatprep.subr.mxu0 0.0
    %541 = vmatpush1.msra.mxu0 0.0
    %542 = vmatprep.subr.mxu0 0.0
    %543 = vmatpush1.msra.mxu0 0.0
    %544 = vmatprep.subr.mxu0 0.0
    %545 = vmatpush1.msra.mxu0 0.0
    %546 = vmatprep.subr.mxu0 0.0
    %547 = vmatpush1.msra.mxu0 0.0
    %548 = vmatprep.mubr.f32.mxu0 0.0
    %549 = vmatmul.mubr.f32.gmra.mrb[0].mxu0 %v38
    %v550 = vpop.f32.mrb[0].mxu0
    %v551 = vadd.f32 0.0, %v550
    %v552 = vpop.f32.mrb[0].mxu0
    %553 = vmatprep.mubr.f32.mxu0 0.0
    %554 = vmatmul.mubr.f32.gmra.mrb[0].mxu0 %v41
    %v555 = vpop.f32.mrb[0].mxu0
    %v556 = vadd.f32 0.0, %v555
    %v557 = vpop.f32.mrb[0].mxu0
    %558 = vmatprep.mubr.f32.mxu0 0.0
    %559 = vmatmul.mubr.f32.gmra.mrb[0].mxu0 %v44
    %v560 = vpop.f32.mrb[0].mxu0
    %v561 = vadd.f32 0.0, %v560
    %v562 = vpop.f32.mrb[0].mxu0
    %563 = vmatprep.mubr.f32.mxu0 0.0
    %564 = vmatmul.mubr.f32.gmra.mrb[0].mxu0 %v47
    %v565 = vpop.f32.mrb[0].mxu0
    %v566 = vadd.f32 0.0, %v565
    %v567 = vpop.f32.mrb[0].mxu0
    %568 = vmatprep.mubr.f32.mxu0 0.0
    %569 = vmatmul.mubr.f32.gmra.mrb[0].mxu0 %v50
    %v570 = vpop.f32.mrb[0].mxu0
    %v571 = vadd.f32 0.0, %v570
    %v572 = vpop.f32.mrb[0].mxu0
    %573 = vmatprep.mubr.f32.mxu0 0.0
    %574 = vmatmul.mubr.f32.gmra.mrb[0].mxu0 %v53
    %v575 = vpop.f32.mrb[0].mxu0
    %v576 = vadd.f32 0.0, %v575
    %v577 = vpop.f32.mrb[0].mxu0
    %578 = vmatprep.mubr.f32.mxu0 0.0
    %579 = vmatmul.mubr.f32.gmra.mrb[0].mxu0 %v56
    %v580 = vpop.f32.mrb[0].mxu0
    %v581 = vadd.f32 0.0, %v580
    %v582 = vpop.f32.mrb[0].mxu0
    %583 = vmatprep.mubr.f32.mxu0 0.0
    %584 = vmatmul.mubr.f32.gmra.mrb[0].mxu0 %v59
    %v585 = vpop.f32.mrb[0].mxu0
    %v586 = vadd.f32 0.0, %v585
    %v587 = vpop.f32.mrb[0].mxu0
    %588 = vmatprep.mubr.f32.mxu0 0.0
    %589 = vmatmul.mubr.f32.gmra.mrb[0].mxu0 %v62
    %v590 = vpop.f32.mrb[0].mxu0
    %v591 = vadd.f32 0.0, %v590
    %v592 = vpop.f32.mrb[0].mxu0
    %593 = vmatprep.mubr.f32.mxu0 0.0
    %594 = vmatmul.mubr.f32.gmra.mrb[0].mxu0 %v65
    %v595 = vpop.f32.mrb[0].mxu0
    %v596 = vadd.f32 0.0, %v595
    %v597 = vpop.f32.mrb[0].mxu0
    %598 = vmatprep.mubr.f32.mxu0 0.0
    %599 = vmatmul.mubr.f32.gmra.mrb[0].mxu0 %v68
    %v600 = vpop.f32.mrb[0].mxu0
    %v601 = vadd.f32 0.0, %v600
    %v602 = vpop.f32.mrb[0].mxu0
    %603 = vmatprep.mubr.f32.mxu0 0.0
    %604 = vmatmul.mubr.f32.gmra.mrb[0].mxu0 %v335
    %v605 = vpop.f32.mrb[0].mxu0
    %v606 = vadd.f32 0.0, %v605
    %v607 = vpop.f32.mrb[0].mxu0
    %608 = vmatprep.mubr.f32.mxu0 0.0
    %609 = vmatmul.mubr.f32.gmra.mrb[0].mxu0 %v482
    %v610 = vpop.f32.mrb[0].mxu0
    %v611 = vadd.f32 0.0, %v610
    %v612 = vpop.f32.mrb[0].mxu0
    %613 = vdwg.mxu0
    %v614 = vadd.f32 %v467, %v551
    %v615 = vadd.f32 %v468, %v556
    %v616 = vadd.f32 %v469, %v561
    %v617 = vadd.f32 %v470, %v566
    %v618 = vadd.f32 %v471, %v571
    %v619 = vadd.f32 %v472, %v576
    %v620 = vadd.f32 %v473, %v581
    %v621 = vadd.f32 %v474, %v586
    %v622 = vadd.f32 %v475, %v591
    %v623 = vadd.f32 %v476, %v596
    %v624 = vadd.f32 %v477, %v601
    %v625 = vadd.f32 %v478, %v606
    %v626 = vadd.f32 %v479, %v611
    %v627 = vld [vmem:[%s1 + $0x68] sm:$0x1]
    %v628 = vlaneseq
    %v629 = vshrl.u32 %v628, 7
    %v630 = vsub.s32 0, %v629
    %v631 = vrot.slane %v627, %v630
    %v632 = vadd.f32 %v614, %v631
    %v633 = vadd.f32 %v615, %v631
    %v634 = vadd.f32 %v616, %v631
    %v635 = vadd.f32 %v617, %v631
    %v636 = vadd.f32 %v618, %v631
    %v637 = vadd.f32 %v619, %v631
    %v638 = vadd.f32 %v620, %v631
    %v639 = vadd.f32 %v621, %v631
    %v640 = vadd.f32 %v622, %v631
    %v641 = vadd.f32 %v623, %v631
    %v642 = vadd.f32 %v624, %v631
    %v643 = vadd.f32 %v625, %v631
    %v644 = vadd.f32 %v626, %v631
    %v645 = vmax.f32 %v632, 0.0
    %v646 = vmax.f32 %v633, 0.0
    %v647 = vmax.f32 %v634, 0.0
    %v648 = vmax.f32 %v635, 0.0
    %v649 = vmax.f32 %v636, 0.0
    %v650 = vmax.f32 %v637, 0.0
    %v651 = vmax.f32 %v638, 0.0
    %v652 = vmax.f32 %v639, 0.0
    %v653 = vmax.f32 %v640, 0.0
    %v654 = vmax.f32 %v641, 0.0
    %v655 = vmax.f32 %v642, 0.0
    %v656 = vmax.f32 %v643, 0.0
    %v657 = vmax.f32 %v644, 0.0
    %v658 = vld [vmem:[%s1 + $0x20] sm:$0xff]
    %v659 = vld [vmem:[%s1 + $0x28] sm:$0xff]
    %v660 = vld [vmem:[%s1 + $0x69] sm:$0x1]
    %v661 = vlaneseq
    %v662 = vshrl.u32 %v661, 7
    %v663 = vsub.s32 0, %v662
    %v664 = vrot.slane %v660, %v663
    %vm665 = vcmask 130048
    %v667 = vsel %vm665, %v645, 0
    %v670 = vsel %vm665, %v646, 0
    %v673 = vsel %vm665, %v647, 0
    %v676 = vsel %vm665, %v648, 0
    %v679 = vsel %vm665, %v649, 0
    %v682 = vsel %vm665, %v650, 0
    %v685 = vsel %vm665, %v651, 0
    %v688 = vsel %vm665, %v652, 0
    %v691 = vsel %vm665, %v653, 0
    %v694 = vsel %vm665, %v654, 0
    %v697 = vsel %vm665, %v655, 0
    %v700 = vsel %vm665, %v656, 0
    %v703 = vsel %vm665, %v657, 0
    %705 = vmatprep.subr.mxu0 0.0
    %706 = vmatpush1.msra.mxu0 %v658
    %707 = vmatprep.subr.mxu0 0.0
    %708 = vmatpush1.msra.mxu0 %v659
    %709 = vmatprep.subr.mxu0 0.0
    %710 = vmatpush1.msra.mxu0 0.0
    %711 = vmatprep.subr.mxu0 0.0
    %712 = vmatpush1.msra.mxu0 0.0
    %713 = vmatprep.subr.mxu0 0.0
    %714 = vmatpush1.msra.mxu0 0.0
    %715 = vmatprep.subr.mxu0 0.0
    %716 = vmatpush1.msra.mxu0 0.0
    %717 = vmatprep.subr.mxu0 0.0
    %718 = vmatpush1.msra.mxu0 0.0
    %719 = vmatprep.subr.mxu0 0.0
    %720 = vmatpush1.msra.mxu0 0.0
    %721 = vmatprep.subr.mxu0 0.0
    %722 = vmatpush1.msra.mxu0 0.0
    %723 = vmatprep.subr.mxu0 0.0
    %724 = vmatpush1.msra.mxu0 0.0
    %725 = vmatprep.subr.mxu0 0.0
    %726 = vmatpush1.msra.mxu0 0.0
    %727 = vmatprep.subr.mxu0 0.0
    %728 = vmatpush1.msra.mxu0 0.0
    %729 = vmatprep.subr.mxu0 0.0
    %730 = vmatpush1.msra.mxu0 0.0
    %731 = vmatprep.subr.mxu0 0.0
    %732 = vmatpush1.msra.mxu0 0.0
    %733 = vmatprep.subr.mxu0 0.0
    %734 = vmatpush1.msra.mxu0 0.0
    %735 = vmatprep.subr.mxu0 0.0
    %736 = vmatpush1.msra.mxu0 0.0
    %737 = vmatprep.subr.mxu0 0.0
    %738 = vmatpush1.msra.mxu0 0.0
    %739 = vmatprep.subr.mxu0 0.0
    %740 = vmatpush1.msra.mxu0 0.0
    %741 = vmatprep.subr.mxu0 0.0
    %742 = vmatpush1.msra.mxu0 0.0
    %743 = vmatprep.subr.mxu0 0.0
    %744 = vmatpush1.msra.mxu0 0.0
    %745 = vmatprep.subr.mxu0 0.0
    %746 = vmatpush1.msra.mxu0 0.0
    %747 = vmatprep.subr.mxu0 0.0
    %748 = vmatpush1.msra.mxu0 0.0
    %749 = vmatprep.subr.mxu0 0.0
    %750 = vmatpush1.msra.mxu0 0.0
    %751 = vmatprep.subr.mxu0 0.0
    %752 = vmatpush1.msra.mxu0 0.0
    %753 = vmatprep.subr.mxu0 0.0
    %754 = vmatpush1.msra.mxu0 0.0
    %755 = vmatprep.subr.mxu0 0.0
    %756 = vmatpush1.msra.mxu0 0.0
    %757 = vmatprep.subr.mxu0 0.0
    %758 = vmatpush1.msra.mxu0 0.0
    %759 = vmatprep.subr.mxu0 0.0
    %760 = vmatpush1.msra.mxu0 0.0
    %761 = vmatprep.subr.mxu0 0.0
    %762 = vmatpush1.msra.mxu0 0.0
    %763 = vmatprep.subr.mxu0 0.0
    %764 = vmatpush1.msra.mxu0 0.0
    %765 = vmatprep.subr.mxu0 0.0
    %766 = vmatpush1.msra.mxu0 0.0
    %767 = vmatprep.subr.mxu0 0.0
    %768 = vmatpush1.msra.mxu0 0.0
    %769 = vmatprep.mubr.f32.mxu0 0.0
    %770 = vmatmul.mubr.f32.gmra.mrb[0].mxu0 %v667
    %v771 = vpop.f32.mrb[0].mxu0
    %v772 = vadd.f32 %v664, %v771
    %v773 = vpop.f32.mrb[0].mxu0
    %774 = vmatprep.mubr.f32.mxu0 0.0
    %775 = vmatmul.mubr.f32.gmra.mrb[0].mxu0 %v670
    %v776 = vpop.f32.mrb[0].mxu0
    %v777 = vadd.f32 %v664, %v776
    %v778 = vpop.f32.mrb[0].mxu0
    %779 = vmatprep.mubr.f32.mxu0 0.0
    %780 = vmatmul.mubr.f32.gmra.mrb[0].mxu0 %v673
    %v781 = vpop.f32.mrb[0].mxu0
    %v782 = vadd.f32 %v664, %v781
    %v783 = vpop.f32.mrb[0].mxu0
    %784 = vmatprep.mubr.f32.mxu0 0.0
    %785 = vmatmul.mubr.f32.gmra.mrb[0].mxu0 %v676
    %v786 = vpop.f32.mrb[0].mxu0
    %v787 = vadd.f32 %v664, %v786
    %v788 = vpop.f32.mrb[0].mxu0
    %789 = vmatprep.mubr.f32.mxu0 0.0
    %790 = vmatmul.mubr.f32.gmra.mrb[0].mxu0 %v679
    %v791 = vpop.f32.mrb[0].mxu0
    %v792 = vadd.f32 %v664, %v791
    %v793 = vpop.f32.mrb[0].mxu0
    %794 = vmatprep.mubr.f32.mxu0 0.0
    %795 = vmatmul.mubr.f32.gmra.mrb[0].mxu0 %v682
    %v796 = vpop.f32.mrb[0].mxu0
    %v797 = vadd.f32 %v664, %v796
    %v798 = vpop.f32.mrb[0].mxu0
    %799 = vmatprep.mubr.f32.mxu0 0.0
    %800 = vmatmul.mubr.f32.gmra.mrb[0].mxu0 %v685
    %v801 = vpop.f32.mrb[0].mxu0
    %v802 = vadd.f32 %v664, %v801
    %v803 = vpop.f32.mrb[0].mxu0
    %804 = vmatprep.mubr.f32.mxu0 0.0
    %805 = vmatmul.mubr.f32.gmra.mrb[0].mxu0 %v688
    %v806 = vpop.f32.mrb[0].mxu0
    %v807 = vadd.f32 %v664, %v806
    %v808 = vpop.f32.mrb[0].mxu0
    %809 = vmatprep.mubr.f32.mxu0 0.0
    %810 = vmatmul.mubr.f32.gmra.mrb[0].mxu0 %v691
    %v811 = vpop.f32.mrb[0].mxu0
    %v812 = vadd.f32 %v664, %v811
    %v813 = vpop.f32.mrb[0].mxu0
    %814 = vmatprep.mubr.f32.mxu0 0.0
    %815 = vmatmul.mubr.f32.gmra.mrb[0].mxu0 %v694
    %v816 = vpop.f32.mrb[0].mxu0
    %v817 = vadd.f32 %v664, %v816
    %v818 = vpop.f32.mrb[0].mxu0
    %819 = vmatprep.mubr.f32.mxu0 0.0
    %820 = vmatmul.mubr.f32.gmra.mrb[0].mxu0 %v697
    %v821 = vpop.f32.mrb[0].mxu0
    %v822 = vadd.f32 %v664, %v821
    %v823 = vpop.f32.mrb[0].mxu0
    %824 = vmatprep.mubr.f32.mxu0 0.0
    %825 = vmatmul.mubr.f32.gmra.mrb[0].mxu0 %v700
    %v826 = vpop.f32.mrb[0].mxu0
    %v827 = vadd.f32 %v664, %v826
    %v828 = vpop.f32.mrb[0].mxu0
    %829 = vmatprep.mubr.f32.mxu0 0.0
    %830 = vmatmul.mubr.f32.gmra.mrb[0].mxu0 %v703
    %v831 = vpop.f32.mrb[0].mxu0
    %v832 = vadd.f32 %v664, %v831
    %v833 = vpop.f32.mrb[0].mxu0
    %834 = vdwg.mxu0
    %v835 = vld [vmem:[%s1 + $0x30] sm:$0xff]
    %v836 = vld [vmem:[%s1 + $0x38] sm:$0xff]
    %v837 = vld [vmem:[%s1 + $0x6a] sm:$0x1]
    %v839 = vsel %vm665, 0.0, 0
    %841 = vmatprep.subr.mxu0 0.0
    %842 = vmatpush1.msra.mxu0 %v835
    %843 = vmatprep.subr.mxu0 0.0
    %844 = vmatpush1.msra.mxu0 %v836
    %845 = vmatprep.subr.mxu0 0.0
    %846 = vmatpush1.msra.mxu0 0.0
    %847 = vmatprep.subr.mxu0 0.0
    %848 = vmatpush1.msra.mxu0 0.0
    %849 = vmatprep.subr.mxu0 0.0
    %850 = vmatpush1.msra.mxu0 0.0
    %851 = vmatprep.subr.mxu0 0.0
    %852 = vmatpush1.msra.mxu0 0.0
    %853 = vmatprep.subr.mxu0 0.0
    %854 = vmatpush1.msra.mxu0 0.0
    %855 = vmatprep.subr.mxu0 0.0
    %856 = vmatpush1.msra.mxu0 0.0
    %857 = vmatprep.subr.mxu0 0.0
    %858 = vmatpush1.msra.mxu0 0.0
    %859 = vmatprep.subr.mxu0 0.0
    %860 = vmatpush1.msra.mxu0 0.0
    %861 = vmatprep.subr.mxu0 0.0
    %862 = vmatpush1.msra.mxu0 0.0
    %863 = vmatprep.subr.mxu0 0.0
    %864 = vmatpush1.msra.mxu0 0.0
    %865 = vmatprep.subr.mxu0 0.0
    %866 = vmatpush1.msra.mxu0 0.0
    %867 = vmatprep.subr.mxu0 0.0
    %868 = vmatpush1.msra.mxu0 0.0
    %869 = vmatprep.subr.mxu0 0.0
    %870 = vmatpush1.msra.mxu0 0.0
    %871 = vmatprep.subr.mxu0 0.0
    %872 = vmatpush1.msra.mxu0 0.0
    %873 = vmatprep.subr.mxu0 0.0
    %874 = vmatpush1.msra.mxu0 0.0
    %875 = vmatprep.subr.mxu0 0.0
    %876 = vmatpush1.msra.mxu0 0.0
    %877 = vmatprep.subr.mxu0 0.0
    %878 = vmatpush1.msra.mxu0 0.0
    %879 = vmatprep.subr.mxu0 0.0
    %880 = vmatpush1.msra.mxu0 0.0
    %881 = vmatprep.subr.mxu0 0.0
    %882 = vmatpush1.msra.mxu0 0.0
    %883 = vmatprep.subr.mxu0 0.0
    %884 = vmatpush1.msra.mxu0 0.0
    %885 = vmatprep.subr.mxu0 0.0
    %886 = vmatpush1.msra.mxu0 0.0
    %887 = vmatprep.subr.mxu0 0.0
    %888 = vmatpush1.msra.mxu0 0.0
    %889 = vmatprep.subr.mxu0 0.0
    %890 = vmatpush1.msra.mxu0 0.0
    %891 = vmatprep.subr.mxu0 0.0
    %892 = vmatpush1.msra.mxu0 0.0
    %893 = vmatprep.subr.mxu0 0.0
    %894 = vmatpush1.msra.mxu0 0.0
    %895 = vmatprep.subr.mxu0 0.0
    %896 = vmatpush1.msra.mxu0 0.0
    %897 = vmatprep.subr.mxu0 0.0
    %898 = vmatpush1.msra.mxu0 0.0
    %899 = vmatprep.subr.mxu0 0.0
    %900 = vmatpush1.msra.mxu0 0.0
    %901 = vmatprep.subr.mxu0 0.0
    %902 = vmatpush1.msra.mxu0 0.0
    %903 = vmatprep.subr.mxu0 0.0
    %904 = vmatpush1.msra.mxu0 0.0
    %905 = vmatprep.mubr.f32.mxu0 0.0
    %906 = vmatmul.mubr.f32.gmra.mrb[0].mxu0 %v839
    %v907 = vpop.f32.mrb[0].mxu0
    %v908 = vadd.f32 0.0, %v907
    %v909 = vpop.f32.mrb[0].mxu0
    %910 = vdwg.mxu0
    %v911 = vadd.f32 %v772, %v908
    %v912 = vxor.u32 %v911, 2147483648
    %v913 = vmul.f32 %v912, 1.442695
    %v914 = vpow.pop %v913
    %v915 = vadd.f32 %v914, 1.0
    %v916 = vrcp.pop %v915
    %v917 = vmul.f32 1.0, %v916
    %v918 = vlaneseq
    %v919 = vshrl.u32 %v918, 7
    %v920 = vsub.s32 0, %v919
    %v921 = vrot.slane %v837, %v920
    %923 = vrot.lane.b32.xlu0 %v921, 32
    %v924 = vpop.permute.xlu0 %923
    %v926 = vadd.f32 %v908, %v924
    %928 = vrot.lane.b32.xlu0 %v926, 96
    %v929 = vpop.permute.xlu0 %928
    %v931 = vmul.f32 %v917, %v929
    %933 = vrot.lane.b32.xlu0 %v931, 32
    %v934 = vpop.permute.xlu0 %933
    %v936 = vadd.f32 %v772, %v934
    %v937 = vtanh.pop %v936
    %v938 = vsub.f32 1.0, %v917
    %940 = vrot.lane.b32.xlu0 %v937, 112
    %v941 = vpop.permute.xlu0 %940
    %v943 = vmul.f32 %v938, %v941
    %v944 = vmul.f32 %v917, 0.0
    %v945 = vadd.f32 %v943, %v944
    %947 = vrot.lane.b32.xlu0 %v945, 112
    %v948 = vpop.permute.xlu0 %947
    %v949 = vsel %vm665, %v948, 0
    %951 = vmatprep.subr.mxu0 0.0
    %952 = vmatpush1.msra.mxu0 %v835
    %953 = vmatprep.subr.mxu0 0.0
    %954 = vmatpush1.msra.mxu0 %v836
    %955 = vmatprep.subr.mxu0 0.0
    %956 = vmatpush1.msra.mxu0 0.0
    %957 = vmatprep.subr.mxu0 0.0
    %958 = vmatpush1.msra.mxu0 0.0
    %959 = vmatprep.subr.mxu0 0.0
    %960 = vmatpush1.msra.mxu0 0.0
    %961 = vmatprep.subr.mxu0 0.0
    %962 = vmatpush1.msra.mxu0 0.0
    %963 = vmatprep.subr.mxu0 0.0
    %964 = vmatpush1.msra.mxu0 0.0
    %965 = vmatprep.subr.mxu0 0.0
    %966 = vmatpush1.msra.mxu0 0.0
    %967 = vmatprep.subr.mxu0 0.0
    %968 = vmatpush1.msra.mxu0 0.0
    %969 = vmatprep.subr.mxu0 0.0
    %970 = vmatpush1.msra.mxu0 0.0
    %971 = vmatprep.subr.mxu0 0.0
    %972 = vmatpush1.msra.mxu0 0.0
    %973 = vmatprep.subr.mxu0 0.0
    %974 = vmatpush1.msra.mxu0 0.0
    %975 = vmatprep.subr.mxu0 0.0
    %976 = vmatpush1.msra.mxu0 0.0
    %977 = vmatprep.subr.mxu0 0.0
    %978 = vmatpush1.msra.mxu0 0.0
    %979 = vmatprep.subr.mxu0 0.0
    %980 = vmatpush1.msra.mxu0 0.0
    %981 = vmatprep.subr.mxu0 0.0
    %982 = vmatpush1.msra.mxu0 0.0
    %983 = vmatprep.subr.mxu0 0.0
    %984 = vmatpush1.msra.mxu0 0.0
    %985 = vmatprep.subr.mxu0 0.0
    %986 = vmatpush1.msra.mxu0 0.0
    %987 = vmatprep.subr.mxu0 0.0
    %988 = vmatpush1.msra.mxu0 0.0
    %989 = vmatprep.subr.mxu0 0.0
    %990 = vmatpush1.msra.mxu0 0.0
    %991 = vmatprep.subr.mxu0 0.0
    %992 = vmatpush1.msra.mxu0 0.0
    %993 = vmatprep.subr.mxu0 0.0
    %994 = vmatpush1.msra.mxu0 0.0
    %995 = vmatprep.subr.mxu0 0.0
    %996 = vmatpush1.msra.mxu0 0.0
    %997 = vmatprep.subr.mxu0 0.0
    %998 = vmatpush1.msra.mxu0 0.0
    %999 = vmatprep.subr.mxu0 0.0
    %1000 = vmatpush1.msra.mxu0 0.0
    %1001 = vmatprep.subr.mxu0 0.0
    %1002 = vmatpush1.msra.mxu0 0.0
    %1003 = vmatprep.subr.mxu0 0.0
    %1004 = vmatpush1.msra.mxu0 0.0
    %1005 = vmatprep.subr.mxu0 0.0
    %1006 = vmatpush1.msra.mxu0 0.0
    %1007 = vmatprep.subr.mxu0 0.0
    %1008 = vmatpush1.msra.mxu0 0.0
    %1009 = vmatprep.subr.mxu0 0.0
    %1010 = vmatpush1.msra.mxu0 0.0
    %1011 = vmatprep.subr.mxu0 0.0
    %1012 = vmatpush1.msra.mxu0 0.0
    %1013 = vmatprep.subr.mxu0 0.0
    %1014 = vmatpush1.msra.mxu0 0.0
    %1015 = vmatprep.mubr.f32.mxu0 0.0
    %1016 = vmatmul.mubr.f32.gmra.mrb[0].mxu0 %v949
    %v1017 = vpop.f32.mrb[0].mxu0
    %v1018 = vadd.f32 0.0, %v1017
    %v1019 = vpop.f32.mrb[0].mxu0
    %1020 = vdwg.mxu0
    %v1021 = vadd.f32 %v777, %v1018
    %v1022 = vxor.u32 %v1021, 2147483648
    %v1023 = vmul.f32 %v1022, 1.442695
    %v1024 = vpow.pop %v1023
    %v1025 = vadd.f32 %v1024, 1.0
    %v1026 = vrcp.pop %v1025
    %v1027 = vmul.f32 1.0, %v1026
    %v1028 = vadd.f32 %v1018, %v924
    %1030 = vrot.lane.b32.xlu0 %v1028, 96
    %v1031 = vpop.permute.xlu0 %1030
    %v1033 = vmul.f32 %v1027, %v1031
    %1035 = vrot.lane.b32.xlu0 %v1033, 32
    %v1036 = vpop.permute.xlu0 %1035
    %v1038 = vadd.f32 %v777, %v1036
    %v1039 = vtanh.pop %v1038
    %v1040 = vsub.f32 1.0, %v1027
    %1042 = vrot.lane.b32.xlu0 %v1039, 112
    %v1043 = vpop.permute.xlu0 %1042
    %v1045 = vmul.f32 %v1040, %v1043
    %v1046 = vmul.f32 %v1027, %v945
    %v1047 = vadd.f32 %v1045, %v1046
    %1049 = vrot.lane.b32.xlu0 %v1047, 112
    %v1050 = vpop.permute.xlu0 %1049
    %v1051 = vsel %vm665, %v1050, 0
    %1053 = vmatprep.subr.mxu0 0.0
    %1054 = vmatpush1.msra.mxu0 %v835
    %1055 = vmatprep.subr.mxu0 0.0
    %1056 = vmatpush1.msra.mxu0 %v836
    %1057 = vmatprep.subr.mxu0 0.0
    %1058 = vmatpush1.msra.mxu0 0.0
    %1059 = vmatprep.subr.mxu0 0.0
    %1060 = vmatpush1.msra.mxu0 0.0
    %1061 = vmatprep.subr.mxu0 0.0
    %1062 = vmatpush1.msra.mxu0 0.0
    %1063 = vmatprep.subr.mxu0 0.0
    %1064 = vmatpush1.msra.mxu0 0.0
    %1065 = vmatprep.subr.mxu0 0.0
    %1066 = vmatpush1.msra.mxu0 0.0
    %1067 = vmatprep.subr.mxu0 0.0
    %1068 = vmatpush1.msra.mxu0 0.0
    %1069 = vmatprep.subr.mxu0 0.0
    %1070 = vmatpush1.msra.mxu0 0.0
    %1071 = vmatprep.subr.mxu0 0.0
    %1072 = vmatpush1.msra.mxu0 0.0
    %1073 = vmatprep.subr.mxu0 0.0
    %1074 = vmatpush1.msra.mxu0 0.0
    %1075 = vmatprep.subr.mxu0 0.0
    %1076 = vmatpush1.msra.mxu0 0.0
    %1077 = vmatprep.subr.mxu0 0.0
    %1078 = vmatpush1.msra.mxu0 0.0
    %1079 = vmatprep.subr.mxu0 0.0
    %1080 = vmatpush1.msra.mxu0 0.0
    %1081 = vmatprep.subr.mxu0 0.0
    %1082 = vmatpush1.msra.mxu0 0.0
    %1083 = vmatprep.subr.mxu0 0.0
    %1084 = vmatpush1.msra.mxu0 0.0
    %1085 = vmatprep.subr.mxu0 0.0
    %1086 = vmatpush1.msra.mxu0 0.0
    %1087 = vmatprep.subr.mxu0 0.0
    %1088 = vmatpush1.msra.mxu0 0.0
    %1089 = vmatprep.subr.mxu0 0.0
    %1090 = vmatpush1.msra.mxu0 0.0
    %1091 = vmatprep.subr.mxu0 0.0
    %1092 = vmatpush1.msra.mxu0 0.0
    %1093 = vmatprep.subr.mxu0 0.0
    %1094 = vmatpush1.msra.mxu0 0.0
    %1095 = vmatprep.subr.mxu0 0.0
    %1096 = vmatpush1.msra.mxu0 0.0
    %1097 = vmatprep.subr.mxu0 0.0
    %1098 = vmatpush1.msra.mxu0 0.0
    %1099 = vmatprep.subr.mxu0 0.0
    %1100 = vmatpush1.msra.mxu0 0.0
    %1101 = vmatprep.subr.mxu0 0.0
    %1102 = vmatpush1.msra.mxu0 0.0
    %1103 = vmatprep.subr.mxu0 0.0
    %1104 = vmatpush1.msra.mxu0 0.0
    %1105 = vmatprep.subr.mxu0 0.0
    %1106 = vmatpush1.msra.mxu0 0.0
    %1107 = vmatprep.subr.mxu0 0.0
    %1108 = vmatpush1.msra.mxu0 0.0
    %1109 = vmatprep.subr.mxu0 0.0
    %1110 = vmatpush1.msra.mxu0 0.0
    %1111 = vmatprep.subr.mxu0 0.0
    %1112 = vmatpush1.msra.mxu0 0.0
    %1113 = vmatprep.subr.mxu0 0.0
    %1114 = vmatpush1.msra.mxu0 0.0
    %1115 = vmatprep.subr.mxu0 0.0
    %1116 = vmatpush1.msra.mxu0 0.0
    %1117 = vmatprep.mubr.f32.mxu0 0.0
    %1118 = vmatmul.mubr.f32.gmra.mrb[0].mxu0 %v1051
    %v1119 = vpop.f32.mrb[0].mxu0
    %v1120 = vadd.f32 0.0, %v1119
    %v1121 = vpop.f32.mrb[0].mxu0
    %1122 = vdwg.mxu0
    %v1123 = vadd.f32 %v782, %v1120
    %v1124 = vxor.u32 %v1123, 2147483648
    %v1125 = vmul.f32 %v1124, 1.442695
    %v1126 = vpow.pop %v1125
    %v1127 = vadd.f32 %v1126, 1.0
    %v1128 = vrcp.pop %v1127
    %v1129 = vmul.f32 1.0, %v1128
    %v1130 = vadd.f32 %v1120, %v924
    %1132 = vrot.lane.b32.xlu0 %v1130, 96
    %v1133 = vpop.permute.xlu0 %1132
    %v1135 = vmul.f32 %v1129, %v1133
    %1137 = vrot.lane.b32.xlu0 %v1135, 32
    %v1138 = vpop.permute.xlu0 %1137
    %v1140 = vadd.f32 %v782, %v1138
    %v1141 = vtanh.pop %v1140
    %v1142 = vsub.f32 1.0, %v1129
    %1144 = vrot.lane.b32.xlu0 %v1141, 112
    %v1145 = vpop.permute.xlu0 %1144
    %v1147 = vmul.f32 %v1142, %v1145
    %v1148 = vmul.f32 %v1129, %v1047
    %v1149 = vadd.f32 %v1147, %v1148
    %1151 = vrot.lane.b32.xlu0 %v1149, 112
    %v1152 = vpop.permute.xlu0 %1151
    %v1153 = vsel %vm665, %v1152, 0
    %1155 = vmatprep.subr.mxu0 0.0
    %1156 = vmatpush1.msra.mxu0 %v835
    %1157 = vmatprep.subr.mxu0 0.0
    %1158 = vmatpush1.msra.mxu0 %v836
    %1159 = vmatprep.subr.mxu0 0.0
    %1160 = vmatpush1.msra.mxu0 0.0
    %1161 = vmatprep.subr.mxu0 0.0
    %1162 = vmatpush1.msra.mxu0 0.0
    %1163 = vmatprep.subr.mxu0 0.0
    %1164 = vmatpush1.msra.mxu0 0.0
    %1165 = vmatprep.subr.mxu0 0.0
    %1166 = vmatpush1.msra.mxu0 0.0
    %1167 = vmatprep.subr.mxu0 0.0
    %1168 = vmatpush1.msra.mxu0 0.0
    %1169 = vmatprep.subr.mxu0 0.0
    %1170 = vmatpush1.msra.mxu0 0.0
    %1171 = vmatprep.subr.mxu0 0.0
    %1172 = vmatpush1.msra.mxu0 0.0
    %1173 = vmatprep.subr.mxu0 0.0
    %1174 = vmatpush1.msra.mxu0 0.0
    %1175 = vmatprep.subr.mxu0 0.0
    %1176 = vmatpush1.msra.mxu0 0.0
    %1177 = vmatprep.subr.mxu0 0.0
    %1178 = vmatpush1.msra.mxu0 0.0
    %1179 = vmatprep.subr.mxu0 0.0
    %1180 = vmatpush1.msra.mxu0 0.0
    %1181 = vmatprep.subr.mxu0 0.0
    %1182 = vmatpush1.msra.mxu0 0.0
    %1183 = vmatprep.subr.mxu0 0.0
    %1184 = vmatpush1.msra.mxu0 0.0
    %1185 = vmatprep.subr.mxu0 0.0
    %1186 = vmatpush1.msra.mxu0 0.0
    %1187 = vmatprep.subr.mxu0 0.0
    %1188 = vmatpush1.msra.mxu0 0.0
    %1189 = vmatprep.subr.mxu0 0.0
    %1190 = vmatpush1.msra.mxu0 0.0
    %1191 = vmatprep.subr.mxu0 0.0
    %1192 = vmatpush1.msra.mxu0 0.0
    %1193 = vmatprep.subr.mxu0 0.0
    %1194 = vmatpush1.msra.mxu0 0.0
    %1195 = vmatprep.subr.mxu0 0.0
    %1196 = vmatpush1.msra.mxu0 0.0
    %1197 = vmatprep.subr.mxu0 0.0
    %1198 = vmatpush1.msra.mxu0 0.0
    %1199 = vmatprep.subr.mxu0 0.0
    %1200 = vmatpush1.msra.mxu0 0.0
    %1201 = vmatprep.subr.mxu0 0.0
    %1202 = vmatpush1.msra.mxu0 0.0
    %1203 = vmatprep.subr.mxu0 0.0
    %1204 = vmatpush1.msra.mxu0 0.0
    %1205 = vmatprep.subr.mxu0 0.0
    %1206 = vmatpush1.msra.mxu0 0.0
    %1207 = vmatprep.subr.mxu0 0.0
    %1208 = vmatpush1.msra.mxu0 0.0
    %1209 = vmatprep.subr.mxu0 0.0
    %1210 = vmatpush1.msra.mxu0 0.0
    %1211 = vmatprep.subr.mxu0 0.0
    %1212 = vmatpush1.msra.mxu0 0.0
    %1213 = vmatprep.subr.mxu0 0.0
    %1214 = vmatpush1.msra.mxu0 0.0
    %1215 = vmatprep.subr.mxu0 0.0
    %1216 = vmatpush1.msra.mxu0 0.0
    %1217 = vmatprep.subr.mxu0 0.0
    %1218 = vmatpush1.msra.mxu0 0.0
    %1219 = vmatprep.mubr.f32.mxu0 0.0
    %1220 = vmatmul.mubr.f32.gmra.mrb[0].mxu0 %v1153
    %v1221 = vpop.f32.mrb[0].mxu0
    %v1222 = vadd.f32 0.0, %v1221
    %v1223 = vpop.f32.mrb[0].mxu0
    %1224 = vdwg.mxu0
    %v1225 = vadd.f32 %v787, %v1222
    %v1226 = vxor.u32 %v1225, 2147483648
    %v1227 = vmul.f32 %v1226, 1.442695
    %v1228 = vpow.pop %v1227
    %v1229 = vadd.f32 %v1228, 1.0
    %v1230 = vrcp.pop %v1229
    %v1231 = vmul.f32 1.0, %v1230
    %v1232 = vadd.f32 %v1222, %v924
    %1234 = vrot.lane.b32.xlu0 %v1232, 96
    %v1235 = vpop.permute.xlu0 %1234
    %v1237 = vmul.f32 %v1231, %v1235
    %1239 = vrot.lane.b32.xlu0 %v1237, 32
    %v1240 = vpop.permute.xlu0 %1239
    %v1242 = vadd.f32 %v787, %v1240
    %v1243 = vtanh.pop %v1242
    %v1244 = vsub.f32 1.0, %v1231
    %1246 = vrot.lane.b32.xlu0 %v1243, 112
    %v1247 = vpop.permute.xlu0 %1246
    %v1249 = vmul.f32 %v1244, %v1247
    %v1250 = vmul.f32 %v1231, %v1149
    %v1251 = vadd.f32 %v1249, %v1250
    %1253 = vrot.lane.b32.xlu0 %v1251, 112
    %v1254 = vpop.permute.xlu0 %1253
    %v1255 = vsel %vm665, %v1254, 0
    %1257 = vmatprep.subr.mxu0 0.0
    %1258 = vmatpush1.msra.mxu0 %v835
    %1259 = vmatprep.subr.mxu0 0.0
    %1260 = vmatpush1.msra.mxu0 %v836
    %1261 = vmatprep.subr.mxu0 0.0
    %1262 = vmatpush1.msra.mxu0 0.0
    %1263 = vmatprep.subr.mxu0 0.0
    %1264 = vmatpush1.msra.mxu0 0.0
    %1265 = vmatprep.subr.mxu0 0.0
    %1266 = vmatpush1.msra.mxu0 0.0
    %1267 = vmatprep.subr.mxu0 0.0
    %1268 = vmatpush1.msra.mxu0 0.0
    %1269 = vmatprep.subr.mxu0 0.0
    %1270 = vmatpush1.msra.mxu0 0.0
    %1271 = vmatprep.subr.mxu0 0.0
    %1272 = vmatpush1.msra.mxu0 0.0
    %1273 = vmatprep.subr.mxu0 0.0
    %1274 = vmatpush1.msra.mxu0 0.0
    %1275 = vmatprep.subr.mxu0 0.0
    %1276 = vmatpush1.msra.mxu0 0.0
    %1277 = vmatprep.subr.mxu0 0.0
    %1278 = vmatpush1.msra.mxu0 0.0
    %1279 = vmatprep.subr.mxu0 0.0
    %1280 = vmatpush1.msra.mxu0 0.0
    %1281 = vmatprep.subr.mxu0 0.0
    %1282 = vmatpush1.msra.mxu0 0.0
    %1283 = vmatprep.subr.mxu0 0.0
    %1284 = vmatpush1.msra.mxu0 0.0
    %1285 = vmatprep.subr.mxu0 0.0
    %1286 = vmatpush1.msra.mxu0 0.0
    %1287 = vmatprep.subr.mxu0 0.0
    %1288 = vmatpush1.msra.mxu0 0.0
    %1289 = vmatprep.subr.mxu0 0.0
    %1290 = vmatpush1.msra.mxu0 0.0
    %1291 = vmatprep.subr.mxu0 0.0
    %1292 = vmatpush1.msra.mxu0 0.0
    %1293 = vmatprep.subr.mxu0 0.0
    %1294 = vmatpush1.msra.mxu0 0.0
    %1295 = vmatprep.subr.mxu0 0.0
    %1296 = vmatpush1.msra.mxu0 0.0
    %1297 = vmatprep.subr.mxu0 0.0
    %1298 = vmatpush1.msra.mxu0 0.0
    %1299 = vmatprep.subr.mxu0 0.0
    %1300 = vmatpush1.msra.mxu0 0.0
    %1301 = vmatprep.subr.mxu0 0.0
    %1302 = vmatpush1.msra.mxu0 0.0
    %1303 = vmatprep.subr.mxu0 0.0
    %1304 = vmatpush1.msra.mxu0 0.0
    %1305 = vmatprep.subr.mxu0 0.0
    %1306 = vmatpush1.msra.mxu0 0.0
    %1307 = vmatprep.subr.mxu0 0.0
    %1308 = vmatpush1.msra.mxu0 0.0
    %1309 = vmatprep.subr.mxu0 0.0
    %1310 = vmatpush1.msra.mxu0 0.0
    %1311 = vmatprep.subr.mxu0 0.0
    %1312 = vmatpush1.msra.mxu0 0.0
    %1313 = vmatprep.subr.mxu0 0.0
    %1314 = vmatpush1.msra.mxu0 0.0
    %1315 = vmatprep.subr.mxu0 0.0
    %1316 = vmatpush1.msra.mxu0 0.0
    %1317 = vmatprep.subr.mxu0 0.0
    %1318 = vmatpush1.msra.mxu0 0.0
    %1319 = vmatprep.subr.mxu0 0.0
    %1320 = vmatpush1.msra.mxu0 0.0
    %1321 = vmatprep.mubr.f32.mxu0 0.0
    %1322 = vmatmul.mubr.f32.gmra.mrb[0].mxu0 %v1255
    %v1323 = vpop.f32.mrb[0].mxu0
    %v1324 = vadd.f32 0.0, %v1323
    %v1325 = vpop.f32.mrb[0].mxu0
    %1326 = vdwg.mxu0
    %v1327 = vadd.f32 %v792, %v1324
    %v1328 = vxor.u32 %v1327, 2147483648
    %v1329 = vmul.f32 %v1328, 1.442695
    %v1330 = vpow.pop %v1329
    %v1331 = vadd.f32 %v1330, 1.0
    %v1332 = vrcp.pop %v1331
    %v1333 = vmul.f32 1.0, %v1332
    %v1334 = vadd.f32 %v1324, %v924
    %1336 = vrot.lane.b32.xlu0 %v1334, 96
    %v1337 = vpop.permute.xlu0 %1336
    %v1339 = vmul.f32 %v1333, %v1337
    %1341 = vrot.lane.b32.xlu0 %v1339, 32
    %v1342 = vpop.permute.xlu0 %1341
    %v1344 = vadd.f32 %v792, %v1342
    %v1345 = vtanh.pop %v1344
    %v1346 = vsub.f32 1.0, %v1333
    %1348 = vrot.lane.b32.xlu0 %v1345, 112
    %v1349 = vpop.permute.xlu0 %1348
    %v1351 = vmul.f32 %v1346, %v1349
    %v1352 = vmul.f32 %v1333, %v1251
    %v1353 = vadd.f32 %v1351, %v1352
    %1355 = vrot.lane.b32.xlu0 %v1353, 112
    %v1356 = vpop.permute.xlu0 %1355
    %v1357 = vsel %vm665, %v1356, 0
    %1359 = vmatprep.subr.mxu0 0.0
    %1360 = vmatpush1.msra.mxu0 %v835
    %1361 = vmatprep.subr.mxu0 0.0
    %1362 = vmatpush1.msra.mxu0 %v836
    %1363 = vmatprep.subr.mxu0 0.0
    %1364 = vmatpush1.msra.mxu0 0.0
    %1365 = vmatprep.subr.mxu0 0.0
    %1366 = vmatpush1.msra.mxu0 0.0
    %1367 = vmatprep.subr.mxu0 0.0
    %1368 = vmatpush1.msra.mxu0 0.0
    %1369 = vmatprep.subr.mxu0 0.0
    %1370 = vmatpush1.msra.mxu0 0.0
    %1371 = vmatprep.subr.mxu0 0.0
    %1372 = vmatpush1.msra.mxu0 0.0
    %1373 = vmatprep.subr.mxu0 0.0
    %1374 = vmatpush1.msra.mxu0 0.0
    %1375 = vmatprep.subr.mxu0 0.0
    %1376 = vmatpush1.msra.mxu0 0.0
    %1377 = vmatprep.subr.mxu0 0.0
    %1378 = vmatpush1.msra.mxu0 0.0
    %1379 = vmatprep.subr.mxu0 0.0
    %1380 = vmatpush1.msra.mxu0 0.0
    %1381 = vmatprep.subr.mxu0 0.0
    %1382 = vmatpush1.msra.mxu0 0.0
    %1383 = vmatprep.subr.mxu0 0.0
    %1384 = vmatpush1.msra.mxu0 0.0
    %1385 = vmatprep.subr.mxu0 0.0
    %1386 = vmatpush1.msra.mxu0 0.0
    %1387 = vmatprep.subr.mxu0 0.0
    %1388 = vmatpush1.msra.mxu0 0.0
    %1389 = vmatprep.subr.mxu0 0.0
    %1390 = vmatpush1.msra.mxu0 0.0
    %1391 = vmatprep.subr.mxu0 0.0
    %1392 = vmatpush1.msra.mxu0 0.0
    %1393 = vmatprep.subr.mxu0 0.0
    %1394 = vmatpush1.msra.mxu0 0.0
    %1395 = vmatprep.subr.mxu0 0.0
    %1396 = vmatpush1.msra.mxu0 0.0
    %1397 = vmatprep.subr.mxu0 0.0
    %1398 = vmatpush1.msra.mxu0 0.0
    %1399 = vmatprep.subr.mxu0 0.0
    %1400 = vmatpush1.msra.mxu0 0.0
    %1401 = vmatprep.subr.mxu0 0.0
    %1402 = vmatpush1.msra.mxu0 0.0
    %1403 = vmatprep.subr.mxu0 0.0
    %1404 = vmatpush1.msra.mxu0 0.0
    %1405 = vmatprep.subr.mxu0 0.0
    %1406 = vmatpush1.msra.mxu0 0.0
    %1407 = vmatprep.subr.mxu0 0.0
    %1408 = vmatpush1.msra.mxu0 0.0
    %1409 = vmatprep.subr.mxu0 0.0
    %1410 = vmatpush1.msra.mxu0 0.0
    %1411 = vmatprep.subr.mxu0 0.0
    %1412 = vmatpush1.msra.mxu0 0.0
    %1413 = vmatprep.subr.mxu0 0.0
    %1414 = vmatpush1.msra.mxu0 0.0
    %1415 = vmatprep.subr.mxu0 0.0
    %1416 = vmatpush1.msra.mxu0 0.0
    %1417 = vmatprep.subr.mxu0 0.0
    %1418 = vmatpush1.msra.mxu0 0.0
    %1419 = vmatprep.subr.mxu0 0.0
    %1420 = vmatpush1.msra.mxu0 0.0
    %1421 = vmatprep.subr.mxu0 0.0
    %1422 = vmatpush1.msra.mxu0 0.0
    %1423 = vmatprep.mubr.f32.mxu0 0.0
    %1424 = vmatmul.mubr.f32.gmra.mrb[0].mxu0 %v1357
    %v1425 = vpop.f32.mrb[0].mxu0
    %v1426 = vadd.f32 0.0, %v1425
    %v1427 = vpop.f32.mrb[0].mxu0
    %1428 = vdwg.mxu0
    %v1429 = vadd.f32 %v797, %v1426
    %v1430 = vxor.u32 %v1429, 2147483648
    %v1431 = vmul.f32 %v1430, 1.442695
    %v1432 = vpow.pop %v1431
    %v1433 = vadd.f32 %v1432, 1.0
    %v1434 = vrcp.pop %v1433
    %v1435 = vmul.f32 1.0, %v1434
    %v1436 = vadd.f32 %v1426, %v924
    %1438 = vrot.lane.b32.xlu0 %v1436, 96
    %v1439 = vpop.permute.xlu0 %1438
    %v1441 = vmul.f32 %v1435, %v1439
    %1443 = vrot.lane.b32.xlu0 %v1441, 32
    %v1444 = vpop.permute.xlu0 %1443
    %v1446 = vadd.f32 %v797, %v1444
    %v1447 = vtanh.pop %v1446
    %v1448 = vsub.f32 1.0, %v1435
    %1450 = vrot.lane.b32.xlu0 %v1447, 112
    %v1451 = vpop.permute.xlu0 %1450
    %v1453 = vmul.f32 %v1448, %v1451
    %v1454 = vmul.f32 %v1435, %v1353
    %v1455 = vadd.f32 %v1453, %v1454
    %1457 = vrot.lane.b32.xlu0 %v1455, 112
    %v1458 = vpop.permute.xlu0 %1457
    %v1459 = vsel %vm665, %v1458, 0
    %1461 = vmatprep.subr.mxu0 0.0
    %1462 = vmatpush1.msra.mxu0 %v835
    %1463 = vmatprep.subr.mxu0 0.0
    %1464 = vmatpush1.msra.mxu0 %v836
    %1465 = vmatprep.subr.mxu0 0.0
    %1466 = vmatpush1.msra.mxu0 0.0
    %1467 = vmatprep.subr.mxu0 0.0
    %1468 = vmatpush1.msra.mxu0 0.0
    %1469 = vmatprep.subr.mxu0 0.0
    %1470 = vmatpush1.msra.mxu0 0.0
    %1471 = vmatprep.subr.mxu0 0.0
    %1472 = vmatpush1.msra.mxu0 0.0
    %1473 = vmatprep.subr.mxu0 0.0
    %1474 = vmatpush1.msra.mxu0 0.0
    %1475 = vmatprep.subr.mxu0 0.0
    %1476 = vmatpush1.msra.mxu0 0.0
    %1477 = vmatprep.subr.mxu0 0.0
    %1478 = vmatpush1.msra.mxu0 0.0
    %1479 = vmatprep.subr.mxu0 0.0
    %1480 = vmatpush1.msra.mxu0 0.0
    %1481 = vmatprep.subr.mxu0 0.0
    %1482 = vmatpush1.msra.mxu0 0.0
    %1483 = vmatprep.subr.mxu0 0.0
    %1484 = vmatpush1.msra.mxu0 0.0
    %1485 = vmatprep.subr.mxu0 0.0
    %1486 = vmatpush1.msra.mxu0 0.0
    %1487 = vmatprep.subr.mxu0 0.0
    %1488 = vmatpush1.msra.mxu0 0.0
    %1489 = vmatprep.subr.mxu0 0.0
    %1490 = vmatpush1.msra.mxu0 0.0
    %1491 = vmatprep.subr.mxu0 0.0
    %1492 = vmatpush1.msra.mxu0 0.0
    %1493 = vmatprep.subr.mxu0 0.0
    %1494 = vmatpush1.msra.mxu0 0.0
    %1495 = vmatprep.subr.mxu0 0.0
    %1496 = vmatpush1.msra.mxu0 0.0
    %1497 = vmatprep.subr.mxu0 0.0
    %1498 = vmatpush1.msra.mxu0 0.0
    %1499 = vmatprep.subr.mxu0 0.0
    %1500 = vmatpush1.msra.mxu0 0.0
    %1501 = vmatprep.subr.mxu0 0.0
    %1502 = vmatpush1.msra.mxu0 0.0
    %1503 = vmatprep.subr.mxu0 0.0
    %1504 = vmatpush1.msra.mxu0 0.0
    %1505 = vmatprep.subr.mxu0 0.0
    %1506 = vmatpush1.msra.mxu0 0.0
    %1507 = vmatprep.subr.mxu0 0.0
    %1508 = vmatpush1.msra.mxu0 0.0
    %1509 = vmatprep.subr.mxu0 0.0
    %1510 = vmatpush1.msra.mxu0 0.0
    %1511 = vmatprep.subr.mxu0 0.0
    %1512 = vmatpush1.msra.mxu0 0.0
    %1513 = vmatprep.subr.mxu0 0.0
    %1514 = vmatpush1.msra.mxu0 0.0
    %1515 = vmatprep.subr.mxu0 0.0
    %1516 = vmatpush1.msra.mxu0 0.0
    %1517 = vmatprep.subr.mxu0 0.0
    %1518 = vmatpush1.msra.mxu0 0.0
    %1519 = vmatprep.subr.mxu0 0.0
    %1520 = vmatpush1.msra.mxu0 0.0
    %1521 = vmatprep.subr.mxu0 0.0
    %1522 = vmatpush1.msra.mxu0 0.0
    %1523 = vmatprep.subr.mxu0 0.0
    %1524 = vmatpush1.msra.mxu0 0.0
    %1525 = vmatprep.mubr.f32.mxu0 0.0
    %1526 = vmatmul.mubr.f32.gmra.mrb[0].mxu0 %v1459
    %v1527 = vpop.f32.mrb[0].mxu0
    %v1528 = vadd.f32 0.0, %v1527
    %v1529 = vpop.f32.mrb[0].mxu0
    %1530 = vdwg.mxu0
    %v1531 = vadd.f32 %v802, %v1528
    %v1532 = vxor.u32 %v1531, 2147483648
    %v1533 = vmul.f32 %v1532, 1.442695
    %v1534 = vpow.pop %v1533
    %v1535 = vadd.f32 %v1534, 1.0
    %v1536 = vrcp.pop %v1535
    %v1537 = vmul.f32 1.0, %v1536
    %v1538 = vadd.f32 %v1528, %v924
    %1540 = vrot.lane.b32.xlu0 %v1538, 96
    %v1541 = vpop.permute.xlu0 %1540
    %v1543 = vmul.f32 %v1537, %v1541
    %1545 = vrot.lane.b32.xlu0 %v1543, 32
    %v1546 = vpop.permute.xlu0 %1545
    %v1548 = vadd.f32 %v802, %v1546
    %v1549 = vtanh.pop %v1548
    %v1550 = vsub.f32 1.0, %v1537
    %1552 = vrot.lane.b32.xlu0 %v1549, 112
    %v1553 = vpop.permute.xlu0 %1552
    %v1555 = vmul.f32 %v1550, %v1553
    %v1556 = vmul.f32 %v1537, %v1455
    %v1557 = vadd.f32 %v1555, %v1556
    %1559 = vrot.lane.b32.xlu0 %v1557, 112
    %v1560 = vpop.permute.xlu0 %1559
    %v1561 = vsel %vm665, %v1560, 0
    %1563 = vmatprep.subr.mxu0 0.0
    %1564 = vmatpush1.msra.mxu0 %v835
    %1565 = vmatprep.subr.mxu0 0.0
    %1566 = vmatpush1.msra.mxu0 %v836
    %1567 = vmatprep.subr.mxu0 0.0
    %1568 = vmatpush1.msra.mxu0 0.0
    %1569 = vmatprep.subr.mxu0 0.0
    %1570 = vmatpush1.msra.mxu0 0.0
    %1571 = vmatprep.subr.mxu0 0.0
    %1572 = vmatpush1.msra.mxu0 0.0
    %1573 = vmatprep.subr.mxu0 0.0
    %1574 = vmatpush1.msra.mxu0 0.0
    %1575 = vmatprep.subr.mxu0 0.0
    %1576 = vmatpush1.msra.mxu0 0.0
    %1577 = vmatprep.subr.mxu0 0.0
    %1578 = vmatpush1.msra.mxu0 0.0
    %1579 = vmatprep.subr.mxu0 0.0
    %1580 = vmatpush1.msra.mxu0 0.0
    %1581 = vmatprep.subr.mxu0 0.0
    %1582 = vmatpush1.msra.mxu0 0.0
    %1583 = vmatprep.subr.mxu0 0.0
    %1584 = vmatpush1.msra.mxu0 0.0
    %1585 = vmatprep.subr.mxu0 0.0
    %1586 = vmatpush1.msra.mxu0 0.0
    %1587 = vmatprep.subr.mxu0 0.0
    %1588 = vmatpush1.msra.mxu0 0.0
    %1589 = vmatprep.subr.mxu0 0.0
    %1590 = vmatpush1.msra.mxu0 0.0
    %1591 = vmatprep.subr.mxu0 0.0
    %1592 = vmatpush1.msra.mxu0 0.0
    %1593 = vmatprep.subr.mxu0 0.0
    %1594 = vmatpush1.msra.mxu0 0.0
    %1595 = vmatprep.subr.mxu0 0.0
    %1596 = vmatpush1.msra.mxu0 0.0
    %1597 = vmatprep.subr.mxu0 0.0
    %1598 = vmatpush1.msra.mxu0 0.0
    %1599 = vmatprep.subr.mxu0 0.0
    %1600 = vmatpush1.msra.mxu0 0.0
    %1601 = vmatprep.subr.mxu0 0.0
    %1602 = vmatpush1.msra.mxu0 0.0
    %1603 = vmatprep.subr.mxu0 0.0
    %1604 = vmatpush1.msra.mxu0 0.0
    %1605 = vmatprep.subr.mxu0 0.0
    %1606 = vmatpush1.msra.mxu0 0.0
    %1607 = vmatprep.subr.mxu0 0.0
    %1608 = vmatpush1.msra.mxu0 0.0
    %1609 = vmatprep.subr.mxu0 0.0
    %1610 = vmatpush1.msra.mxu0 0.0
    %1611 = vmatprep.subr.mxu0 0.0
    %1612 = vmatpush1.msra.mxu0 0.0
    %1613 = vmatprep.subr.mxu0 0.0
    %1614 = vmatpush1.msra.mxu0 0.0
    %1615 = vmatprep.subr.mxu0 0.0
    %1616 = vmatpush1.msra.mxu0 0.0
    %1617 = vmatprep.subr.mxu0 0.0
    %1618 = vmatpush1.msra.mxu0 0.0
    %1619 = vmatprep.subr.mxu0 0.0
    %1620 = vmatpush1.msra.mxu0 0.0
    %1621 = vmatprep.subr.mxu0 0.0
    %1622 = vmatpush1.msra.mxu0 0.0
    %1623 = vmatprep.subr.mxu0 0.0
    %1624 = vmatpush1.msra.mxu0 0.0
    %1625 = vmatprep.subr.mxu0 0.0
    %1626 = vmatpush1.msra.mxu0 0.0
    %1627 = vmatprep.mubr.f32.mxu0 0.0
    %1628 = vmatmul.mubr.f32.gmra.mrb[0].mxu0 %v1561
    %v1629 = vpop.f32.mrb[0].mxu0
    %v1630 = vadd.f32 0.0, %v1629
    %v1631 = vpop.f32.mrb[0].mxu0
    %1632 = vdwg.mxu0
    %v1633 = vadd.f32 %v807, %v1630
    %v1634 = vxor.u32 %v1633, 2147483648
    %v1635 = vmul.f32 %v1634, 1.442695
    %v1636 = vpow.pop %v1635
    %v1637 = vadd.f32 %v1636, 1.0
    %v1638 = vrcp.pop %v1637
    %v1639 = vmul.f32 1.0, %v1638
    %v1640 = vadd.f32 %v1630, %v924
    %1642 = vrot.lane.b32.xlu0 %v1640, 96
    %v1643 = vpop.permute.xlu0 %1642
    %v1645 = vmul.f32 %v1639, %v1643
    %1647 = vrot.lane.b32.xlu0 %v1645, 32
    %v1648 = vpop.permute.xlu0 %1647
    %v1650 = vadd.f32 %v807, %v1648
    %v1651 = vtanh.pop %v1650
    %v1652 = vsub.f32 1.0, %v1639
    %1654 = vrot.lane.b32.xlu0 %v1651, 112
    %v1655 = vpop.permute.xlu0 %1654
    %v1657 = vmul.f32 %v1652, %v1655
    %v1658 = vmul.f32 %v1639, %v1557
    %v1659 = vadd.f32 %v1657, %v1658
    %1661 = vrot.lane.b32.xlu0 %v1659, 112
    %v1662 = vpop.permute.xlu0 %1661
    %v1663 = vsel %vm665, %v1662, 0
    %1665 = vmatprep.subr.mxu0 0.0
    %1666 = vmatpush1.msra.mxu0 %v835
    %1667 = vmatprep.subr.mxu0 0.0
    %1668 = vmatpush1.msra.mxu0 %v836
    %1669 = vmatprep.subr.mxu0 0.0
    %1670 = vmatpush1.msra.mxu0 0.0
    %1671 = vmatprep.subr.mxu0 0.0
    %1672 = vmatpush1.msra.mxu0 0.0
    %1673 = vmatprep.subr.mxu0 0.0
    %1674 = vmatpush1.msra.mxu0 0.0
    %1675 = vmatprep.subr.mxu0 0.0
    %1676 = vmatpush1.msra.mxu0 0.0
    %1677 = vmatprep.subr.mxu0 0.0
    %1678 = vmatpush1.msra.mxu0 0.0
    %1679 = vmatprep.subr.mxu0 0.0
    %1680 = vmatpush1.msra.mxu0 0.0
    %1681 = vmatprep.subr.mxu0 0.0
    %1682 = vmatpush1.msra.mxu0 0.0
    %1683 = vmatprep.subr.mxu0 0.0
    %1684 = vmatpush1.msra.mxu0 0.0
    %1685 = vmatprep.subr.mxu0 0.0
    %1686 = vmatpush1.msra.mxu0 0.0
    %1687 = vmatprep.subr.mxu0 0.0
    %1688 = vmatpush1.msra.mxu0 0.0
    %1689 = vmatprep.subr.mxu0 0.0
    %1690 = vmatpush1.msra.mxu0 0.0
    %1691 = vmatprep.subr.mxu0 0.0
    %1692 = vmatpush1.msra.mxu0 0.0
    %1693 = vmatprep.subr.mxu0 0.0
    %1694 = vmatpush1.msra.mxu0 0.0
    %1695 = vmatprep.subr.mxu0 0.0
    %1696 = vmatpush1.msra.mxu0 0.0
    %1697 = vmatprep.subr.mxu0 0.0
    %1698 = vmatpush1.msra.mxu0 0.0
    %1699 = vmatprep.subr.mxu0 0.0
    %1700 = vmatpush1.msra.mxu0 0.0
    %1701 = vmatprep.subr.mxu0 0.0
    %1702 = vmatpush1.msra.mxu0 0.0
    %1703 = vmatprep.subr.mxu0 0.0
    %1704 = vmatpush1.msra.mxu0 0.0
    %1705 = vmatprep.subr.mxu0 0.0
    %1706 = vmatpush1.msra.mxu0 0.0
    %1707 = vmatprep.subr.mxu0 0.0
    %1708 = vmatpush1.msra.mxu0 0.0
    %1709 = vmatprep.subr.mxu0 0.0
    %1710 = vmatpush1.msra.mxu0 0.0
    %1711 = vmatprep.subr.mxu0 0.0
    %1712 = vmatpush1.msra.mxu0 0.0
    %1713 = vmatprep.subr.mxu0 0.0
    %1714 = vmatpush1.msra.mxu0 0.0
    %1715 = vmatprep.subr.mxu0 0.0
    %1716 = vmatpush1.msra.mxu0 0.0
    %1717 = vmatprep.subr.mxu0 0.0
    %1718 = vmatpush1.msra.mxu0 0.0
    %1719 = vmatprep.subr.mxu0 0.0
    %1720 = vmatpush1.msra.mxu0 0.0
    %1721 = vmatprep.subr.mxu0 0.0
    %1722 = vmatpush1.msra.mxu0 0.0
    %1723 = vmatprep.subr.mxu0 0.0
    %1724 = vmatpush1.msra.mxu0 0.0
    %1725 = vmatprep.subr.mxu0 0.0
    %1726 = vmatpush1.msra.mxu0 0.0
    %1727 = vmatprep.subr.mxu0 0.0
    %1728 = vmatpush1.msra.mxu0 0.0
    %1729 = vmatprep.mubr.f32.mxu0 0.0
    %1730 = vmatmul.mubr.f32.gmra.mrb[0].mxu0 %v1663
    %v1731 = vpop.f32.mrb[0].mxu0
    %v1732 = vadd.f32 0.0, %v1731
    %v1733 = vpop.f32.mrb[0].mxu0
    %1734 = vdwg.mxu0
    %v1735 = vadd.f32 %v812, %v1732
    %v1736 = vxor.u32 %v1735, 2147483648
    %v1737 = vmul.f32 %v1736, 1.442695
    %v1738 = vpow.pop %v1737
    %v1739 = vadd.f32 %v1738, 1.0
    %v1740 = vrcp.pop %v1739
    %v1741 = vmul.f32 1.0, %v1740
    %v1742 = vadd.f32 %v1732, %v924
    %1744 = vrot.lane.b32.xlu0 %v1742, 96
    %v1745 = vpop.permute.xlu0 %1744
    %v1747 = vmul.f32 %v1741, %v1745
    %1749 = vrot.lane.b32.xlu0 %v1747, 32
    %v1750 = vpop.permute.xlu0 %1749
    %v1752 = vadd.f32 %v812, %v1750
    %v1753 = vtanh.pop %v1752
    %v1754 = vsub.f32 1.0, %v1741
    %1756 = vrot.lane.b32.xlu0 %v1753, 112
    %v1757 = vpop.permute.xlu0 %1756
    %v1759 = vmul.f32 %v1754, %v1757
    %v1760 = vmul.f32 %v1741, %v1659
    %v1761 = vadd.f32 %v1759, %v1760
    %1763 = vrot.lane.b32.xlu0 %v1761, 112
    %v1764 = vpop.permute.xlu0 %1763
    %v1765 = vsel %vm665, %v1764, 0
    %1767 = vmatprep.subr.mxu0 0.0
    %1768 = vmatpush1.msra.mxu0 %v835
    %1769 = vmatprep.subr.mxu0 0.0
    %1770 = vmatpush1.msra.mxu0 %v836
    %1771 = vmatprep.subr.mxu0 0.0
    %1772 = vmatpush1.msra.mxu0 0.0
    %1773 = vmatprep.subr.mxu0 0.0
    %1774 = vmatpush1.msra.mxu0 0.0
    %1775 = vmatprep.subr.mxu0 0.0
    %1776 = vmatpush1.msra.mxu0 0.0
    %1777 = vmatprep.subr.mxu0 0.0
    %1778 = vmatpush1.msra.mxu0 0.0
    %1779 = vmatprep.subr.mxu0 0.0
    %1780 = vmatpush1.msra.mxu0 0.0
    %1781 = vmatprep.subr.mxu0 0.0
    %1782 = vmatpush1.msra.mxu0 0.0
    %1783 = vmatprep.subr.mxu0 0.0
    %1784 = vmatpush1.msra.mxu0 0.0
    %1785 = vmatprep.subr.mxu0 0.0
    %1786 = vmatpush1.msra.mxu0 0.0
    %1787 = vmatprep.subr.mxu0 0.0
    %1788 = vmatpush1.msra.mxu0 0.0
    %1789 = vmatprep.subr.mxu0 0.0
    %1790 = vmatpush1.msra.mxu0 0.0
    %1791 = vmatprep.subr.mxu0 0.0
    %1792 = vmatpush1.msra.mxu0 0.0
    %1793 = vmatprep.subr.mxu0 0.0
    %1794 = vmatpush1.msra.mxu0 0.0
    %1795 = vmatprep.subr.mxu0 0.0
    %1796 = vmatpush1.msra.mxu0 0.0
    %1797 = vmatprep.subr.mxu0 0.0
    %1798 = vmatpush1.msra.mxu0 0.0
    %1799 = vmatprep.subr.mxu0 0.0
    %1800 = vmatpush1.msra.mxu0 0.0
    %1801 = vmatprep.subr.mxu0 0.0
    %1802 = vmatpush1.msra.mxu0 0.0
    %1803 = vmatprep.subr.mxu0 0.0
    %1804 = vmatpush1.msra.mxu0 0.0
    %1805 = vmatprep.subr.mxu0 0.0
    %1806 = vmatpush1.msra.mxu0 0.0
    %1807 = vmatprep.subr.mxu0 0.0
    %1808 = vmatpush1.msra.mxu0 0.0
    %1809 = vmatprep.subr.mxu0 0.0
    %1810 = vmatpush1.msra.mxu0 0.0
    %1811 = vmatprep.subr.mxu0 0.0
    %1812 = vmatpush1.msra.mxu0 0.0
    %1813 = vmatprep.subr.mxu0 0.0
    %1814 = vmatpush1.msra.mxu0 0.0
    %1815 = vmatprep.subr.mxu0 0.0
    %1816 = vmatpush1.msra.mxu0 0.0
    %1817 = vmatprep.subr.mxu0 0.0
    %1818 = vmatpush1.msra.mxu0 0.0
    %1819 = vmatprep.subr.mxu0 0.0
    %1820 = vmatpush1.msra.mxu0 0.0
    %1821 = vmatprep.subr.mxu0 0.0
    %1822 = vmatpush1.msra.mxu0 0.0
    %1823 = vmatprep.subr.mxu0 0.0
    %1824 = vmatpush1.msra.mxu0 0.0
    %1825 = vmatprep.subr.mxu0 0.0
    %1826 = vmatpush1.msra.mxu0 0.0
    %1827 = vmatprep.subr.mxu0 0.0
    %1828 = vmatpush1.msra.mxu0 0.0
    %1829 = vmatprep.subr.mxu0 0.0
    %1830 = vmatpush1.msra.mxu0 0.0
    %1831 = vmatprep.mubr.f32.mxu0 0.0
    %1832 = vmatmul.mubr.f32.gmra.mrb[0].mxu0 %v1765
    %v1833 = vpop.f32.mrb[0].mxu0
    %v1834 = vadd.f32 0.0, %v1833
    %v1835 = vpop.f32.mrb[0].mxu0
    %1836 = vdwg.mxu0
    %v1837 = vadd.f32 %v817, %v1834
    %v1838 = vxor.u32 %v1837, 2147483648
    %v1839 = vmul.f32 %v1838, 1.442695
    %v1840 = vpow.pop %v1839
    %v1841 = vadd.f32 %v1840, 1.0
    %v1842 = vrcp.pop %v1841
    %v1843 = vmul.f32 1.0, %v1842
    %v1844 = vadd.f32 %v1834, %v924
    %1846 = vrot.lane.b32.xlu0 %v1844, 96
    %v1847 = vpop.permute.xlu0 %1846
    %v1849 = vmul.f32 %v1843, %v1847
    %1851 = vrot.lane.b32.xlu0 %v1849, 32
    %v1852 = vpop.permute.xlu0 %1851
    %v1854 = vadd.f32 %v817, %v1852
    %v1855 = vtanh.pop %v1854
    %v1856 = vsub.f32 1.0, %v1843
    %1858 = vrot.lane.b32.xlu0 %v1855, 112
    %v1859 = vpop.permute.xlu0 %1858
    %v1861 = vmul.f32 %v1856, %v1859
    %v1862 = vmul.f32 %v1843, %v1761
    %v1863 = vadd.f32 %v1861, %v1862
    %1865 = vrot.lane.b32.xlu0 %v1863, 112
    %v1866 = vpop.permute.xlu0 %1865
    %v1867 = vsel %vm665, %v1866, 0
    %1869 = vmatprep.subr.mxu0 0.0
    %1870 = vmatpush1.msra.mxu0 %v835
    %1871 = vmatprep.subr.mxu0 0.0
    %1872 = vmatpush1.msra.mxu0 %v836
    %1873 = vmatprep.subr.mxu0 0.0
    %1874 = vmatpush1.msra.mxu0 0.0
    %1875 = vmatprep.subr.mxu0 0.0
    %1876 = vmatpush1.msra.mxu0 0.0
    %1877 = vmatprep.subr.mxu0 0.0
    %1878 = vmatpush1.msra.mxu0 0.0
    %1879 = vmatprep.subr.mxu0 0.0
    %1880 = vmatpush1.msra.mxu0 0.0
    %1881 = vmatprep.subr.mxu0 0.0
    %1882 = vmatpush1.msra.mxu0 0.0
    %1883 = vmatprep.subr.mxu0 0.0
    %1884 = vmatpush1.msra.mxu0 0.0
    %1885 = vmatprep.subr.mxu0 0.0
    %1886 = vmatpush1.msra.mxu0 0.0
    %1887 = vmatprep.subr.mxu0 0.0
    %1888 = vmatpush1.msra.mxu0 0.0
    %1889 = vmatprep.subr.mxu0 0.0
    %1890 = vmatpush1.msra.mxu0 0.0
    %1891 = vmatprep.subr.mxu0 0.0
    %1892 = vmatpush1.msra.mxu0 0.0
    %1893 = vmatprep.subr.mxu0 0.0
    %1894 = vmatpush1.msra.mxu0 0.0
    %1895 = vmatprep.subr.mxu0 0.0
    %1896 = vmatpush1.msra.mxu0 0.0
    %1897 = vmatprep.subr.mxu0 0.0
    %1898 = vmatpush1.msra.mxu0 0.0
    %1899 = vmatprep.subr.mxu0 0.0
    %1900 = vmatpush1.msra.mxu0 0.0
    %1901 = vmatprep.subr.mxu0 0.0
    %1902 = vmatpush1.msra.mxu0 0.0
    %1903 = vmatprep.subr.mxu0 0.0
    %1904 = vmatpush1.msra.mxu0 0.0
    %1905 = vmatprep.subr.mxu0 0.0
    %1906 = vmatpush1.msra.mxu0 0.0
    %1907 = vmatprep.subr.mxu0 0.0
    %1908 = vmatpush1.msra.mxu0 0.0
    %1909 = vmatprep.subr.mxu0 0.0
    %1910 = vmatpush1.msra.mxu0 0.0
    %1911 = vmatprep.subr.mxu0 0.0
    %1912 = vmatpush1.msra.mxu0 0.0
    %1913 = vmatprep.subr.mxu0 0.0
    %1914 = vmatpush1.msra.mxu0 0.0
    %1915 = vmatprep.subr.mxu0 0.0
    %1916 = vmatpush1.msra.mxu0 0.0
    %1917 = vmatprep.subr.mxu0 0.0
    %1918 = vmatpush1.msra.mxu0 0.0
    %1919 = vmatprep.subr.mxu0 0.0
    %1920 = vmatpush1.msra.mxu0 0.0
    %1921 = vmatprep.subr.mxu0 0.0
    %1922 = vmatpush1.msra.mxu0 0.0
    %1923 = vmatprep.subr.mxu0 0.0
    %1924 = vmatpush1.msra.mxu0 0.0
    %1925 = vmatprep.subr.mxu0 0.0
    %1926 = vmatpush1.msra.mxu0 0.0
    %1927 = vmatprep.subr.mxu0 0.0
    %1928 = vmatpush1.msra.mxu0 0.0
    %1929 = vmatprep.subr.mxu0 0.0
    %1930 = vmatpush1.msra.mxu0 0.0
    %1931 = vmatprep.subr.mxu0 0.0
    %1932 = vmatpush1.msra.mxu0 0.0
    %1933 = vmatprep.mubr.f32.mxu0 0.0
    %1934 = vmatmul.mubr.f32.gmra.mrb[0].mxu0 %v1867
    %v1935 = vpop.f32.mrb[0].mxu0
    %v1936 = vadd.f32 0.0, %v1935
    %v1937 = vpop.f32.mrb[0].mxu0
    %1938 = vdwg.mxu0
    %v1939 = vadd.f32 %v822, %v1936
    %v1940 = vxor.u32 %v1939, 2147483648
    %v1941 = vmul.f32 %v1940, 1.442695
    %v1942 = vpow.pop %v1941
    %v1943 = vadd.f32 %v1942, 1.0
    %v1944 = vrcp.pop %v1943
    %v1945 = vmul.f32 1.0, %v1944
    %v1946 = vadd.f32 %v1936, %v924
    %1948 = vrot.lane.b32.xlu0 %v1946, 96
    %v1949 = vpop.permute.xlu0 %1948
    %v1951 = vmul.f32 %v1945, %v1949
    %1953 = vrot.lane.b32.xlu0 %v1951, 32
    %v1954 = vpop.permute.xlu0 %1953
    %v1956 = vadd.f32 %v822, %v1954
    %v1957 = vtanh.pop %v1956
    %v1958 = vsub.f32 1.0, %v1945
    %1960 = vrot.lane.b32.xlu0 %v1957, 112
    %v1961 = vpop.permute.xlu0 %1960
    %v1963 = vmul.f32 %v1958, %v1961
    %v1964 = vmul.f32 %v1945, %v1863
    %v1965 = vadd.f32 %v1963, %v1964
    %1967 = vrot.lane.b32.xlu0 %v1965, 112
    %v1968 = vpop.permute.xlu0 %1967
    %v1969 = vsel %vm665, %v1968, 0
    %1971 = vmatprep.subr.mxu0 0.0
    %1972 = vmatpush1.msra.mxu0 %v835
    %1973 = vmatprep.subr.mxu0 0.0
    %1974 = vmatpush1.msra.mxu0 %v836
    %1975 = vmatprep.subr.mxu0 0.0
    %1976 = vmatpush1.msra.mxu0 0.0
    %1977 = vmatprep.subr.mxu0 0.0
    %1978 = vmatpush1.msra.mxu0 0.0
    %1979 = vmatprep.subr.mxu0 0.0
    %1980 = vmatpush1.msra.mxu0 0.0
    %1981 = vmatprep.subr.mxu0 0.0
    %1982 = vmatpush1.msra.mxu0 0.0
    %1983 = vmatprep.subr.mxu0 0.0
    %1984 = vmatpush1.msra.mxu0 0.0
    %1985 = vmatprep.subr.mxu0 0.0
    %1986 = vmatpush1.msra.mxu0 0.0
    %1987 = vmatprep.subr.mxu0 0.0
    %1988 = vmatpush1.msra.mxu0 0.0
    %1989 = vmatprep.subr.mxu0 0.0
    %1990 = vmatpush1.msra.mxu0 0.0
    %1991 = vmatprep.subr.mxu0 0.0
    %1992 = vmatpush1.msra.mxu0 0.0
    %1993 = vmatprep.subr.mxu0 0.0
    %1994 = vmatpush1.msra.mxu0 0.0
    %1995 = vmatprep.subr.mxu0 0.0
    %1996 = vmatpush1.msra.mxu0 0.0
    %1997 = vmatprep.subr.mxu0 0.0
    %1998 = vmatpush1.msra.mxu0 0.0
    %1999 = vmatprep.subr.mxu0 0.0
    %2000 = vmatpush1.msra.mxu0 0.0
    %2001 = vmatprep.subr.mxu0 0.0
    %2002 = vmatpush1.msra.mxu0 0.0
    %2003 = vmatprep.subr.mxu0 0.0
    %2004 = vmatpush1.msra.mxu0 0.0
    %2005 = vmatprep.subr.mxu0 0.0
    %2006 = vmatpush1.msra.mxu0 0.0
    %2007 = vmatprep.subr.mxu0 0.0
    %2008 = vmatpush1.msra.mxu0 0.0
    %2009 = vmatprep.subr.mxu0 0.0
    %2010 = vmatpush1.msra.mxu0 0.0
    %2011 = vmatprep.subr.mxu0 0.0
    %2012 = vmatpush1.msra.mxu0 0.0
    %2013 = vmatprep.subr.mxu0 0.0
    %2014 = vmatpush1.msra.mxu0 0.0
    %2015 = vmatprep.subr.mxu0 0.0
    %2016 = vmatpush1.msra.mxu0 0.0
    %2017 = vmatprep.subr.mxu0 0.0
    %2018 = vmatpush1.msra.mxu0 0.0
    %2019 = vmatprep.subr.mxu0 0.0
    %2020 = vmatpush1.msra.mxu0 0.0
    %2021 = vmatprep.subr.mxu0 0.0
    %2022 = vmatpush1.msra.mxu0 0.0
    %2023 = vmatprep.subr.mxu0 0.0
    %2024 = vmatpush1.msra.mxu0 0.0
    %2025 = vmatprep.subr.mxu0 0.0
    %2026 = vmatpush1.msra.mxu0 0.0
    %2027 = vmatprep.subr.mxu0 0.0
    %2028 = vmatpush1.msra.mxu0 0.0
    %2029 = vmatprep.subr.mxu0 0.0
    %2030 = vmatpush1.msra.mxu0 0.0
    %2031 = vmatprep.subr.mxu0 0.0
    %2032 = vmatpush1.msra.mxu0 0.0
    %2033 = vmatprep.subr.mxu0 0.0
    %2034 = vmatpush1.msra.mxu0 0.0
    %2035 = vmatprep.mubr.f32.mxu0 0.0
    %2036 = vmatmul.mubr.f32.gmra.mrb[0].mxu0 %v1969
    %v2037 = vpop.f32.mrb[0].mxu0
    %v2038 = vadd.f32 0.0, %v2037
    %v2039 = vpop.f32.mrb[0].mxu0
    %2040 = vdwg.mxu0
    %v2041 = vadd.f32 %v827, %v2038
    %v2042 = vxor.u32 %v2041, 2147483648
    %v2043 = vmul.f32 %v2042, 1.442695
    %v2044 = vpow.pop %v2043
    %v2045 = vadd.f32 %v2044, 1.0
    %v2046 = vrcp.pop %v2045
    %v2047 = vmul.f32 1.0, %v2046
    %v2048 = vadd.f32 %v2038, %v924
    %2050 = vrot.lane.b32.xlu0 %v2048, 96
    %v2051 = vpop.permute.xlu0 %2050
    %v2053 = vmul.f32 %v2047, %v2051
    %2055 = vrot.lane.b32.xlu0 %v2053, 32
    %v2056 = vpop.permute.xlu0 %2055
    %v2058 = vadd.f32 %v827, %v2056
    %v2059 = vtanh.pop %v2058
    %v2060 = vsub.f32 1.0, %v2047
    %2062 = vrot.lane.b32.xlu0 %v2059, 112
    %v2063 = vpop.permute.xlu0 %2062
    %v2065 = vmul.f32 %v2060, %v2063
    %v2066 = vmul.f32 %v2047, %v1965
    %v2067 = vadd.f32 %v2065, %v2066
    %2069 = vrot.lane.b32.xlu0 %v2067, 112
    %v2070 = vpop.permute.xlu0 %2069
    %v2071 = vsel %vm665, %v2070, 0
    %2073 = vmatprep.subr.mxu0 0.0
    %2074 = vmatpush1.msra.mxu0 %v835
    %2075 = vmatprep.subr.mxu0 0.0
    %2076 = vmatpush1.msra.mxu0 %v836
    %2077 = vmatprep.subr.mxu0 0.0
    %2078 = vmatpush1.msra.mxu0 0.0
    %2079 = vmatprep.subr.mxu0 0.0
    %2080 = vmatpush1.msra.mxu0 0.0
    %2081 = vmatprep.subr.mxu0 0.0
    %2082 = vmatpush1.msra.mxu0 0.0
    %2083 = vmatprep.subr.mxu0 0.0
    %2084 = vmatpush1.msra.mxu0 0.0
    %2085 = vmatprep.subr.mxu0 0.0
    %2086 = vmatpush1.msra.mxu0 0.0
    %2087 = vmatprep.subr.mxu0 0.0
    %2088 = vmatpush1.msra.mxu0 0.0
    %2089 = vmatprep.subr.mxu0 0.0
    %2090 = vmatpush1.msra.mxu0 0.0
    %2091 = vmatprep.subr.mxu0 0.0
    %2092 = vmatpush1.msra.mxu0 0.0
    %2093 = vmatprep.subr.mxu0 0.0
    %2094 = vmatpush1.msra.mxu0 0.0
    %2095 = vmatprep.subr.mxu0 0.0
    %2096 = vmatpush1.msra.mxu0 0.0
    %2097 = vmatprep.subr.mxu0 0.0
    %2098 = vmatpush1.msra.mxu0 0.0
    %2099 = vmatprep.subr.mxu0 0.0
    %2100 = vmatpush1.msra.mxu0 0.0
    %2101 = vmatprep.subr.mxu0 0.0
    %2102 = vmatpush1.msra.mxu0 0.0
    %2103 = vmatprep.subr.mxu0 0.0
    %2104 = vmatpush1.msra.mxu0 0.0
    %2105 = vmatprep.subr.mxu0 0.0
    %2106 = vmatpush1.msra.mxu0 0.0
    %2107 = vmatprep.subr.mxu0 0.0
    %2108 = vmatpush1.msra.mxu0 0.0
    %2109 = vmatprep.subr.mxu0 0.0
    %2110 = vmatpush1.msra.mxu0 0.0
    %2111 = vmatprep.subr.mxu0 0.0
    %2112 = vmatpush1.msra.mxu0 0.0
    %2113 = vmatprep.subr.mxu0 0.0
    %2114 = vmatpush1.msra.mxu0 0.0
    %2115 = vmatprep.subr.mxu0 0.0
    %2116 = vmatpush1.msra.mxu0 0.0
    %2117 = vmatprep.subr.mxu0 0.0
    %2118 = vmatpush1.msra.mxu0 0.0
    %2119 = vmatprep.subr.mxu0 0.0
    %2120 = vmatpush1.msra.mxu0 0.0
    %2121 = vmatprep.subr.mxu0 0.0
    %2122 = vmatpush1.msra.mxu0 0.0
    %2123 = vmatprep.subr.mxu0 0.0
    %2124 = vmatpush1.msra.mxu0 0.0
    %2125 = vmatprep.subr.mxu0 0.0
    %2126 = vmatpush1.msra.mxu0 0.0
    %2127 = vmatprep.subr.mxu0 0.0
    %2128 = vmatpush1.msra.mxu0 0.0
    %2129 = vmatprep.subr.mxu0 0.0
    %2130 = vmatpush1.msra.mxu0 0.0
    %2131 = vmatprep.subr.mxu0 0.0
    %2132 = vmatpush1.msra.mxu0 0.0
    %2133 = vmatprep.subr.mxu0 0.0
    %2134 = vmatpush1.msra.mxu0 0.0
    %2135 = vmatprep.subr.mxu0 0.0
    %2136 = vmatpush1.msra.mxu0 0.0
    %2137 = vmatprep.mubr.f32.mxu0 0.0
    %2138 = vmatmul.mubr.f32.gmra.mrb[0].mxu0 %v2071
    %v2139 = vpop.f32.mrb[0].mxu0
    %v2140 = vadd.f32 0.0, %v2139
    %v2141 = vpop.f32.mrb[0].mxu0
    %2142 = vdwg.mxu0
    %v2143 = vadd.f32 %v832, %v2140
    %v2144 = vxor.u32 %v2143, 2147483648
    %v2145 = vmul.f32 %v2144, 1.442695
    %v2146 = vpow.pop %v2145
    %v2147 = vadd.f32 %v2146, 1.0
    %v2148 = vrcp.pop %v2147
    %v2149 = vmul.f32 1.0, %v2148
    %v2150 = vadd.f32 %v2140, %v924
    %2152 = vrot.lane.b32.xlu0 %v2150, 96
    %v2153 = vpop.permute.xlu0 %2152
    %v2155 = vmul.f32 %v2149, %v2153
    %2157 = vrot.lane.b32.xlu0 %v2155, 32
    %v2158 = vpop.permute.xlu0 %2157
    %v2160 = vadd.f32 %v832, %v2158
    %v2161 = vtanh.pop %v2160
    %v2162 = vsub.f32 1.0, %v2149
    %2164 = vrot.lane.b32.xlu0 %v2161, 112
    %v2165 = vpop.permute.xlu0 %2164
    %v2167 = vmul.f32 %v2162, %v2165
    %v2168 = vmul.f32 %v2149, %v2067
    %v2169 = vadd.f32 %v2167, %v2168
    %v2170 = vld [vmem:[%s1 + $0x40] sm:$0xf]
    %v2171 = vld [vmem:[%s1 + $0x6b] sm:$0x1]
    %vm2172 = vcmask 31744
    %v2173 = vsel %vm2172, 0.0, 0
    %vm2175 = vcmask 1043456
    %v2177 = vsel %vm2175, %v2170, 0
    %2179 = vmatprep.subr.mxu0 0.0
    %2180 = vmatpush1.msra.mxu0 %v2177
    %2181 = vmatprep.subr.mxu0 0.0
    %2182 = vmatpush1.msra.mxu0 0.0
    %2183 = vmatprep.subr.mxu0 0.0
    %2184 = vmatpush1.msra.mxu0 0.0
    %2185 = vmatprep.subr.mxu0 0.0
    %2186 = vmatpush1.msra.mxu0 0.0
    %2187 = vmatprep.subr.mxu0 0.0
    %2188 = vmatpush1.msra.mxu0 0.0
    %2189 = vmatprep.subr.mxu0 0.0
    %2190 = vmatpush1.msra.mxu0 0.0
    %2191 = vmatprep.subr.mxu0 0.0
    %2192 = vmatpush1.msra.mxu0 0.0
    %2193 = vmatprep.subr.mxu0 0.0
    %2194 = vmatpush1.msra.mxu0 0.0
    %2195 = vmatprep.subr.mxu0 0.0
    %2196 = vmatpush1.msra.mxu0 0.0
    %2197 = vmatprep.subr.mxu0 0.0
    %2198 = vmatpush1.msra.mxu0 0.0
    %2199 = vmatprep.subr.mxu0 0.0
    %2200 = vmatpush1.msra.mxu0 0.0
    %2201 = vmatprep.subr.mxu0 0.0
    %2202 = vmatpush1.msra.mxu0 0.0
    %2203 = vmatprep.subr.mxu0 0.0
    %2204 = vmatpush1.msra.mxu0 0.0
    %2205 = vmatprep.subr.mxu0 0.0
    %2206 = vmatpush1.msra.mxu0 0.0
    %2207 = vmatprep.subr.mxu0 0.0
    %2208 = vmatpush1.msra.mxu0 0.0
    %2209 = vmatprep.subr.mxu0 0.0
    %2210 = vmatpush1.msra.mxu0 0.0
    %2211 = vmatprep.subr.mxu0 0.0
    %2212 = vmatpush1.msra.mxu0 0.0
    %2213 = vmatprep.subr.mxu0 0.0
    %2214 = vmatpush1.msra.mxu0 0.0
    %2215 = vmatprep.subr.mxu0 0.0
    %2216 = vmatpush1.msra.mxu0 0.0
    %2217 = vmatprep.subr.mxu0 0.0
    %2218 = vmatpush1.msra.mxu0 0.0
    %2219 = vmatprep.subr.mxu0 0.0
    %2220 = vmatpush1.msra.mxu0 0.0
    %2221 = vmatprep.subr.mxu0 0.0
    %2222 = vmatpush1.msra.mxu0 0.0
    %2223 = vmatprep.subr.mxu0 0.0
    %2224 = vmatpush1.msra.mxu0 0.0
    %2225 = vmatprep.subr.mxu0 0.0
    %2226 = vmatpush1.msra.mxu0 0.0
    %2227 = vmatprep.subr.mxu0 0.0
    %2228 = vmatpush1.msra.mxu0 0.0
    %2229 = vmatprep.subr.mxu0 0.0
    %2230 = vmatpush1.msra.mxu0 0.0
    %2231 = vmatprep.subr.mxu0 0.0
    %2232 = vmatpush1.msra.mxu0 0.0
    %2233 = vmatprep.subr.mxu0 0.0
    %2234 = vmatpush1.msra.mxu0 0.0
    %2235 = vmatprep.subr.mxu0 0.0
    %2236 = vmatpush1.msra.mxu0 0.0
    %2237 = vmatprep.subr.mxu0 0.0
    %2238 = vmatpush1.msra.mxu0 0.0
    %2239 = vmatprep.subr.mxu0 0.0
    %2240 = vmatpush1.msra.mxu0 0.0
    %2241 = vmatprep.subr.mxu0 0.0
    %2242 = vmatpush1.msra.mxu0 0.0
    %2243 = vmatprep.mubr.f32.mxu0 0.0
    %2244 = vmatmul.mubr.f32.gmra.mrb[0].mxu0 %v2173
    %v2245 = vpop.f32.mrb[0].mxu0
    %v2246 = vadd.f32 0.0, %v2245
    %v2247 = vpop.f32.mrb[0].mxu0
    %2248 = vmatprep.mubr.f32.mxu0 0.0
    %2249 = vmatmul.mubr.f32.gmra.mrb[0].mxu0 %v2173
    %v2250 = vpop.f32.mrb[0].mxu0
    %v2251 = vadd.f32 0.0, %v2250
    %v2252 = vpop.f32.mrb[0].mxu0
    %2253 = vmatprep.mubr.f32.mxu0 0.0
    %2254 = vmatmul.mubr.f32.gmra.mrb[0].mxu0 %v2173
    %v2255 = vpop.f32.mrb[0].mxu0
    %v2256 = vadd.f32 0.0, %v2255
    %v2257 = vpop.f32.mrb[0].mxu0
    %2258 = vmatprep.mubr.f32.mxu0 0.0
    %2259 = vmatmul.mubr.f32.gmra.mrb[0].mxu0 %v2173
    %v2260 = vpop.f32.mrb[0].mxu0
    %v2261 = vadd.f32 0.0, %v2260
    %v2262 = vpop.f32.mrb[0].mxu0
    %2263 = vdwg.mxu0
    %2268 = vrot.lane.b32.xlu0 %v2246, 48
    %v2269 = vpop.permute.xlu0 %2268
    %2270 = vrot.lane.b32.xlu0 %v2251, 48
    %v2271 = vpop.permute.xlu0 %2270
    %2272 = vrot.lane.b32.xlu0 %v2256, 48
    %v2273 = vpop.permute.xlu0 %2272
    %2274 = vrot.lane.b32.xlu0 %v2261, 48
    %v2275 = vpop.permute.xlu0 %2274
    %v2280 = vadd.f32 %v777, %v2269
    %v2281 = vadd.f32 %v782, %v2271
    %v2282 = vadd.f32 %v787, %v2273
    %v2283 = vadd.f32 %v792, %v2275
    %v2284 = vxor.u32 %v2280, 2147483648
    %v2285 = vxor.u32 %v2281, 2147483648
    %v2286 = vxor.u32 %v2282, 2147483648
    %v2287 = vxor.u32 %v2283, 2147483648
    %v2288 = vmul.f32 %v2284, 1.442695
    %v2289 = vpow.pop %v2288
    %v2290 = vmul.f32 %v2285, 1.442695
    %v2291 = vpow.pop %v2290
    %v2292 = vmul.f32 %v2286, 1.442695
    %v2293 = vpow.pop %v2292
    %v2294 = vmul.f32 %v2287, 1.442695
    %v2295 = vpow.pop %v2294
    %v2296 = vadd.f32 %v2289, 1.0
    %v2297 = vadd.f32 %v2291, 1.0
    %v2298 = vadd.f32 %v2293, 1.0
    %v2299 = vadd.f32 %v2295, 1.0
    %v2300 = vrcp.pop %v2296
    %v2301 = vmul.f32 1.0, %v2300
    %v2302 = vrcp.pop %v2297
    %v2303 = vmul.f32 1.0, %v2302
    %v2304 = vrcp.pop %v2298
    %v2305 = vmul.f32 1.0, %v2304
    %v2306 = vrcp.pop %v2299
    %v2307 = vmul.f32 1.0, %v2306
    %v2308 = vlaneseq
    %v2309 = vshrl.u32 %v2308, 7
    %v2310 = vsub.s32 0, %v2309
    %v2311 = vrot.slane %v2171, %v2310
    %2313 = vrot.lane.b32.xlu0 %v2311, 8
    %v2314 = vpop.permute.xlu0 %2313
    %v2316 = vadd.f32 %v2246, %v2314
    %v2317 = vadd.f32 %v2251, %v2314
    %v2318 = vadd.f32 %v2256, %v2314
    %v2319 = vadd.f32 %v2261, %v2314
    %2324 = vrot.lane.b32.xlu0 %v2316, 40
    %v2325 = vpop.permute.xlu0 %2324
    %2326 = vrot.lane.b32.xlu0 %v2317, 40
    %v2327 = vpop.permute.xlu0 %2326
    %2328 = vrot.lane.b32.xlu0 %v2318, 40
    %v2329 = vpop.permute.xlu0 %2328
    %2330 = vrot.lane.b32.xlu0 %v2319, 40
    %v2331 = vpop.permute.xlu0 %2330
    %v2336 = vmul.f32 %v2301, %v2325
    %v2337 = vmul.f32 %v2303, %v2327
    %v2338 = vmul.f32 %v2305, %v2329
    %v2339 = vmul.f32 %v2307, %v2331
    %2344 = vrot.lane.b32.xlu0 %v2336, 8
    %v2345 = vpop.permute.xlu0 %2344
    %2346 = vrot.lane.b32.xlu0 %v2337, 8
    %v2347 = vpop.permute.xlu0 %2346
    %2348 = vrot.lane.b32.xlu0 %v2338, 8
    %v2349 = vpop.permute.xlu0 %2348
    %2350 = vrot.lane.b32.xlu0 %v2339, 8
    %v2351 = vpop.permute.xlu0 %2350
    %v2356 = vadd.f32 %v777, %v2345
    %v2357 = vadd.f32 %v782, %v2347
    %v2358 = vadd.f32 %v787, %v2349
    %v2359 = vadd.f32 %v792, %v2351
    %v2360 = vtanh.pop %v2356
    %v2361 = vtanh.pop %v2357
    %v2362 = vtanh.pop %v2358
    %v2363 = vtanh.pop %v2359
    %v2364 = vsub.f32 1.0, %v2301
    %v2365 = vsub.f32 1.0, %v2303
    %v2366 = vsub.f32 1.0, %v2305
    %v2367 = vsub.f32 1.0, %v2307
    %2372 = vrot.lane.b32.xlu0 %v2360, 124
    %v2373 = vpop.permute.xlu0 %2372
    %2374 = vrot.lane.b32.xlu0 %v2361, 124
    %v2375 = vpop.permute.xlu0 %2374
    %2376 = vrot.lane.b32.xlu0 %v2362, 124
    %v2377 = vpop.permute.xlu0 %2376
    %2378 = vrot.lane.b32.xlu0 %v2363, 124
    %v2379 = vpop.permute.xlu0 %2378
    %v2384 = vmul.f32 %v2364, %v2373
    %v2385 = vmul.f32 %v2365, %v2375
    %v2386 = vmul.f32 %v2366, %v2377
    %v2387 = vmul.f32 %v2367, %v2379
    %v2388 = vmul.f32 %v2301, 0.0
    %v2389 = vmul.f32 %v2303, 0.0
    %v2390 = vmul.f32 %v2305, 0.0
    %v2391 = vmul.f32 %v2307, 0.0
    %v2392 = vadd.f32 %v2384, %v2388
    %v2393 = vadd.f32 %v2385, %v2389
    %v2394 = vadd.f32 %v2386, %v2390
    %v2395 = vadd.f32 %v2387, %v2391
    %2400 = vrot.lane.b32.xlu0 %v2392, 76
    %v2401 = vpop.permute.xlu0 %2400
    %2402 = vrot.lane.b32.xlu0 %v2393, 76
    %v2403 = vpop.permute.xlu0 %2402
    %2404 = vrot.lane.b32.xlu0 %v2394, 76
    %v2405 = vpop.permute.xlu0 %2404
    %2406 = vrot.lane.b32.xlu0 %v2395, 76
    %v2407 = vpop.permute.xlu0 %2406
    %v2408 = vsel %vm2172, %v2401, 0
    %v2410 = vsel %vm2172, %v2403, 0
    %v2412 = vsel %vm2172, %v2405, 0
    %v2414 = vsel %vm2172, %v2407, 0
    %2416 = vmatprep.subr.mxu0 0.0
    %2417 = vmatpush1.msra.mxu0 %v2177
    %2418 = vmatprep.subr.mxu0 0.0
    %2419 = vmatpush1.msra.mxu0 0.0
    %2420 = vmatprep.subr.mxu0 0.0
    %2421 = vmatpush1.msra.mxu0 0.0
    %2422 = vmatprep.subr.mxu0 0.0
    %2423 = vmatpush1.msra.mxu0 0.0
    %2424 = vmatprep.subr.mxu0 0.0
    %2425 = vmatpush1.msra.mxu0 0.0
    %2426 = vmatprep.subr.mxu0 0.0
    %2427 = vmatpush1.msra.mxu0 0.0
    %2428 = vmatprep.subr.mxu0 0.0
    %2429 = vmatpush1.msra.mxu0 0.0
    %2430 = vmatprep.subr.mxu0 0.0
    %2431 = vmatpush1.msra.mxu0 0.0
    %2432 = vmatprep.subr.mxu0 0.0
    %2433 = vmatpush1.msra.mxu0 0.0
    %2434 = vmatprep.subr.mxu0 0.0
    %2435 = vmatpush1.msra.mxu0 0.0
    %2436 = vmatprep.subr.mxu0 0.0
    %2437 = vmatpush1.msra.mxu0 0.0
    %2438 = vmatprep.subr.mxu0 0.0
    %2439 = vmatpush1.msra.mxu0 0.0
    %2440 = vmatprep.subr.mxu0 0.0
    %2441 = vmatpush1.msra.mxu0 0.0
    %2442 = vmatprep.subr.mxu0 0.0
    %2443 = vmatpush1.msra.mxu0 0.0
    %2444 = vmatprep.subr.mxu0 0.0
    %2445 = vmatpush1.msra.mxu0 0.0
    %2446 = vmatprep.subr.mxu0 0.0
    %2447 = vmatpush1.msra.mxu0 0.0
    %2448 = vmatprep.subr.mxu0 0.0
    %2449 = vmatpush1.msra.mxu0 0.0
    %2450 = vmatprep.subr.mxu0 0.0
    %2451 = vmatpush1.msra.mxu0 0.0
    %2452 = vmatprep.subr.mxu0 0.0
    %2453 = vmatpush1.msra.mxu0 0.0
    %2454 = vmatprep.subr.mxu0 0.0
    %2455 = vmatpush1.msra.mxu0 0.0
    %2456 = vmatprep.subr.mxu0 0.0
    %2457 = vmatpush1.msra.mxu0 0.0
    %2458 = vmatprep.subr.mxu0 0.0
    %2459 = vmatpush1.msra.mxu0 0.0
    %2460 = vmatprep.subr.mxu0 0.0
    %2461 = vmatpush1.msra.mxu0 0.0
    %2462 = vmatprep.subr.mxu0 0.0
    %2463 = vmatpush1.msra.mxu0 0.0
    %2464 = vmatprep.subr.mxu0 0.0
    %2465 = vmatpush1.msra.mxu0 0.0
    %2466 = vmatprep.subr.mxu0 0.0
    %2467 = vmatpush1.msra.mxu0 0.0
    %2468 = vmatprep.subr.mxu0 0.0
    %2469 = vmatpush1.msra.mxu0 0.0
    %2470 = vmatprep.subr.mxu0 0.0
    %2471 = vmatpush1.msra.mxu0 0.0
    %2472 = vmatprep.subr.mxu0 0.0
    %2473 = vmatpush1.msra.mxu0 0.0
    %2474 = vmatprep.subr.mxu0 0.0
    %2475 = vmatpush1.msra.mxu0 0.0
    %2476 = vmatprep.subr.mxu0 0.0
    %2477 = vmatpush1.msra.mxu0 0.0
    %2478 = vmatprep.subr.mxu0 0.0
    %2479 = vmatpush1.msra.mxu0 0.0
    %2480 = vmatprep.mubr.f32.mxu0 0.0
    %2481 = vmatmul.mubr.f32.gmra.mrb[0].mxu0 %v2408
    %v2482 = vpop.f32.mrb[0].mxu0
    %v2483 = vadd.f32 0.0, %v2482
    %v2484 = vpop.f32.mrb[0].mxu0
    %2485 = vmatprep.mubr.f32.mxu0 0.0
    %2486 = vmatmul.mubr.f32.gmra.mrb[0].mxu0 %v2410
    %v2487 = vpop.f32.mrb[0].mxu0
    %v2488 = vadd.f32 0.0, %v2487
    %v2489 = vpop.f32.mrb[0].mxu0
    %2490 = vmatprep.mubr.f32.mxu0 0.0
    %2491 = vmatmul.mubr.f32.gmra.mrb[0].mxu0 %v2412
    %v2492 = vpop.f32.mrb[0].mxu0
    %v2493 = vadd.f32 0.0, %v2492
    %v2494 = vpop.f32.mrb[0].mxu0
    %2495 = vmatprep.mubr.f32.mxu0 0.0
    %2496 = vmatmul.mubr.f32.gmra.mrb[0].mxu0 %v2414
    %v2497 = vpop.f32.mrb[0].mxu0
    %v2498 = vadd.f32 0.0, %v2497
    %v2499 = vpop.f32.mrb[0].mxu0
    %2500 = vdwg.mxu0
    %2505 = vrot.lane.b32.xlu0 %v2483, 48
    %v2506 = vpop.permute.xlu0 %2505
    %2507 = vrot.lane.b32.xlu0 %v2488, 48
    %v2508 = vpop.permute.xlu0 %2507
    %2509 = vrot.lane.b32.xlu0 %v2493, 48
    %v2510 = vpop.permute.xlu0 %2509
    %2511 = vrot.lane.b32.xlu0 %v2498, 48
    %v2512 = vpop.permute.xlu0 %2511
    %v2517 = vadd.f32 %v797, %v2506
    %v2518 = vadd.f32 %v802, %v2508
    %v2519 = vadd.f32 %v807, %v2510
    %v2520 = vadd.f32 %v812, %v2512
    %v2521 = vxor.u32 %v2517, 2147483648
    %v2522 = vxor.u32 %v2518, 2147483648
    %v2523 = vxor.u32 %v2519, 2147483648
    %v2524 = vxor.u32 %v2520, 2147483648
    %v2525 = vmul.f32 %v2521, 1.442695
    %v2526 = vpow.pop %v2525
    %v2527 = vmul.f32 %v2522, 1.442695
    %v2528 = vpow.pop %v2527
    %v2529 = vmul.f32 %v2523, 1.442695
    %v2530 = vpow.pop %v2529
    %v2531 = vmul.f32 %v2524, 1.442695
    %v2532 = vpow.pop %v2531
    %v2533 = vadd.f32 %v2526, 1.0
    %v2534 = vadd.f32 %v2528, 1.0
    %v2535 = vadd.f32 %v2530, 1.0
    %v2536 = vadd.f32 %v2532, 1.0
    %v2537 = vrcp.pop %v2533
    %v2538 = vmul.f32 1.0, %v2537
    %v2539 = vrcp.pop %v2534
    %v2540 = vmul.f32 1.0, %v2539
    %v2541 = vrcp.pop %v2535
    %v2542 = vmul.f32 1.0, %v2541
    %v2543 = vrcp.pop %v2536
    %v2544 = vmul.f32 1.0, %v2543
    %v2545 = vadd.f32 %v2483, %v2314
    %v2546 = vadd.f32 %v2488, %v2314
    %v2547 = vadd.f32 %v2493, %v2314
    %v2548 = vadd.f32 %v2498, %v2314
    %2553 = vrot.lane.b32.xlu0 %v2545, 40
    %v2554 = vpop.permute.xlu0 %2553
    %2555 = vrot.lane.b32.xlu0 %v2546, 40
    %v2556 = vpop.permute.xlu0 %2555
    %2557 = vrot.lane.b32.xlu0 %v2547, 40
    %v2558 = vpop.permute.xlu0 %2557
    %2559 = vrot.lane.b32.xlu0 %v2548, 40
    %v2560 = vpop.permute.xlu0 %2559
    %v2565 = vmul.f32 %v2538, %v2554
    %v2566 = vmul.f32 %v2540, %v2556
    %v2567 = vmul.f32 %v2542, %v2558
    %v2568 = vmul.f32 %v2544, %v2560
    %2573 = vrot.lane.b32.xlu0 %v2565, 8
    %v2574 = vpop.permute.xlu0 %2573
    %2575 = vrot.lane.b32.xlu0 %v2566, 8
    %v2576 = vpop.permute.xlu0 %2575
    %2577 = vrot.lane.b32.xlu0 %v2567, 8
    %v2578 = vpop.permute.xlu0 %2577
    %2579 = vrot.lane.b32.xlu0 %v2568, 8
    %v2580 = vpop.permute.xlu0 %2579
    %v2585 = vadd.f32 %v797, %v2574
    %v2586 = vadd.f32 %v802, %v2576
    %v2587 = vadd.f32 %v807, %v2578
    %v2588 = vadd.f32 %v812, %v2580
    %v2589 = vtanh.pop %v2585
    %v2590 = vtanh.pop %v2586
    %v2591 = vtanh.pop %v2587
    %v2592 = vtanh.pop %v2588
    %v2593 = vsub.f32 1.0, %v2538
    %v2594 = vsub.f32 1.0, %v2540
    %v2595 = vsub.f32 1.0, %v2542
    %v2596 = vsub.f32 1.0, %v2544
    %2601 = vrot.lane.b32.xlu0 %v2589, 124
    %v2602 = vpop.permute.xlu0 %2601
    %2603 = vrot.lane.b32.xlu0 %v2590, 124
    %v2604 = vpop.permute.xlu0 %2603
    %2605 = vrot.lane.b32.xlu0 %v2591, 124
    %v2606 = vpop.permute.xlu0 %2605
    %2607 = vrot.lane.b32.xlu0 %v2592, 124
    %v2608 = vpop.permute.xlu0 %2607
    %v2613 = vmul.f32 %v2593, %v2602
    %v2614 = vmul.f32 %v2594, %v2604
    %v2615 = vmul.f32 %v2595, %v2606
    %v2616 = vmul.f32 %v2596, %v2608
    %v2617 = vmul.f32 %v2538, %v2392
    %v2618 = vmul.f32 %v2540, %v2393
    %v2619 = vmul.f32 %v2542, %v2394
    %v2620 = vmul.f32 %v2544, %v2395
    %v2621 = vadd.f32 %v2613, %v2617
    %v2622 = vadd.f32 %v2614, %v2618
    %v2623 = vadd.f32 %v2615, %v2619
    %v2624 = vadd.f32 %v2616, %v2620
    %2629 = vrot.lane.b32.xlu0 %v2621, 76
    %v2630 = vpop.permute.xlu0 %2629
    %2631 = vrot.lane.b32.xlu0 %v2622, 76
    %v2632 = vpop.permute.xlu0 %2631
    %2633 = vrot.lane.b32.xlu0 %v2623, 76
    %v2634 = vpop.permute.xlu0 %2633
    %2635 = vrot.lane.b32.xlu0 %v2624, 76
    %v2636 = vpop.permute.xlu0 %2635
    %v2637 = vsel %vm2172, %v2630, 0
    %v2639 = vsel %vm2172, %v2632, 0
    %v2641 = vsel %vm2172, %v2634, 0
    %v2643 = vsel %vm2172, %v2636, 0
    %2645 = vmatprep.subr.mxu0 0.0
    %2646 = vmatpush1.msra.mxu0 %v2177
    %2647 = vmatprep.subr.mxu0 0.0
    %2648 = vmatpush1.msra.mxu0 0.0
    %2649 = vmatprep.subr.mxu0 0.0
    %2650 = vmatpush1.msra.mxu0 0.0
    %2651 = vmatprep.subr.mxu0 0.0
    %2652 = vmatpush1.msra.mxu0 0.0
    %2653 = vmatprep.subr.mxu0 0.0
    %2654 = vmatpush1.msra.mxu0 0.0
    %2655 = vmatprep.subr.mxu0 0.0
    %2656 = vmatpush1.msra.mxu0 0.0
    %2657 = vmatprep.subr.mxu0 0.0
    %2658 = vmatpush1.msra.mxu0 0.0
    %2659 = vmatprep.subr.mxu0 0.0
    %2660 = vmatpush1.msra.mxu0 0.0
    %2661 = vmatprep.subr.mxu0 0.0
    %2662 = vmatpush1.msra.mxu0 0.0
    %2663 = vmatprep.subr.mxu0 0.0
    %2664 = vmatpush1.msra.mxu0 0.0
    %2665 = vmatprep.subr.mxu0 0.0
    %2666 = vmatpush1.msra.mxu0 0.0
    %2667 = vmatprep.subr.mxu0 0.0
    %2668 = vmatpush1.msra.mxu0 0.0
    %2669 = vmatprep.subr.mxu0 0.0
    %2670 = vmatpush1.msra.mxu0 0.0
    %2671 = vmatprep.subr.mxu0 0.0
    %2672 = vmatpush1.msra.mxu0 0.0
    %2673 = vmatprep.subr.mxu0 0.0
    %2674 = vmatpush1.msra.mxu0 0.0
    %2675 = vmatprep.subr.mxu0 0.0
    %2676 = vmatpush1.msra.mxu0 0.0
    %2677 = vmatprep.subr.mxu0 0.0
    %2678 = vmatpush1.msra.mxu0 0.0
    %2679 = vmatprep.subr.mxu0 0.0
    %2680 = vmatpush1.msra.mxu0 0.0
    %2681 = vmatprep.subr.mxu0 0.0
    %2682 = vmatpush1.msra.mxu0 0.0
    %2683 = vmatprep.subr.mxu0 0.0
    %2684 = vmatpush1.msra.mxu0 0.0
    %2685 = vmatprep.subr.mxu0 0.0
    %2686 = vmatpush1.msra.mxu0 0.0
    %2687 = vmatprep.subr.mxu0 0.0
    %2688 = vmatpush1.msra.mxu0 0.0
    %2689 = vmatprep.subr.mxu0 0.0
    %2690 = vmatpush1.msra.mxu0 0.0
    %2691 = vmatprep.subr.mxu0 0.0
    %2692 = vmatpush1.msra.mxu0 0.0
    %2693 = vmatprep.subr.mxu0 0.0
    %2694 = vmatpush1.msra.mxu0 0.0
    %2695 = vmatprep.subr.mxu0 0.0
    %2696 = vmatpush1.msra.mxu0 0.0
    %2697 = vmatprep.subr.mxu0 0.0
    %2698 = vmatpush1.msra.mxu0 0.0
    %2699 = vmatprep.subr.mxu0 0.0
    %2700 = vmatpush1.msra.mxu0 0.0
    %2701 = vmatprep.subr.mxu0 0.0
    %2702 = vmatpush1.msra.mxu0 0.0
    %2703 = vmatprep.subr.mxu0 0.0
    %2704 = vmatpush1.msra.mxu0 0.0
    %2705 = vmatprep.subr.mxu0 0.0
    %2706 = vmatpush1.msra.mxu0 0.0
    %2707 = vmatprep.subr.mxu0 0.0
    %2708 = vmatpush1.msra.mxu0 0.0
    %2709 = vmatprep.mubr.f32.mxu0 0.0
    %2710 = vmatmul.mubr.f32.gmra.mrb[0].mxu0 %v2637
    %v2711 = vpop.f32.mrb[0].mxu0
    %v2712 = vadd.f32 0.0, %v2711
    %v2713 = vpop.f32.mrb[0].mxu0
    %2714 = vmatprep.mubr.f32.mxu0 0.0
    %2715 = vmatmul.mubr.f32.gmra.mrb[0].mxu0 %v2639
    %v2716 = vpop.f32.mrb[0].mxu0
    %v2717 = vadd.f32 0.0, %v2716
    %v2718 = vpop.f32.mrb[0].mxu0
    %2719 = vmatprep.mubr.f32.mxu0 0.0
    %2720 = vmatmul.mubr.f32.gmra.mrb[0].mxu0 %v2641
    %v2721 = vpop.f32.mrb[0].mxu0
    %v2722 = vadd.f32 0.0, %v2721
    %v2723 = vpop.f32.mrb[0].mxu0
    %2724 = vmatprep.mubr.f32.mxu0 0.0
    %2725 = vmatmul.mubr.f32.gmra.mrb[0].mxu0 %v2643
    %v2726 = vpop.f32.mrb[0].mxu0
    %v2727 = vadd.f32 0.0, %v2726
    %v2728 = vpop.f32.mrb[0].mxu0
    %2729 = vdwg.mxu0
    %2734 = vrot.lane.b32.xlu0 %v2712, 48
    %v2735 = vpop.permute.xlu0 %2734
    %2736 = vrot.lane.b32.xlu0 %v2717, 48
    %v2737 = vpop.permute.xlu0 %2736
    %2738 = vrot.lane.b32.xlu0 %v2722, 48
    %v2739 = vpop.permute.xlu0 %2738
    %2740 = vrot.lane.b32.xlu0 %v2727, 48
    %v2741 = vpop.permute.xlu0 %2740
    %v2746 = vadd.f32 %v817, %v2735
    %v2747 = vadd.f32 %v822, %v2737
    %v2748 = vadd.f32 %v827, %v2739
    %v2749 = vadd.f32 %v832, %v2741
    %v2750 = vxor.u32 %v2746, 2147483648
    %v2751 = vxor.u32 %v2747, 2147483648
    %v2752 = vxor.u32 %v2748, 2147483648
    %v2753 = vxor.u32 %v2749, 2147483648
    %v2754 = vmul.f32 %v2750, 1.442695
    %v2755 = vpow.pop %v2754
    %v2756 = vmul.f32 %v2751, 1.442695
    %v2757 = vpow.pop %v2756
    %v2758 = vmul.f32 %v2752, 1.442695
    %v2759 = vpow.pop %v2758
    %v2760 = vmul.f32 %v2753, 1.442695
    %v2761 = vpow.pop %v2760
    %v2762 = vadd.f32 %v2755, 1.0
    %v2763 = vadd.f32 %v2757, 1.0
    %v2764 = vadd.f32 %v2759, 1.0
    %v2765 = vadd.f32 %v2761, 1.0
    %v2766 = vrcp.pop %v2762
    %v2767 = vmul.f32 1.0, %v2766
    %v2768 = vrcp.pop %v2763
    %v2769 = vmul.f32 1.0, %v2768
    %v2770 = vrcp.pop %v2764
    %v2771 = vmul.f32 1.0, %v2770
    %v2772 = vrcp.pop %v2765
    %v2773 = vmul.f32 1.0, %v2772
    %v2774 = vadd.f32 %v2712, %v2314
    %v2775 = vadd.f32 %v2717, %v2314
    %v2776 = vadd.f32 %v2722, %v2314
    %v2777 = vadd.f32 %v2727, %v2314
    %2782 = vrot.lane.b32.xlu0 %v2774, 40
    %v2783 = vpop.permute.xlu0 %2782
    %2784 = vrot.lane.b32.xlu0 %v2775, 40
    %v2785 = vpop.permute.xlu0 %2784
    %2786 = vrot.lane.b32.xlu0 %v2776, 40
    %v2787 = vpop.permute.xlu0 %2786
    %2788 = vrot.lane.b32.xlu0 %v2777, 40
    %v2789 = vpop.permute.xlu0 %2788
    %v2794 = vmul.f32 %v2767, %v2783
    %v2795 = vmul.f32 %v2769, %v2785
    %v2796 = vmul.f32 %v2771, %v2787
    %v2797 = vmul.f32 %v2773, %v2789
    %2802 = vrot.lane.b32.xlu0 %v2794, 8
    %v2803 = vpop.permute.xlu0 %2802
    %2804 = vrot.lane.b32.xlu0 %v2795, 8
    %v2805 = vpop.permute.xlu0 %2804
    %2806 = vrot.lane.b32.xlu0 %v2796, 8
    %v2807 = vpop.permute.xlu0 %2806
    %2808 = vrot.lane.b32.xlu0 %v2797, 8
    %v2809 = vpop.permute.xlu0 %2808
    %v2814 = vadd.f32 %v817, %v2803
    %v2815 = vadd.f32 %v822, %v2805
    %v2816 = vadd.f32 %v827, %v2807
    %v2817 = vadd.f32 %v832, %v2809
    %v2818 = vtanh.pop %v2814
    %v2819 = vtanh.pop %v2815
    %v2820 = vtanh.pop %v2816
    %v2821 = vtanh.pop %v2817
    %v2822 = vsub.f32 1.0, %v2767
    %v2823 = vsub.f32 1.0, %v2769
    %v2824 = vsub.f32 1.0, %v2771
    %v2825 = vsub.f32 1.0, %v2773
    %2830 = vrot.lane.b32.xlu0 %v2818, 124
    %v2831 = vpop.permute.xlu0 %2830
    %2832 = vrot.lane.b32.xlu0 %v2819, 124
    %v2833 = vpop.permute.xlu0 %2832
    %2834 = vrot.lane.b32.xlu0 %v2820, 124
    %v2835 = vpop.permute.xlu0 %2834
    %2836 = vrot.lane.b32.xlu0 %v2821, 124
    %v2837 = vpop.permute.xlu0 %2836
    %v2842 = vmul.f32 %v2822, %v2831
    %v2843 = vmul.f32 %v2823, %v2833
    %v2844 = vmul.f32 %v2824, %v2835
    %v2845 = vmul.f32 %v2825, %v2837
    %v2846 = vmul.f32 %v2767, %v2621
    %v2847 = vmul.f32 %v2769, %v2622
    %v2848 = vmul.f32 %v2771, %v2623
    %v2849 = vmul.f32 %v2773, %v2624
    %v2850 = vadd.f32 %v2842, %v2846
    %v2851 = vadd.f32 %v2843, %v2847
    %v2852 = vadd.f32 %v2844, %v2848
    %v2853 = vadd.f32 %v2845, %v2849
    %v2854 = vld [vmem:[%s1 + $0x48] sm:$0xff]
    %v2855 = vld [vmem:[%s1 + $0x50] sm:$0xff]
    %v2856 = vld [vmem:[%s1 + $0x6c] sm:$0x1]
    %v2857 = vlaneseq
    %v2858 = vshrl.u32 %v2857, 7
    %v2859 = vsub.s32 0, %v2858
    %v2860 = vrot.slane %v2856, %v2859
    %2862 = vrot.lane.b32.xlu0 %v2169, 112
    %v2863 = vpop.permute.xlu0 %2862
    %v2864 = vsel %vm665, %v2863, 0
    %2866 = vmatprep.subr.mxu0 0.0
    %2867 = vmatpush1.msra.mxu0 %v2854
    %2868 = vmatprep.subr.mxu0 0.0
    %2869 = vmatpush1.msra.mxu0 %v2855
    %2870 = vmatprep.subr.mxu0 0.0
    %2871 = vmatpush1.msra.mxu0 0.0
    %2872 = vmatprep.subr.mxu0 0.0
    %2873 = vmatpush1.msra.mxu0 0.0
    %2874 = vmatprep.subr.mxu0 0.0
    %2875 = vmatpush1.msra.mxu0 0.0
    %2876 = vmatprep.subr.mxu0 0.0
    %2877 = vmatpush1.msra.mxu0 0.0
    %2878 = vmatprep.subr.mxu0 0.0
    %2879 = vmatpush1.msra.mxu0 0.0
    %2880 = vmatprep.subr.mxu0 0.0
    %2881 = vmatpush1.msra.mxu0 0.0
    %2882 = vmatprep.subr.mxu0 0.0
    %2883 = vmatpush1.msra.mxu0 0.0
    %2884 = vmatprep.subr.mxu0 0.0
    %2885 = vmatpush1.msra.mxu0 0.0
    %2886 = vmatprep.subr.mxu0 0.0
    %2887 = vmatpush1.msra.mxu0 0.0
    %2888 = vmatprep.subr.mxu0 0.0
    %2889 = vmatpush1.msra.mxu0 0.0
    %2890 = vmatprep.subr.mxu0 0.0
    %2891 = vmatpush1.msra.mxu0 0.0
    %2892 = vmatprep.subr.mxu0 0.0
    %2893 = vmatpush1.msra.mxu0 0.0
    %2894 = vmatprep.subr.mxu0 0.0
    %2895 = vmatpush1.msra.mxu0 0.0
    %2896 = vmatprep.subr.mxu0 0.0
    %2897 = vmatpush1.msra.mxu0 0.0
    %2898 = vmatprep.subr.mxu0 0.0
    %2899 = vmatpush1.msra.mxu0 0.0
    %2900 = vmatprep.subr.mxu0 0.0
    %2901 = vmatpush1.msra.mxu0 0.0
    %2902 = vmatprep.subr.mxu0 0.0
    %2903 = vmatpush1.msra.mxu0 0.0
    %2904 = vmatprep.subr.mxu0 0.0
    %2905 = vmatpush1.msra.mxu0 0.0
    %2906 = vmatprep.subr.mxu0 0.0
    %2907 = vmatpush1.msra.mxu0 0.0
    %2908 = vmatprep.subr.mxu0 0.0
    %2909 = vmatpush1.msra.mxu0 0.0
    %2910 = vmatprep.subr.mxu0 0.0
    %2911 = vmatpush1.msra.mxu0 0.0
    %2912 = vmatprep.subr.mxu0 0.0
    %2913 = vmatpush1.msra.mxu0 0.0
    %2914 = vmatprep.subr.mxu0 0.0
    %2915 = vmatpush1.msra.mxu0 0.0
    %2916 = vmatprep.subr.mxu0 0.0
    %2917 = vmatpush1.msra.mxu0 0.0
    %2918 = vmatprep.subr.mxu0 0.0
    %2919 = vmatpush1.msra.mxu0 0.0
    %2920 = vmatprep.subr.mxu0 0.0
    %2921 = vmatpush1.msra.mxu0 0.0
    %2922 = vmatprep.subr.mxu0 0.0
    %2923 = vmatpush1.msra.mxu0 0.0
    %2924 = vmatprep.subr.mxu0 0.0
    %2925 = vmatpush1.msra.mxu0 0.0
    %2926 = vmatprep.subr.mxu0 0.0
    %2927 = vmatpush1.msra.mxu0 0.0
    %2928 = vmatprep.subr.mxu0 0.0
    %2929 = vmatpush1.msra.mxu0 0.0
    %2930 = vmatprep.mubr.f32.mxu0 0.0
    %2931 = vmatmul.mubr.f32.gmra.mrb[0].mxu0 %v2864
    %v2932 = vpop.f32.mrb[0].mxu0
    %v2933 = vadd.f32 %v2860, %v2932
    %v2934 = vpop.f32.mrb[0].mxu0
    %2935 = vdwg.mxu0
    %v2936 = vld [vmem:[%s1 + $0x58] sm:$0xf]
    %2938 = vrot.lane.b32.xlu0 %v2850, 76
    %v2939 = vpop.permute.xlu0 %2938
    %v2940 = vsel %vm2172, %v2939, 0
    %v2943 = vsel %vm2175, %v2936, 0
    %2945 = vmatprep.subr.mxu0 0.0
    %2946 = vmatpush1.msra.mxu0 %v2943
    %2947 = vmatprep.subr.mxu0 0.0
    %2948 = vmatpush1.msra.mxu0 0.0
    %2949 = vmatprep.subr.mxu0 0.0
    %2950 = vmatpush1.msra.mxu0 0.0
    %2951 = vmatprep.subr.mxu0 0.0
    %2952 = vmatpush1.msra.mxu0 0.0
    %2953 = vmatprep.subr.mxu0 0.0
    %2954 = vmatpush1.msra.mxu0 0.0
    %2955 = vmatprep.subr.mxu0 0.0
    %2956 = vmatpush1.msra.mxu0 0.0
    %2957 = vmatprep.subr.mxu0 0.0
    %2958 = vmatpush1.msra.mxu0 0.0
    %2959 = vmatprep.subr.mxu0 0.0
    %2960 = vmatpush1.msra.mxu0 0.0
    %2961 = vmatprep.subr.mxu0 0.0
    %2962 = vmatpush1.msra.mxu0 0.0
    %2963 = vmatprep.subr.mxu0 0.0
    %2964 = vmatpush1.msra.mxu0 0.0
    %2965 = vmatprep.subr.mxu0 0.0
    %2966 = vmatpush1.msra.mxu0 0.0
    %2967 = vmatprep.subr.mxu0 0.0
    %2968 = vmatpush1.msra.mxu0 0.0
    %2969 = vmatprep.subr.mxu0 0.0
    %2970 = vmatpush1.msra.mxu0 0.0
    %2971 = vmatprep.subr.mxu0 0.0
    %2972 = vmatpush1.msra.mxu0 0.0
    %2973 = vmatprep.subr.mxu0 0.0
    %2974 = vmatpush1.msra.mxu0 0.0
    %2975 = vmatprep.subr.mxu0 0.0
    %2976 = vmatpush1.msra.mxu0 0.0
    %2977 = vmatprep.subr.mxu0 0.0
    %2978 = vmatpush1.msra.mxu0 0.0
    %2979 = vmatprep.subr.mxu0 0.0
    %2980 = vmatpush1.msra.mxu0 0.0
    %2981 = vmatprep.subr.mxu0 0.0
    %2982 = vmatpush1.msra.mxu0 0.0
    %2983 = vmatprep.subr.mxu0 0.0
    %2984 = vmatpush1.msra.mxu0 0.0
    %2985 = vmatprep.subr.mxu0 0.0
    %2986 = vmatpush1.msra.mxu0 0.0
    %2987 = vmatprep.subr.mxu0 0.0
    %2988 = vmatpush1.msra.mxu0 0.0
    %2989 = vmatprep.subr.mxu0 0.0
    %2990 = vmatpush1.msra.mxu0 0.0
    %2991 = vmatprep.subr.mxu0 0.0
    %2992 = vmatpush1.msra.mxu0 0.0
    %2993 = vmatprep.subr.mxu0 0.0
    %2994 = vmatpush1.msra.mxu0 0.0
    %2995 = vmatprep.subr.mxu0 0.0
    %2996 = vmatpush1.msra.mxu0 0.0
    %2997 = vmatprep.subr.mxu0 0.0
    %2998 = vmatpush1.msra.mxu0 0.0
    %2999 = vmatprep.subr.mxu0 0.0
    %3000 = vmatpush1.msra.mxu0 0.0
    %3001 = vmatprep.subr.mxu0 0.0
    %3002 = vmatpush1.msra.mxu0 0.0
    %3003 = vmatprep.subr.mxu0 0.0
    %3004 = vmatpush1.msra.mxu0 0.0
    %3005 = vmatprep.subr.mxu0 0.0
    %3006 = vmatpush1.msra.mxu0 0.0
    %3007 = vmatprep.subr.mxu0 0.0
    %3008 = vmatpush1.msra.mxu0 0.0
    %3009 = vmatprep.mubr.f32.mxu0 0.0
    %3010 = vmatmul.mubr.f32.gmra.mrb[0].mxu0 %v2940
    %v3011 = vpop.f32.mrb[0].mxu0
    %v3012 = vadd.f32 0.0, %v3011
    %v3013 = vpop.f32.mrb[0].mxu0
    %3014 = vdwg.mxu0
    %v3015 = vadd.f32 %v2933, %v3012
    %v3016 = vld [vmem:[%s1 + $0x5c] sm:$0xf]
    %3018 = vrot.lane.b32.xlu0 %v2851, 76
    %v3019 = vpop.permute.xlu0 %3018
    %v3020 = vsel %vm2172, %v3019, 0
    %v3023 = vsel %vm2175, %v3016, 0
    %3025 = vmatprep.subr.mxu0 0.0
    %3026 = vmatpush1.msra.mxu0 %v3023
    %3027 = vmatprep.subr.mxu0 0.0
    %3028 = vmatpush1.msra.mxu0 0.0
    %3029 = vmatprep.subr.mxu0 0.0
    %3030 = vmatpush1.msra.mxu0 0.0
    %3031 = vmatprep.subr.mxu0 0.0
    %3032 = vmatpush1.msra.mxu0 0.0
    %3033 = vmatprep.subr.mxu0 0.0
    %3034 = vmatpush1.msra.mxu0 0.0
    %3035 = vmatprep.subr.mxu0 0.0
    %3036 = vmatpush1.msra.mxu0 0.0
    %3037 = vmatprep.subr.mxu0 0.0
    %3038 = vmatpush1.msra.mxu0 0.0
    %3039 = vmatprep.subr.mxu0 0.0
    %3040 = vmatpush1.msra.mxu0 0.0
    %3041 = vmatprep.subr.mxu0 0.0
    %3042 = vmatpush1.msra.mxu0 0.0
    %3043 = vmatprep.subr.mxu0 0.0
    %3044 = vmatpush1.msra.mxu0 0.0
    %3045 = vmatprep.subr.mxu0 0.0
    %3046 = vmatpush1.msra.mxu0 0.0
    %3047 = vmatprep.subr.mxu0 0.0
    %3048 = vmatpush1.msra.mxu0 0.0
    %3049 = vmatprep.subr.mxu0 0.0
    %3050 = vmatpush1.msra.mxu0 0.0
    %3051 = vmatprep.subr.mxu0 0.0
    %3052 = vmatpush1.msra.mxu0 0.0
    %3053 = vmatprep.subr.mxu0 0.0
    %3054 = vmatpush1.msra.mxu0 0.0
    %3055 = vmatprep.subr.mxu0 0.0
    %3056 = vmatpush1.msra.mxu0 0.0
    %3057 = vmatprep.subr.mxu0 0.0
    %3058 = vmatpush1.msra.mxu0 0.0
    %3059 = vmatprep.subr.mxu0 0.0
    %3060 = vmatpush1.msra.mxu0 0.0
    %3061 = vmatprep.subr.mxu0 0.0
    %3062 = vmatpush1.msra.mxu0 0.0
    %3063 = vmatprep.subr.mxu0 0.0
    %3064 = vmatpush1.msra.mxu0 0.0
    %3065 = vmatprep.subr.mxu0 0.0
    %3066 = vmatpush1.msra.mxu0 0.0
    %3067 = vmatprep.subr.mxu0 0.0
    %3068 = vmatpush1.msra.mxu0 0.0
    %3069 = vmatprep.subr.mxu0 0.0
    %3070 = vmatpush1.msra.mxu0 0.0
    %3071 = vmatprep.subr.mxu0 0.0
    %3072 = vmatpush1.msra.mxu0 0.0
    %3073 = vmatprep.subr.mxu0 0.0
    %3074 = vmatpush1.msra.mxu0 0.0
    %3075 = vmatprep.subr.mxu0 0.0
    %3076 = vmatpush1.msra.mxu0 0.0
    %3077 = vmatprep.subr.mxu0 0.0
    %3078 = vmatpush1.msra.mxu0 0.0
    %3079 = vmatprep.subr.mxu0 0.0
    %3080 = vmatpush1.msra.mxu0 0.0
    %3081 = vmatprep.subr.mxu0 0.0
    %3082 = vmatpush1.msra.mxu0 0.0
    %3083 = vmatprep.subr.mxu0 0.0
    %3084 = vmatpush1.msra.mxu0 0.0
    %3085 = vmatprep.subr.mxu0 0.0
    %3086 = vmatpush1.msra.mxu0 0.0
    %3087 = vmatprep.subr.mxu0 0.0
    %3088 = vmatpush1.msra.mxu0 0.0
    %3089 = vmatprep.mubr.f32.mxu0 0.0
    %3090 = vmatmul.mubr.f32.gmra.mrb[0].mxu0 %v3020
    %v3091 = vpop.f32.mrb[0].mxu0
    %v3092 = vadd.f32 0.0, %v3091
    %v3093 = vpop.f32.mrb[0].mxu0
    %3094 = vdwg.mxu0
    %v3095 = vadd.f32 %v3015, %v3092
    %v3096 = vld [vmem:[%s1 + $0x60] sm:$0xf]
    %3098 = vrot.lane.b32.xlu0 %v2852, 76
    %v3099 = vpop.permute.xlu0 %3098
    %v3100 = vsel %vm2172, %v3099, 0
    %v3103 = vsel %vm2175, %v3096, 0
    %3105 = vmatprep.subr.mxu0 0.0
    %3106 = vmatpush1.msra.mxu0 %v3103
    %3107 = vmatprep.subr.mxu0 0.0
    %3108 = vmatpush1.msra.mxu0 0.0
    %3109 = vmatprep.subr.mxu0 0.0
    %3110 = vmatpush1.msra.mxu0 0.0
    %3111 = vmatprep.subr.mxu0 0.0
    %3112 = vmatpush1.msra.mxu0 0.0
    %3113 = vmatprep.subr.mxu0 0.0
    %3114 = vmatpush1.msra.mxu0 0.0
    %3115 = vmatprep.subr.mxu0 0.0
    %3116 = vmatpush1.msra.mxu0 0.0
    %3117 = vmatprep.subr.mxu0 0.0
    %3118 = vmatpush1.msra.mxu0 0.0
    %3119 = vmatprep.subr.mxu0 0.0
    %3120 = vmatpush1.msra.mxu0 0.0
    %3121 = vmatprep.subr.mxu0 0.0
    %3122 = vmatpush1.msra.mxu0 0.0
    %3123 = vmatprep.subr.mxu0 0.0
    %3124 = vmatpush1.msra.mxu0 0.0
    %3125 = vmatprep.subr.mxu0 0.0
    %3126 = vmatpush1.msra.mxu0 0.0
    %3127 = vmatprep.subr.mxu0 0.0
    %3128 = vmatpush1.msra.mxu0 0.0
    %3129 = vmatprep.subr.mxu0 0.0
    %3130 = vmatpush1.msra.mxu0 0.0
    %3131 = vmatprep.subr.mxu0 0.0
    %3132 = vmatpush1.msra.mxu0 0.0
    %3133 = vmatprep.subr.mxu0 0.0
    %3134 = vmatpush1.msra.mxu0 0.0
    %3135 = vmatprep.subr.mxu0 0.0
    %3136 = vmatpush1.msra.mxu0 0.0
    %3137 = vmatprep.subr.mxu0 0.0
    %3138 = vmatpush1.msra.mxu0 0.0
    %3139 = vmatprep.subr.mxu0 0.0
    %3140 = vmatpush1.msra.mxu0 0.0
    %3141 = vmatprep.subr.mxu0 0.0
    %3142 = vmatpush1.msra.mxu0 0.0
    %3143 = vmatprep.subr.mxu0 0.0
    %3144 = vmatpush1.msra.mxu0 0.0
    %3145 = vmatprep.subr.mxu0 0.0
    %3146 = vmatpush1.msra.mxu0 0.0
    %3147 = vmatprep.subr.mxu0 0.0
    %3148 = vmatpush1.msra.mxu0 0.0
    %3149 = vmatprep.subr.mxu0 0.0
    %3150 = vmatpush1.msra.mxu0 0.0
    %3151 = vmatprep.subr.mxu0 0.0
    %3152 = vmatpush1.msra.mxu0 0.0
    %3153 = vmatprep.subr.mxu0 0.0
    %3154 = vmatpush1.msra.mxu0 0.0
    %3155 = vmatprep.subr.mxu0 0.0
    %3156 = vmatpush1.msra.mxu0 0.0
    %3157 = vmatprep.subr.mxu0 0.0
    %3158 = vmatpush1.msra.mxu0 0.0
    %3159 = vmatprep.subr.mxu0 0.0
    %3160 = vmatpush1.msra.mxu0 0.0
    %3161 = vmatprep.subr.mxu0 0.0
    %3162 = vmatpush1.msra.mxu0 0.0
    %3163 = vmatprep.subr.mxu0 0.0
    %3164 = vmatpush1.msra.mxu0 0.0
    %3165 = vmatprep.subr.mxu0 0.0
    %3166 = vmatpush1.msra.mxu0 0.0
    %3167 = vmatprep.subr.mxu0 0.0
    %3168 = vmatpush1.msra.mxu0 0.0
    %3169 = vmatprep.mubr.f32.mxu0 0.0
    %3170 = vmatmul.mubr.f32.gmra.mrb[0].mxu0 %v3100
    %v3171 = vpop.f32.mrb[0].mxu0
    %v3172 = vadd.f32 0.0, %v3171
    %v3173 = vpop.f32.mrb[0].mxu0
    %3174 = vdwg.mxu0
    %v3175 = vadd.f32 %v3095, %v3172
    %v3176 = vld [vmem:[%s1 + $0x64] sm:$0xf]
    %3178 = vrot.lane.b32.xlu0 %v2853, 76
    %v3179 = vpop.permute.xlu0 %3178
    %v3180 = vsel %vm2172, %v3179, 0
    %v3183 = vsel %vm2175, %v3176, 0
    %3185 = vmatprep.subr.mxu0 0.0
    %3186 = vmatpush1.msra.mxu0 %v3183
    %3187 = vmatprep.subr.mxu0 0.0
    %3188 = vmatpush1.msra.mxu0 0.0
    %3189 = vmatprep.subr.mxu0 0.0
    %3190 = vmatpush1.msra.mxu0 0.0
    %3191 = vmatprep.subr.mxu0 0.0
    %3192 = vmatpush1.msra.mxu0 0.0
    %3193 = vmatprep.subr.mxu0 0.0
    %3194 = vmatpush1.msra.mxu0 0.0
    %3195 = vmatprep.subr.mxu0 0.0
    %3196 = vmatpush1.msra.mxu0 0.0
    %3197 = vmatprep.subr.mxu0 0.0
    %3198 = vmatpush1.msra.mxu0 0.0
    %3199 = vmatprep.subr.mxu0 0.0
    %3200 = vmatpush1.msra.mxu0 0.0
    %3201 = vmatprep.subr.mxu0 0.0
    %3202 = vmatpush1.msra.mxu0 0.0
    %3203 = vmatprep.subr.mxu0 0.0
    %3204 = vmatpush1.msra.mxu0 0.0
    %3205 = vmatprep.subr.mxu0 0.0
    %3206 = vmatpush1.msra.mxu0 0.0
    %3207 = vmatprep.subr.mxu0 0.0
    %3208 = vmatpush1.msra.mxu0 0.0
    %3209 = vmatprep.subr.mxu0 0.0
    %3210 = vmatpush1.msra.mxu0 0.0
    %3211 = vmatprep.subr.mxu0 0.0
    %3212 = vmatpush1.msra.mxu0 0.0
    %3213 = vmatprep.subr.mxu0 0.0
    %3214 = vmatpush1.msra.mxu0 0.0
    %3215 = vmatprep.subr.mxu0 0.0
    %3216 = vmatpush1.msra.mxu0 0.0
    %3217 = vmatprep.subr.mxu0 0.0
    %3218 = vmatpush1.msra.mxu0 0.0
    %3219 = vmatprep.subr.mxu0 0.0
    %3220 = vmatpush1.msra.mxu0 0.0
    %3221 = vmatprep.subr.mxu0 0.0
    %3222 = vmatpush1.msra.mxu0 0.0
    %3223 = vmatprep.subr.mxu0 0.0
    %3224 = vmatpush1.msra.mxu0 0.0
    %3225 = vmatprep.subr.mxu0 0.0
    %3226 = vmatpush1.msra.mxu0 0.0
    %3227 = vmatprep.subr.mxu0 0.0
    %3228 = vmatpush1.msra.mxu0 0.0
    %3229 = vmatprep.subr.mxu0 0.0
    %3230 = vmatpush1.msra.mxu0 0.0
    %3231 = vmatprep.subr.mxu0 0.0
    %3232 = vmatpush1.msra.mxu0 0.0
    %3233 = vmatprep.subr.mxu0 0.0
    %3234 = vmatpush1.msra.mxu0 0.0
    %3235 = vmatprep.subr.mxu0 0.0
    %3236 = vmatpush1.msra.mxu0 0.0
    %3237 = vmatprep.subr.mxu0 0.0
    %3238 = vmatpush1.msra.mxu0 0.0
    %3239 = vmatprep.subr.mxu0 0.0
    %3240 = vmatpush1.msra.mxu0 0.0
    %3241 = vmatprep.subr.mxu0 0.0
    %3242 = vmatpush1.msra.mxu0 0.0
    %3243 = vmatprep.subr.mxu0 0.0
    %3244 = vmatpush1.msra.mxu0 0.0
    %3245 = vmatprep.subr.mxu0 0.0
    %3246 = vmatpush1.msra.mxu0 0.0
    %3247 = vmatprep.subr.mxu0 0.0
    %3248 = vmatpush1.msra.mxu0 0.0
    %3249 = vmatprep.mubr.f32.mxu0 0.0
    %3250 = vmatmul.mubr.f32.gmra.mrb[0].mxu0 %v3180
    %v3251 = vpop.f32.mrb[0].mxu0
    %v3252 = vadd.f32 0.0, %v3251
    %v3253 = vpop.f32.mrb[0].mxu0
    %3254 = vdwg.mxu0
    %v3255 = vadd.f32 %v3175, %v3252
    %v3256 = vld [vmem:[%s1 + $0x70] sm:$0xff]
    %v3257 = vld [vmem:[%s1 + $0x78] sm:$0xff]
    %v3258 = vld [vmem:[%s1 + $0x80] sm:$0xff]
    %v3259 = vld [vmem:[%s1 + $0x88] sm:$0xff]
    %3261 = vset.pattern.permute.xlu0 0
    %3262 = vperm.xlu0 %3261, %v3256
    %v3263 = vpop.permute.xlu0 %3262
    %3266 = vset.pattern.permute.xlu0 0
    %3267 = vperm.xlu0 %3266, %v3257
    %v3268 = vpop.permute.xlu0 %3267
    %3271 = vset.pattern.permute.xlu0 0
    %3272 = vperm.xlu0 %3271, %v3258
    %v3273 = vpop.permute.xlu0 %3272
    %3276 = vset.pattern.permute.xlu0 0
    %3277 = vperm.xlu0 %3276, %v3259
    %v3278 = vpop.permute.xlu0 %3277
    %v3280 = vmul.f32 %v24, %v3263
    %v3281 = vmul.f32 %v25, %v3268
    %v3282 = vmul.f32 %v26, %v3273
    %v3283 = vmul.f32 %v27, %v3278
    %v3284 = vadd.f32 %v3255, %v3280
    %v3285 = vadd.f32 %v3284, %v3281
    %v3286 = vadd.f32 %v3285, %v3282
    %v3287 = vadd.f32 %v3286, %v3283
    %v3288 = vxor.u32 %v3287, 2147483648
    %v3289 = vmul.f32 %v3288, 1.442695
    %v3290 = vpow.pop %v3289
    %v3291 = vadd.f32 %v3290, 1.0
    %v3292 = vrcp.pop %v3291
    %v3293 = vmul.f32 1.0, %v3292
    %3294 = vst.msk [vmem:[#allocation2] sm:$0xff] %vm30, %v3293
    // Predicated region
    $region10: #{lstnet_forward.1} parent=1 // pred_check
      _
    $region11: #{lstnet_forward.1} parent=1 // pred_check_branch
      %3296 = sbr.rel (0) target = $region13
    $region12: #{lstnet_forward.1} parent=1 // pred_region
      %s3298 = ssub.s32 128, 128
      %3299 = vsyncadd [#allocation3], %s3298
      %s3301 = sshll.u32 [#allocation2], 4
      %s3302 = int_to_ptr.vmem [resolvable:$true] %s3301
      %3304 = dma.vmem_to_hbm [thread:$0]  %s3302, 128, %s2, [#allocation3]
    $region13: #{lstnet_forward.1} parent=1 // pred_fallthru
      _
    // Predicated region
    $region14: #{lstnet_forward.1} parent=1 // pred_check
      _
    $region15: #{lstnet_forward.1} parent=1 // pred_check_branch
      %3306 = sbr.rel (0) target = $region17
    $region16: #{lstnet_forward.1} parent=1 // pred_region
      %3307 = dma.done [#allocation3], 128
    $region17: #{lstnet_forward.1} parent=1 // pred_fallthru
      _
    %3308 = vsyncpa [#allocation3], 1

</llo_original>
